<compile_context>
chip_gen: v7x
topology: tpu7x:2x2x1
jax: 0.10.0
libtpu: 0.0.40
codegen_flags: <defaults>
</compile_context>

<pallas_src>
import functools
import math

import jax
import jax.numpy as jnp
from jax.experimental import pallas as pl
from jax.experimental.pallas import tpu as pltpu

_EPS = 1e-5                      # nn.BatchNorm2d default eps
_MXU_DTYPE = jnp.bfloat16        # MXU operand dtype (f32 accumulation)


# ------------------------------ kernel helpers ------------------------------ #

def _conv3x3_from_padded(pad_ref, w_ref, nb, H, W, Cin, Cout):
    """3x3 'valid' conv over the (nb, H+2, W+2, Cin) zero-padded VMEM scratch.

    9 shifted (Mb, Cin) @ (Cin, Cout) MXU matmuls accumulated in f32.  At real
    channel widths (Cin >= 64) each tap already has a fat contraction dim; for
    very small Cin an im2col concat (K = 9*Cin, single matmul) is the next step.
    """
    Mb = nb * H * W
    acc = jnp.zeros((Mb, Cout), jnp.float32)
    for ky in range(3):
        for kx in range(3):
            patch = pad_ref[:, ky:ky + H, kx:kx + W, :].reshape(Mb, Cin)
            acc = acc + jnp.dot(patch.astype(_MXU_DTYPE), w_ref[ky, kx],
                                preferred_element_type=jnp.float32)
    return acc


def _bn_affine(s_ref, ss_ref, g_ref, be_ref, m_total):
    """Training-mode BatchNorm scale/shift from per-block partial sums."""
    tot = jnp.sum(s_ref[...], axis=0)                       # (1, C)
    tss = jnp.sum(ss_ref[...], axis=0)                      # (1, C)
    mean = tot / m_total
    var = jnp.maximum(tss / m_total - mean * mean, 0.0)     # guard vs. cancellation
    scale = g_ref[...] * jax.lax.rsqrt(var + _EPS)          # (1, C)   EUP rsqrt
    shift = be_ref[...] - mean * scale                      # (1, C)
    return scale, shift


# --------------------------------- kernels ---------------------------------- #

def _conv_stats_kernel(x_ref, w_ref, y_ref, s_ref, ss_ref, pad_ref):
    # x_ref: (nb,H,W,Cin)  w_ref: (3,3,Cin,Cout) bf16
    # y_ref: (nb,H,W,Cout) pre-BN conv output; s/ss: (1,1,Cout) partial sums
    nb, H, W, Cin = x_ref.shape
    Cout = y_ref.shape[-1]
    # build the zero halo inside VMEM (no wrapper-side jnp.pad round trip)
    pad_ref[...] = jnp.zeros_like(pad_ref)
    pad_ref[:, 1:H + 1, 1:W + 1, :] = x_ref[...]
    acc = _conv3x3_from_padded(pad_ref, w_ref, nb, H, W, Cin, Cout)
    y_ref[...] = acc.reshape(nb, H, W, Cout)
    s_ref[...] = jnp.sum(acc, axis=0, keepdims=True).reshape(1, 1, Cout)
    ss_ref[...] = jnp.sum(acc * acc, axis=0, keepdims=True).reshape(1, 1, Cout)


def _bn_relu_conv_stats_kernel(y_ref, s_ref, ss_ref, g_ref, be_ref, w_ref,
                               y2_ref, s2_ref, ss2_ref, pad_ref, *, m_total):
    # Fused: BN1-apply + ReLU (a1 stays in VMEM) + conv2 + BN2 partial stats.
    nb, H, W, C = y_ref.shape
    Cout = y2_ref.shape[-1]
    scale, shift = _bn_affine(s_ref, ss_ref, g_ref, be_ref, m_total)
    a = jnp.maximum(y_ref[...] * scale.reshape(1, 1, 1, C)
                    + shift.reshape(1, 1, 1, C), 0.0)
    # zero-pad AFTER BN+ReLU (the conv halo must be true zeros)
    pad_ref[...] = jnp.zeros_like(pad_ref)
    pad_ref[:, 1:H + 1, 1:W + 1, :] = a
    acc = _conv3x3_from_padded(pad_ref, w_ref, nb, H, W, C, Cout)
    y2_ref[...] = acc.reshape(nb, H, W, Cout)
    s2_ref[...] = jnp.sum(acc, axis=0, keepdims=True).reshape(1, 1, Cout)
    ss2_ref[...] = jnp.sum(acc * acc, axis=0, keepdims=True).reshape(1, 1, Cout)


def _bn_relu_pool_kernel(y_ref, s_ref, ss_ref, g_ref, be_ref, a_ref, p_ref,
                         *, m_total):
    # Fused: BN2-apply + ReLU + 2x2/2 max-pool; writes both a2 and p.
    nb, H, W, C = y_ref.shape
    Ho, Wo = H // 2, W // 2
    scale, shift = _bn_affine(s_ref, ss_ref, g_ref, be_ref, m_total)
    a = jnp.maximum(y_ref[...] * scale.reshape(1, 1, 1, C)
                    + shift.reshape(1, 1, 1, C), 0.0)
    a_ref[...] = a
    # W (sublane) pairs via stride-2 reads of the tile just written;
    # H pairs via a (major-dim) pair-split reshape.  Floor behaviour = MaxPool2d(2).
    left = a_ref[:, :, pl.ds(0, Wo, 2), :]
    right = a_ref[:, :, pl.ds(1, Wo, 2), :]
    colmax = jnp.maximum(left, right).reshape(nb, Ho, 2, Wo, C)
    p_ref[...] = jnp.maximum(colmax[:, :, 0, :, :], colmax[:, :, 1, :, :])


# --------------------------------- wrapper ----------------------------------- #

def encoder_block_forward(x_nchw, params):
    """Matches PyTorch encoder_block.forward: returns (x, p), both NCHW."""
    x = jnp.transpose(x_nchw, (0, 2, 3, 1)).astype(jnp.float32)   # NCHW -> NHWC
    N, H, W, Cin = x.shape
    Cout = params["w1"].shape[0]
    assert H % 2 == 0 and W % 2 == 0, "MaxPool2d(2) floor behaviour; use even H, W"
    M = N * H * W                 # BatchNorm reduction count
    G = N                         # one batch element per grid block
    Ho, Wo = H // 2, W // 2

    # (Cout, Cin, 3, 3) -> (3, 3, Cin, Cout); bf16 at the MXU boundary.
    w1 = jnp.transpose(params["w1"], (2, 3, 1, 0)).astype(_MXU_DTYPE)
    w2 = jnp.transpose(params["w2"], (2, 3, 1, 0)).astype(_MXU_DTYPE)
    g1 = params["g1"].reshape(1, Cout).astype(jnp.float32)
    be1 = params["be1"].reshape(1, Cout).astype(jnp.float32)
    g2 = params["g2"].reshape(1, Cout).astype(jnp.float32)
    be2 = params["be2"].reshape(1, Cout).astype(jnp.float32)
    # NOTE: conv biases b1/b2 are intentionally unused (exactly cancelled by BN).

    parallel = pltpu.CompilerParams(dimension_semantics=("parallel",))
    stats_sd = jax.ShapeDtypeStruct((G, 1, Cout), jnp.float32)
    blk_img = lambda C_: pl.BlockSpec((1, H, W, C_), lambda b: (b, 0, 0, 0))
    blk_w = lambda Ci: pl.BlockSpec((3, 3, Ci, Cout), lambda b: (0, 0, 0, 0))
    blk_stats_out = pl.BlockSpec((1, 1, Cout), lambda b: (b, 0, 0))
    blk_stats_in = pl.BlockSpec((G, 1, Cout), lambda b: (0, 0, 0))
    blk_vec = pl.BlockSpec((1, Cout), lambda b: (0, 0))

    # ---- kernel 1: conv1 + partial BN1 stats --------------------------------
    y1, s1, ss1 = pl.pallas_call(
        _conv_stats_kernel,
        grid=(G,),
        in_specs=[blk_img(Cin), blk_w(Cin)],
        out_specs=(blk_img(Cout), blk_stats_out, blk_stats_out),
        out_shape=(jax.ShapeDtypeStruct((N, H, W, Cout), jnp.float32),
                   stats_sd, stats_sd),
        scratch_shapes=[pltpu.VMEM((1, H + 2, W + 2, Cin), jnp.float32)],
        compiler_params=parallel,
    )(x, w1)

    # ---- kernel 2: BN1 + ReLU + conv2 + partial BN2 stats --------------------
    y2, s2, ss2 = pl.pallas_call(
        functools.partial(_bn_relu_conv_stats_kernel, m_total=M),
        grid=(G,),
        in_specs=[blk_img(Cout), blk_stats_in, blk_stats_in, blk_vec, blk_vec,
                  blk_w(Cout)],
        out_specs=(blk_img(Cout), blk_stats_out, blk_stats_out),
        out_shape=(jax.ShapeDtypeStruct((N, H, W, Cout), jnp.float32),
                   stats_sd, stats_sd),
        scratch_shapes=[pltpu.VMEM((1, H + 2, W + 2, Cout), jnp.float32)],
        compiler_params=parallel,
    )(y1, s1, ss1, g1, be1, w2)

    # ---- kernel 3: BN2 + ReLU + fused 2x2 max-pool ---------------------------
    a2, p = pl.pallas_call(
        functools.partial(_bn_relu_pool_kernel, m_total=M),
        grid=(G,),
        in_specs=[blk_img(Cout), blk_stats_in, blk_stats_in, blk_vec, blk_vec],
        out_specs=(blk_img(Cout),
                   pl.BlockSpec((1, Ho, Wo, Cout), lambda b: (b, 0, 0, 0))),
        out_shape=(jax.ShapeDtypeStruct((N, H, W, Cout), jnp.float32),
                   jax.ShapeDtypeStruct((N, Ho, Wo, Cout), jnp.float32)),
        compiler_params=parallel,
    )(y2, s2, ss2, g2, be2)

    return jnp.transpose(a2, (0, 3, 1, 2)), jnp.transpose(p, (0, 3, 1, 2))


# ----------------------------- pure-JAX reference ---------------------------- #

def _reference_forward(x_nchw, params):
    def conv(x, w, b):
        y = jax.lax.conv_general_dilated(
            x, w, window_strides=(1, 1), padding=((1, 1), (1, 1)),
            dimension_numbers=("NCHW", "OIHW", "NCHW"))
        return y + b[None, :, None, None]

    def bn_relu(y, g, be):
        mean = jnp.mean(y, axis=(0, 2, 3), keepdims=True)
        var = jnp.mean((y - mean) ** 2, axis=(0, 2, 3), keepdims=True)
        yn = (y - mean) / jnp.sqrt(var + _EPS)
        yn = yn * g[None, :, None, None] + be[None, :, None, None]
        return jnp.maximum(yn, 0.0)

    a1 = bn_relu(conv(x_nchw, params["w1"], params["b1"]), params["g1"], params["be1"])
    a2 = bn_relu(conv(a1, params["w2"], params["b2"]), params["g2"], params["be2"])
    p = jax.lax.reduce_window(a2, -jnp.inf, jax.lax.max,
                              (1, 1, 2, 2), (1, 1, 2, 2), "VALID")
    return a2, p


# ----------------------------------- main ------------------------------------ #

if __name__ == "__main__":
    key = jax.random.PRNGKey(0)
    ks = jax.random.split(key, 10)

    N, in_c, out_c, H, W = 2, 4, 8, 16, 16
    x = jax.random.normal(ks[0], (N, in_c, H, W), jnp.float32)

    params = {
        "w1": jax.random.normal(ks[1], (out_c, in_c, 3, 3), jnp.float32)
              * (1.0 / math.sqrt(in_c * 9)),
        "b1": 0.1 * jax.random.normal(ks[2], (out_c,), jnp.float32),
        "g1": 1.0 + 0.1 * jax.random.normal(ks[3], (out_c,), jnp.float32),
        "be1": 0.1 * jax.random.normal(ks[4], (out_c,), jnp.float32),
        "w2": jax.random.normal(ks[5], (out_c, out_c, 3, 3), jnp.float32)
              * (1.0 / math.sqrt(out_c * 9)),
        "b2": 0.1 * jax.random.normal(ks[6], (out_c,), jnp.float32),
        "g2": 1.0 + 0.1 * jax.random.normal(ks[7], (out_c,), jnp.float32),
        "be2": 0.1 * jax.random.normal(ks[8], (out_c,), jnp.float32),
    }

    x_out, p_out = jax.block_until_ready(encoder_block_forward(x, params))

    assert x_out.shape == (N, out_c, H, W)
    assert p_out.shape == (N, out_c, H // 2, W // 2)

    # tolerance accounts for bf16 MXU operands (f32 accumulation)
    x_ref, p_ref = _reference_forward(x, params)
    assert jnp.allclose(x_out, x_ref, atol=2e-2, rtol=2e-2)
    assert jnp.allclose(p_out, p_ref, atol=2e-2, rtol=2e-2)

    print("KERNEL_OK")
</pallas_src>

<mosaic_0001>
module attributes {stable_mosaic.version = 11 : i64} {
  func.func @_conv_stats_kernel(%arg0: i32, %arg1: memref<1x16x16x4xf32, #tpu.memory_space<vmem>>, %arg2: memref<3x3x4x8xbf16, #tpu.memory_space<vmem>>, %arg3: memref<1x16x16x8xf32, #tpu.memory_space<vmem>>, %arg4: memref<1x1x8xf32, #tpu.memory_space<vmem>>, %arg5: memref<1x1x8xf32, #tpu.memory_space<vmem>>, %arg6: memref<1x18x18x4xf32, #tpu.memory_space<vmem>>) attributes {dimension_semantics = [#tpu.dimension_semantics<parallel>], iteration_bounds = array<i64: 2>, scalar_prefetch = 0 : i64, scratch_operands = 1 : i64, tpu.core_type = #tpu.core_type<tc>, window_params = [{transform_indices = @transform_0, window_bounds = array<i64: 1, 16, 16, 4>}, {pipeline_mode = #tpu.pipeline_mode<synchronous>, transform_indices = @transform_1, window_bounds = array<i64: 3, 3, 4, 8>}, {transform_indices = @transform_2, window_bounds = array<i64: 1, 16, 16, 8>}, {transform_indices = @transform_3, window_bounds = array<i64: 1, 1, 8>}, {transform_indices = @transform_4, window_bounds = array<i64: 1, 1, 8>}]} {
    %cst = arith.constant 0.000000e+00 : f32
    %0 = vector.broadcast %cst : f32 to vector<1x18x18x4xf32>
    %c0 = arith.constant 0 : index
    %c0_0 = arith.constant 0 : index
    %c0_1 = arith.constant 0 : index
    %c0_2 = arith.constant 0 : index
    %1 = vector.load %arg6[%c0, %c0_0, %c0_1, %c0_2] : memref<1x18x18x4xf32, #tpu.memory_space<vmem>>, vector<1x18x18x4xf32>
    tpu.vector_store %arg6[%c0, %c0_0, %c0_1, %c0_2], %0 {strides = array<i32>} : memref<1x18x18x4xf32, #tpu.memory_space<vmem>>, vector<1x18x18x4xf32>,
    %c0_3 = arith.constant 0 : index
    %c0_4 = arith.constant 0 : index
    %c0_5 = arith.constant 0 : index
    %c0_6 = arith.constant 0 : index
    %2 = vector.load %arg1[%c0_3, %c0_4, %c0_5, %c0_6] : memref<1x16x16x4xf32, #tpu.memory_space<vmem>>, vector<1x16x16x4xf32>
    %c0_7 = arith.constant 0 : index
    %c1 = arith.constant 1 : index
    %c1_8 = arith.constant 1 : index
    %c0_9 = arith.constant 0 : index
    %3 = vector.load %arg6[%c0_7, %c1, %c1_8, %c0_9] : memref<1x18x18x4xf32, #tpu.memory_space<vmem>>, vector<1x16x16x4xf32>
    tpu.vector_store %arg6[%c0_7, %c1, %c1_8, %c0_9], %2 {strides = array<i32>} : memref<1x18x18x4xf32, #tpu.memory_space<vmem>>, vector<1x16x16x4xf32>,
    %cst_10 = arith.constant 0.000000e+00 : f32
    %4 = vector.broadcast %cst_10 : f32 to vector<256x8xf32>
    %c0_11 = arith.constant 0 : index
    %c0_12 = arith.constant 0 : index
    %c0_13 = arith.constant 0 : index
    %c0_14 = arith.constant 0 : index
    %5 = vector.load %arg6[%c0_11, %c0_12, %c0_13, %c0_14] : memref<1x18x18x4xf32, #tpu.memory_space<vmem>>, vector<1x16x16x4xf32>
    %6 = vector.shape_cast %5 : vector<1x16x16x4xf32> to vector<256x4xf32>
    %7 = arith.truncf %6 : vector<256x4xf32> to vector<256x4xbf16>
    %c0_15 = arith.constant 0 : index
    %c0_16 = arith.constant 0 : index
    %c0_17 = arith.constant 0 : index
    %c0_18 = arith.constant 0 : index
    %8 = vector.load %arg2[%c0_15, %c0_16, %c0_17, %c0_18] : memref<3x3x4x8xbf16, #tpu.memory_space<vmem>>, vector<1x1x4x8xbf16>
    %9 = vector.shape_cast %8 : vector<1x1x4x8xbf16> to vector<4x8xbf16>
    %cst_19 = arith.constant dense<0.000000e+00> : vector<256x8xf32>
    %10 = tpu.matmul %7, %9, %cst_19 {dimension_numbers = #tpu.dot_dimension_numbers<[1], [0], [0], [1], [0, 0, 1, 1], [], []>} : vector<256x4xbf16>, vector<4x8xbf16>, vector<256x8xf32> -> vector<256x8xf32>
    %11 = arith.addf %4, %10 : vector<256x8xf32>
    %c0_20 = arith.constant 0 : index
    %c0_21 = arith.constant 0 : index
    %c1_22 = arith.constant 1 : index
    %c0_23 = arith.constant 0 : index
    %12 = vector.load %arg6[%c0_20, %c0_21, %c1_22, %c0_23] : memref<1x18x18x4xf32, #tpu.memory_space<vmem>>, vector<1x16x16x4xf32>
    %13 = vector.shape_cast %12 : vector<1x16x16x4xf32> to vector<256x4xf32>
    %14 = arith.truncf %13 : vector<256x4xf32> to vector<256x4xbf16>
    %c0_24 = arith.constant 0 : index
    %c1_25 = arith.constant 1 : index
    %c0_26 = arith.constant 0 : index
    %c0_27 = arith.constant 0 : index
    %15 = vector.load %arg2[%c0_24, %c1_25, %c0_26, %c0_27] : memref<3x3x4x8xbf16, #tpu.memory_space<vmem>>, vector<1x1x4x8xbf16>
    %16 = vector.shape_cast %15 : vector<1x1x4x8xbf16> to vector<4x8xbf16>
    %cst_28 = arith.constant dense<0.000000e+00> : vector<256x8xf32>
    %17 = tpu.matmul %14, %16, %cst_28 {dimension_numbers = #tpu.dot_dimension_numbers<[1], [0], [0], [1], [0, 0, 1, 1], [], []>} : vector<256x4xbf16>, vector<4x8xbf16>, vector<256x8xf32> -> vector<256x8xf32>
    %18 = arith.addf %11, %17 : vector<256x8xf32>
    %c0_29 = arith.constant 0 : index
    %c0_30 = arith.constant 0 : index
    %c2 = arith.constant 2 : index
    %c0_31 = arith.constant 0 : index
    %19 = vector.load %arg6[%c0_29, %c0_30, %c2, %c0_31] : memref<1x18x18x4xf32, #tpu.memory_space<vmem>>, vector<1x16x16x4xf32>
    %20 = vector.shape_cast %19 : vector<1x16x16x4xf32> to vector<256x4xf32>
    %21 = arith.truncf %20 : vector<256x4xf32> to vector<256x4xbf16>
    %c0_32 = arith.constant 0 : index
    %c2_33 = arith.constant 2 : index
    %c0_34 = arith.constant 0 : index
    %c0_35 = arith.constant 0 : index
    %22 = vector.load %arg2[%c0_32, %c2_33, %c0_34, %c0_35] : memref<3x3x4x8xbf16, #tpu.memory_space<vmem>>, vector<1x1x4x8xbf16>
    %23 = vector.shape_cast %22 : vector<1x1x4x8xbf16> to vector<4x8xbf16>
    %cst_36 = arith.constant dense<0.000000e+00> : vector<256x8xf32>
    %24 = tpu.matmul %21, %23, %cst_36 {dimension_numbers = #tpu.dot_dimension_numbers<[1], [0], [0], [1], [0, 0, 1, 1], [], []>} : vector<256x4xbf16>, vector<4x8xbf16>, vector<256x8xf32> -> vector<256x8xf32>
    %25 = arith.addf %18, %24 : vector<256x8xf32>
    %c0_37 = arith.constant 0 : index
    %c1_38 = arith.constant 1 : index
    %c0_39 = arith.constant 0 : index
    %c0_40 = arith.constant 0 : index
    %26 = vector.load %arg6[%c0_37, %c1_38, %c0_39, %c0_40] : memref<1x18x18x4xf32, #tpu.memory_space<vmem>>, vector<1x16x16x4xf32>
    %27 = vector.shape_cast %26 : vector<1x16x16x4xf32> to vector<256x4xf32>
    %28 = arith.truncf %27 : vector<256x4xf32> to vector<256x4xbf16>
    %c1_41 = arith.constant 1 : index
    %c0_42 = arith.constant 0 : index
    %c0_43 = arith.constant 0 : index
    %c0_44 = arith.constant 0 : index
    %29 = vector.load %arg2[%c1_41, %c0_42, %c0_43, %c0_44] : memref<3x3x4x8xbf16, #tpu.memory_space<vmem>>, vector<1x1x4x8xbf16>
    %30 = vector.shape_cast %29 : vector<1x1x4x8xbf16> to vector<4x8xbf16>
    %cst_45 = arith.constant dense<0.000000e+00> : vector<256x8xf32>
    %31 = tpu.matmul %28, %30, %cst_45 {dimension_numbers = #tpu.dot_dimension_numbers<[1], [0], [0], [1], [0, 0, 1, 1], [], []>} : vector<256x4xbf16>, vector<4x8xbf16>, vector<256x8xf32> -> vector<256x8xf32>
    %32 = arith.addf %25, %31 : vector<256x8xf32>
    %c0_46 = arith.constant 0 : index
    %c1_47 = arith.constant 1 : index
    %c1_48 = arith.constant 1 : index
    %c0_49 = arith.constant 0 : index
    %33 = vector.load %arg6[%c0_46, %c1_47, %c1_48, %c0_49] : memref<1x18x18x4xf32, #tpu.memory_space<vmem>>, vector<1x16x16x4xf32>
    %34 = vector.shape_cast %33 : vector<1x16x16x4xf32> to vector<256x4xf32>
    %35 = arith.truncf %34 : vector<256x4xf32> to vector<256x4xbf16>
    %c1_50 = arith.constant 1 : index
    %c1_51 = arith.constant 1 : index
    %c0_52 = arith.constant 0 : index
    %c0_53 = arith.constant 0 : index
    %36 = vector.load %arg2[%c1_50, %c1_51, %c0_52, %c0_53] : memref<3x3x4x8xbf16, #tpu.memory_space<vmem>>, vector<1x1x4x8xbf16>
    %37 = vector.shape_cast %36 : vector<1x1x4x8xbf16> to vector<4x8xbf16>
    %cst_54 = arith.constant dense<0.000000e+00> : vector<256x8xf32>
    %38 = tpu.matmul %35, %37, %cst_54 {dimension_numbers = #tpu.dot_dimension_numbers<[1], [0], [0], [1], [0, 0, 1, 1], [], []>} : vector<256x4xbf16>, vector<4x8xbf16>, vector<256x8xf32> -> vector<256x8xf32>
    %39 = arith.addf %32, %38 : vector<256x8xf32>
    %c0_55 = arith.constant 0 : index
    %c1_56 = arith.constant 1 : index
    %c2_57 = arith.constant 2 : index
    %c0_58 = arith.constant 0 : index
    %40 = vector.load %arg6[%c0_55, %c1_56, %c2_57, %c0_58] : memref<1x18x18x4xf32, #tpu.memory_space<vmem>>, vector<1x16x16x4xf32>
    %41 = vector.shape_cast %40 : vector<1x16x16x4xf32> to vector<256x4xf32>
    %42 = arith.truncf %41 : vector<256x4xf32> to vector<256x4xbf16>
    %c1_59 = arith.constant 1 : index
    %c2_60 = arith.constant 2 : index
    %c0_61 = arith.constant 0 : index
    %c0_62 = arith.constant 0 : index
    %43 = vector.load %arg2[%c1_59, %c2_60, %c0_61, %c0_62] : memref<3x3x4x8xbf16, #tpu.memory_space<vmem>>, vector<1x1x4x8xbf16>
    %44 = vector.shape_cast %43 : vector<1x1x4x8xbf16> to vector<4x8xbf16>
    %cst_63 = arith.constant dense<0.000000e+00> : vector<256x8xf32>
    %45 = tpu.matmul %42, %44, %cst_63 {dimension_numbers = #tpu.dot_dimension_numbers<[1], [0], [0], [1], [0, 0, 1, 1], [], []>} : vector<256x4xbf16>, vector<4x8xbf16>, vector<256x8xf32> -> vector<256x8xf32>
    %46 = arith.addf %39, %45 : vector<256x8xf32>
    %c0_64 = arith.constant 0 : index
    %c2_65 = arith.constant 2 : index
    %c0_66 = arith.constant 0 : index
    %c0_67 = arith.constant 0 : index
    %47 = vector.load %arg6[%c0_64, %c2_65, %c0_66, %c0_67] : memref<1x18x18x4xf32, #tpu.memory_space<vmem>>, vector<1x16x16x4xf32>
    %48 = vector.shape_cast %47 : vector<1x16x16x4xf32> to vector<256x4xf32>
    %49 = arith.truncf %48 : vector<256x4xf32> to vector<256x4xbf16>
    %c2_68 = arith.constant 2 : index
    %c0_69 = arith.constant 0 : index
    %c0_70 = arith.constant 0 : index
    %c0_71 = arith.constant 0 : index
    %50 = vector.load %arg2[%c2_68, %c0_69, %c0_70, %c0_71] : memref<3x3x4x8xbf16, #tpu.memory_space<vmem>>, vector<1x1x4x8xbf16>
    %51 = vector.shape_cast %50 : vector<1x1x4x8xbf16> to vector<4x8xbf16>
    %cst_72 = arith.constant dense<0.000000e+00> : vector<256x8xf32>
    %52 = tpu.matmul %49, %51, %cst_72 {dimension_numbers = #tpu.dot_dimension_numbers<[1], [0], [0], [1], [0, 0, 1, 1], [], []>} : vector<256x4xbf16>, vector<4x8xbf16>, vector<256x8xf32> -> vector<256x8xf32>
    %53 = arith.addf %46, %52 : vector<256x8xf32>
    %c0_73 = arith.constant 0 : index
    %c2_74 = arith.constant 2 : index
    %c1_75 = arith.constant 1 : index
    %c0_76 = arith.constant 0 : index
    %54 = vector.load %arg6[%c0_73, %c2_74, %c1_75, %c0_76] : memref<1x18x18x4xf32, #tpu.memory_space<vmem>>, vector<1x16x16x4xf32>
    %55 = vector.shape_cast %54 : vector<1x16x16x4xf32> to vector<256x4xf32>
    %56 = arith.truncf %55 : vector<256x4xf32> to vector<256x4xbf16>
    %c2_77 = arith.constant 2 : index
    %c1_78 = arith.constant 1 : index
    %c0_79 = arith.constant 0 : index
    %c0_80 = arith.constant 0 : index
    %57 = vector.load %arg2[%c2_77, %c1_78, %c0_79, %c0_80] : memref<3x3x4x8xbf16, #tpu.memory_space<vmem>>, vector<1x1x4x8xbf16>
    %58 = vector.shape_cast %57 : vector<1x1x4x8xbf16> to vector<4x8xbf16>
    %cst_81 = arith.constant dense<0.000000e+00> : vector<256x8xf32>
    %59 = tpu.matmul %56, %58, %cst_81 {dimension_numbers = #tpu.dot_dimension_numbers<[1], [0], [0], [1], [0, 0, 1, 1], [], []>} : vector<256x4xbf16>, vector<4x8xbf16>, vector<256x8xf32> -> vector<256x8xf32>
    %60 = arith.addf %53, %59 : vector<256x8xf32>
    %c0_82 = arith.constant 0 : index
    %c2_83 = arith.constant 2 : index
    %c2_84 = arith.constant 2 : index
    %c0_85 = arith.constant 0 : index
    %61 = vector.load %arg6[%c0_82, %c2_83, %c2_84, %c0_85] : memref<1x18x18x4xf32, #tpu.memory_space<vmem>>, vector<1x16x16x4xf32>
    %62 = vector.shape_cast %61 : vector<1x16x16x4xf32> to vector<256x4xf32>
    %63 = arith.truncf %62 : vector<256x4xf32> to vector<256x4xbf16>
    %c2_86 = arith.constant 2 : index
    %c2_87 = arith.constant 2 : index
    %c0_88 = arith.constant 0 : index
    %c0_89 = arith.constant 0 : index
    %64 = vector.load %arg2[%c2_86, %c2_87, %c0_88, %c0_89] : memref<3x3x4x8xbf16, #tpu.memory_space<vmem>>, vector<1x1x4x8xbf16>
    %65 = vector.shape_cast %64 : vector<1x1x4x8xbf16> to vector<4x8xbf16>
    %cst_90 = arith.constant dense<0.000000e+00> : vector<256x8xf32>
    %66 = tpu.matmul %63, %65, %cst_90 {dimension_numbers = #tpu.dot_dimension_numbers<[1], [0], [0], [1], [0, 0, 1, 1], [], []>} : vector<256x4xbf16>, vector<4x8xbf16>, vector<256x8xf32> -> vector<256x8xf32>
    %67 = arith.addf %60, %66 : vector<256x8xf32>
    %68 = vector.shape_cast %67 : vector<256x8xf32> to vector<1x16x16x8xf32>
    %c0_91 = arith.constant 0 : index
    %c0_92 = arith.constant 0 : index
    %c0_93 = arith.constant 0 : index
    %c0_94 = arith.constant 0 : index
    %69 = vector.load %arg3[%c0_91, %c0_92, %c0_93, %c0_94] : memref<1x16x16x8xf32, #tpu.memory_space<vmem>>, vector<1x16x16x8xf32>
    tpu.vector_store %arg3[%c0_91, %c0_92, %c0_93, %c0_94], %68 {strides = array<i32>} : memref<1x16x16x8xf32, #tpu.memory_space<vmem>>, vector<1x16x16x8xf32>,
    %cst_95 = arith.constant dense<0.000000e+00> : vector<8xf32>
    %70 = vector.multi_reduction <add>, %67, %cst_95 [0] : vector<256x8xf32> to vector<8xf32>
    %71 = vector.shape_cast %70 : vector<8xf32> to vector<1x8xf32>
    %72 = vector.shape_cast %71 : vector<1x8xf32> to vector<1x1x8xf32>
    %c0_96 = arith.constant 0 : index
    %c0_97 = arith.constant 0 : index
    %c0_98 = arith.constant 0 : index
    %73 = vector.load %arg4[%c0_96, %c0_97, %c0_98] : memref<1x1x8xf32, #tpu.memory_space<vmem>>, vector<1x1x8xf32>
    tpu.vector_store %arg4[%c0_96, %c0_97, %c0_98], %72 {strides = array<i32>} : memref<1x1x8xf32, #tpu.memory_space<vmem>>, vector<1x1x8xf32>,
    %74 = arith.mulf %67, %67 : vector<256x8xf32>
    %cst_99 = arith.constant dense<0.000000e+00> : vector<8xf32>
    %75 = vector.multi_reduction <add>, %74, %cst_99 [0] : vector<256x8xf32> to vector<8xf32>
    %76 = vector.shape_cast %75 : vector<8xf32> to vector<1x8xf32>
    %77 = vector.shape_cast %76 : vector<1x8xf32> to vector<1x1x8xf32>
    %c0_100 = arith.constant 0 : index
    %c0_101 = arith.constant 0 : index
    %c0_102 = arith.constant 0 : index
    %78 = vector.load %arg5[%c0_100, %c0_101, %c0_102] : memref<1x1x8xf32, #tpu.memory_space<vmem>>, vector<1x1x8xf32>
    tpu.vector_store %arg5[%c0_100, %c0_101, %c0_102], %77 {strides = array<i32>} : memref<1x1x8xf32, #tpu.memory_space<vmem>>, vector<1x1x8xf32>,
    return
  }
  func.func @transform_0(%arg0: i32) -> (i32, i32, i32, i32) {
    %c0_i32 = arith.constant 0 : i32
    %c0_i32_0 = arith.constant 0 : i32
    %c0_i32_1 = arith.constant 0 : i32
    %c0_i32_2 = arith.constant 0 : i32
    return %arg0, %c0_i32, %c0_i32_0, %c0_i32_1 : i32, i32, i32, i32
  }
  func.func @transform_1(%arg0: i32) -> (i32, i32, i32, i32) {
    %c0_i32 = arith.constant 0 : i32
    %c0_i32_0 = arith.constant 0 : i32
    %c0_i32_1 = arith.constant 0 : i32
    %c0_i32_2 = arith.constant 0 : i32
    %c0_i32_3 = arith.constant 0 : i32
    return %c0_i32, %c0_i32_0, %c0_i32_1, %c0_i32_2 : i32, i32, i32, i32
  }
  func.func @transform_2(%arg0: i32) -> (i32, i32, i32, i32) {
    %c0_i32 = arith.constant 0 : i32
    %c0_i32_0 = arith.constant 0 : i32
    %c0_i32_1 = arith.constant 0 : i32
    %c0_i32_2 = arith.constant 0 : i32
    return %arg0, %c0_i32, %c0_i32_0, %c0_i32_1 : i32, i32, i32, i32
  }
  func.func @transform_3(%arg0: i32) -> (i32, i32, i32) {
    %c0_i32 = arith.constant 0 : i32
    %c0_i32_0 = arith.constant 0 : i32
    %c0_i32_1 = arith.constant 0 : i32
    return %arg0, %c0_i32, %c0_i32_0 : i32, i32, i32
  }
  func.func @transform_4(%arg0: i32) -> (i32, i32, i32) {
    %c0_i32 = arith.constant 0 : i32
    %c0_i32_0 = arith.constant 0 : i32
    %c0_i32_1 = arith.constant 0 : i32
    return %arg0, %c0_i32, %c0_i32_0 : i32, i32, i32
  }
}

</mosaic_0001>

<llo_original>
// kernel: tpu_custom_call.1
$region0: #{tpu_custom_call.1}
  #allocation0 [shape = 'u32[]', space=smem, size = 0x4, offset = 0x4, fixed_abs, tag = 'smem constant byte address 0x4 - core index']
  #allocation1 [shape = 'u32[144,128]{1,0:T(1,128)}', space=vmem, size = 0x12000, scoped, tag = 'internal scratch']
  #allocation2 [shape = 'f32[1,18,18,4]{3,2,1,0:T(8,128)}', space=vmem, size = 0x36000, scoped, tag = 'scratch operand']
  %s0 = inlined_call_operand.vmem [shape: f32[2,16,16,4], index: 0, kind: input, shape index: {}]
  %s1 = inlined_call_operand.vmem [shape: bf16[3,3,4,8], index: 1, kind: input, shape index: {}]
  %s2 = inlined_call_operand.vmem [shape: f32[2,16,16,8], index: 2, kind: output, shape index: {0}]
  %s3 = inlined_call_operand.hbm [shape: f32[2,1,8], index: 3, kind: output, shape index: {1}]
  %s4 = inlined_call_operand.hbm [shape: f32[2,1,8], index: 4, kind: output, shape index: {2}]
  %5 = xla_tuple %s2, %s3, %s4
  %s6 = sld [smem:[#allocation0]]
  $region57: #{tpu_custom_call.1} parent=0
    _
  %s8 = ssub.s32 1, %s6
  %s9 = scalar_select 0, %s8, %s6
  $region1: #{tpu_custom_call.1} parent=0
    #allocation3 [shape = 'u8[1024]{0}', space=vmem, size = 0x400, scoped, tag = 'output window, operand 1']
    #allocation4 [shape = 's32[2]{0}', space=sflag, size = 0x8, scoped, tag = 'scoped memory for tpu_custom_call.1']
    #allocation5 [shape = 'u8[1024]{0}', space=vmem, size = 0x400, scoped, tag = 'output window, operand 2']
    #allocation6 [shape = 's32[2]{0}', space=sflag, size = 0x8, scoped, tag = 'scoped memory for tpu_custom_call.1']
    %10 = vsyncpa [#allocation4], 0
    %s11 = scalar_lea.sflag [#allocation4], 1
    %12 = vsyncpa %s11, 0
    %13 = vsyncpa [#allocation6], 0
    %s14 = scalar_lea.sflag [#allocation6], 1
    %15 = vsyncpa %s14, 0
    loop: start=0, step=1, limit=4
    $region2: #{tpu_custom_call.1} parent=1 // loop_pre_header
      _
    $region3: #{tpu_custom_call.1} parent=1 // loop_header
      %s17 = sphi 0, %s21
      %p18 = scmp.ge.s32.totalorder %s17, 4
      %s27 = sphi 0, %s29
      %s30 = sphi 0, %s27
      %s31 = sphi 0, %s30
      %s47 = sphi 0, %s31
      %s51 = sphi 0, %s51
      %s53 = sphi 0, %s51
      %s54 = sphi 0, %s53
      %s68 = sphi 0, %s54
      %s74 = sphi 0, %s76
      %s77 = sphi 0, %s74
      %s78 = sphi 0, %s77
      %s94 = sphi 0, %s78
      %s100 = sphi 0, %s102
      %s103 = sphi 0, %s100
      %s104 = sphi 0, %s103
      %s120 = sphi 0, %s104
      %s126 = sphi 0, %s128
      %s129 = sphi 0, %s126
      %s130 = sphi 0, %s129
      %s146 = sphi 0, %s130
    $region4: #{tpu_custom_call.1} parent=1 // loop_header_branch
      %20 = sbr.rel (%p18) target = $region8
    $region5: #{tpu_custom_call.1} parent=1 // loop_body
      %s22 = ssub.s32 %s17, 1
      %s23 = ssub.s32 %s17, 2
      %s24 = sadd.s32 %s17, 1
      %s25 = ssub.s32 %s17, %s24
      %p26 = scmp.eq.s32.totalorder %s25, 0
      %s28 = sadd.s32 %s27, 1
      %s29 = scalar_select %p26, %s27, %s28
      %p32 = pneg %p26
      %p33 = scmp.eq.s32.totalorder %s17, 1
      %p34 = por %p32, %p33
      %p35 = scmp.ne.s32.totalorder %s27, %s30
      %p36 = scmp.eq.s32.totalorder %s17, 0
      %p37 = por %p35, %p36
      %p38 = scmp.ne.s32.totalorder %s27, %s30
      %p39 = scmp.eq.s32.totalorder %s22, 1
      %p40 = por %p38, %p39
      %p41 = scmp.ne.s32.totalorder %s30, %s31
      %p42 = scmp.eq.s32.totalorder %s22, 0
      %p43 = por %p41, %p42
      %p44 = scmp.ne.s32.totalorder %s30, %s31
      %p45 = scmp.eq.s32.totalorder %s23, 1
      %p46 = por %p44, %p45
      %p48 = scmp.ne.s32.totalorder %s31, %s47
      %p49 = scmp.eq.s32.totalorder %s23, 0
      %p50 = por %p48, %p49
      %s52 = sadd.s32 %s51, 1
      %p55 = scmp.eq.s32.totalorder %s17, 1
      %p56 = scmp.ne.s32.totalorder %s51, %s53
      %p57 = scmp.eq.s32.totalorder %s17, 0
      %p58 = por %p56, %p57
      %p59 = scmp.ne.s32.totalorder %s51, %s53
      %p60 = scmp.eq.s32.totalorder %s22, 1
      %p61 = por %p59, %p60
      %p62 = scmp.ne.s32.totalorder %s53, %s54
      %p63 = scmp.eq.s32.totalorder %s22, 0
      %p64 = por %p62, %p63
      %p65 = scmp.ne.s32.totalorder %s53, %s54
      %p66 = scmp.eq.s32.totalorder %s23, 1
      %p67 = por %p65, %p66
      %p69 = scmp.ne.s32.totalorder %s54, %s68
      %p70 = scmp.eq.s32.totalorder %s23, 0
      %p71 = por %p69, %p70
      %s72 = ssub.s32 %s17, %s24
      %p73 = scmp.eq.s32.totalorder %s72, 0
      %s75 = sadd.s32 %s74, 1
      %s76 = scalar_select %p73, %s74, %s75
      %p79 = pneg %p73
      %p80 = scmp.eq.s32.totalorder %s17, 1
      %p81 = por %p79, %p80
      %p82 = scmp.ne.s32.totalorder %s74, %s77
      %p83 = scmp.eq.s32.totalorder %s17, 0
      %p84 = por %p82, %p83
      %p85 = scmp.ne.s32.totalorder %s74, %s77
      %p86 = scmp.eq.s32.totalorder %s22, 1
      %p87 = por %p85, %p86
      %p88 = scmp.ne.s32.totalorder %s77, %s78
      %p89 = scmp.eq.s32.totalorder %s22, 0
      %p90 = por %p88, %p89
      %p91 = scmp.ne.s32.totalorder %s77, %s78
      %p92 = scmp.eq.s32.totalorder %s23, 1
      %p93 = por %p91, %p92
      %p95 = scmp.ne.s32.totalorder %s78, %s94
      %p96 = scmp.eq.s32.totalorder %s23, 0
      %p97 = por %p95, %p96
      %s98 = ssub.s32 %s17, %s24
      %p99 = scmp.eq.s32.totalorder %s98, 0
      %s101 = sadd.s32 %s100, 1
      %s102 = scalar_select %p99, %s100, %s101
      %p105 = pneg %p99
      %p106 = scmp.eq.s32.totalorder %s17, 1
      %p107 = por %p105, %p106
      %p108 = scmp.ne.s32.totalorder %s100, %s103
      %p109 = scmp.eq.s32.totalorder %s17, 0
      %p110 = por %p108, %p109
      %p111 = scmp.ne.s32.totalorder %s100, %s103
      %p112 = scmp.eq.s32.totalorder %s22, 1
      %p113 = por %p111, %p112
      %p114 = scmp.ne.s32.totalorder %s103, %s104
      %p115 = scmp.eq.s32.totalorder %s22, 0
      %p116 = por %p114, %p115
      %p117 = scmp.ne.s32.totalorder %s103, %s104
      %p118 = scmp.eq.s32.totalorder %s23, 1
      %p119 = por %p117, %p118
      %p121 = scmp.ne.s32.totalorder %s104, %s120
      %p122 = scmp.eq.s32.totalorder %s23, 0
      %p123 = por %p121, %p122
      %s124 = ssub.s32 %s17, %s24
      %p125 = scmp.eq.s32.totalorder %s124, 0
      %s127 = sadd.s32 %s126, 1
      %s128 = scalar_select %p125, %s126, %s127
      %p131 = pneg %p125
      %p132 = scmp.eq.s32.totalorder %s17, 1
      %p133 = por %p131, %p132
      %p134 = scmp.ne.s32.totalorder %s126, %s129
      %p135 = scmp.eq.s32.totalorder %s17, 0
      %p136 = por %p134, %p135
      %p137 = scmp.ne.s32.totalorder %s126, %s129
      %p138 = scmp.eq.s32.totalorder %s22, 1
      %p139 = por %p137, %p138
      %p140 = scmp.ne.s32.totalorder %s129, %s130
      %p141 = scmp.eq.s32.totalorder %s22, 0
      %p142 = por %p140, %p141
      %p143 = scmp.ne.s32.totalorder %s129, %s130
      %p144 = scmp.eq.s32.totalorder %s23, 1
      %p145 = por %p143, %p144
      %p147 = scmp.ne.s32.totalorder %s130, %s146
      %p148 = scmp.eq.s32.totalorder %s23, 0
      %p149 = por %p147, %p148
      %p150 = scmp.le.s32.totalorder 1, %s17
      %p151 = scmp.lt.s32.totalorder %s17, 3
      %p152 = pnand %p150, %p151
      %p153 = pneg %p152
      // Predicated region
      $region9: #{tpu_custom_call.1} parent=5 // pred_check
        _
      $region10: #{tpu_custom_call.1} parent=5 // pred_check_branch
        %155 = sbr.rel (%p152) target = $region12
      $region11: #{tpu_custom_call.1} parent=5 // pred_region
        %s156 = ssub.s32 %s17, 1
        // Predicated region
        $region13: #{tpu_custom_call.1} parent=11 // pred_check
          %p157 = pneg %p64
        $region14: #{tpu_custom_call.1} parent=11 // pred_check_branch
          %159 = sbr.rel (%p157) target = $region16
        $region15: #{tpu_custom_call.1} parent=11 // pred_region
          _
        $region16: #{tpu_custom_call.1} parent=11 // pred_fallthru
          _
      $region12: #{tpu_custom_call.1} parent=5 // pred_fallthru
        _
      %p160 = scmp.lt.s32.totalorder %s17, 2
      // Predicated region
      $region17: #{tpu_custom_call.1} parent=5 // pred_check
        %p161 = pneg %p160
      $region18: #{tpu_custom_call.1} parent=5 // pred_check_branch
        %163 = sbr.rel (%p161) target = $region20
      $region19: #{tpu_custom_call.1} parent=5 // pred_region
        // Predicated region
        $region21: #{tpu_custom_call.1} parent=19 // pred_check
          %p164 = pneg %p37
        $region22: #{tpu_custom_call.1} parent=19 // pred_check_branch
          %166 = sbr.rel (%p164) target = $region24
        $region23: #{tpu_custom_call.1} parent=19 // pred_region
          %p167 = scmp.lt.s32.totalorder %s17, 1
          %s168 = scalar_select %p167, %s17, 1
          %s169 = smul.addr %s168, 32
          %s170 = smul.addr %s169, 8
          %s171 = scalar_lea.vmem %s0, %s170
        $region24: #{tpu_custom_call.1} parent=19 // pred_fallthru
          _
      $region20: #{tpu_custom_call.1} parent=5 // pred_fallthru
        _
      %p172 = scmp.le.s32.totalorder 1, %s17
      %p173 = scmp.lt.s32.totalorder %s17, 3
      %p174 = pnand %p172, %p173
      %p175 = pneg %p174
      // Predicated region
      $region25: #{tpu_custom_call.1} parent=5 // pred_check
        _
      $region26: #{tpu_custom_call.1} parent=5 // pred_check_branch
        %177 = sbr.rel (%p174) target = $region28
      $region27: #{tpu_custom_call.1} parent=5 // pred_region
        %s178 = ssub.s32 %s17, 1
        %p179 = scmp.lt.s32.totalorder %s22, 1
        %s180 = scalar_select %p179, %s22, 1
        %s181 = smul.addr %s180, 32
        %s182 = smul.addr %s181, 8
        %s183 = scalar_lea.vmem %s0, %s182
        %p184 = pneg %p43
        %p185 = pneg %p40
        %p186 = pneg %p64
        %p187 = pneg %p61
        %p188 = pneg %p90
        %p189 = pneg %p87
        %p190 = scmp.lt.s32.totalorder %s22, 1
        %s191 = scalar_select %p190, %s22, 1
        %s192 = smul.addr %s191, 32
        %s193 = smul.addr %s192, 8
        %s194 = scalar_lea.vmem %s2, %s193
        %p195 = pneg %p116
        %p196 = pneg %p113
        %s197 = sand.u32 %s103, 1
        %s198 = scalar_lea.sflag [#allocation4], %s197
        %s199 = sand.u32 %s103, 1
        %s200 = scalar_lea.vmem [#allocation3], %s199
        %p201 = pneg %p142
        %p202 = pneg %p139
        %s203 = sand.u32 %s129, 1
        %s204 = scalar_lea.sflag [#allocation6], %s203
        %s205 = sand.u32 %s129, 1
        %s206 = scalar_lea.vmem [#allocation5], %s205
        %p207 = scmp.lt.s32.totalorder %s22, 1
        %s208 = scalar_select %p207, %s22, 1
        %s209 = smul.addr %s208, 32
        %s210 = smul.addr %s209, 8
        %s211 = scalar_lea.vmem %s0, %s210
        %p212 = scmp.lt.s32.totalorder %s22, 1
        %s213 = scalar_select %p212, %s22, 1
        %s214 = smul.addr %s213, 32
        %s215 = smul.addr %s214, 8
        %s216 = scalar_lea.vmem %s2, %s215
        %vm218 = vcmask 31744
        %219 = vst.msk [vmem:[#allocation2] sm:$0xff] %vm218, 0.0
        %220 = vst.msk [vmem:[#allocation2 + $0x8] sm:$0xff] %vm218, 0.0
        %vm221 = vcmask 25600
        %222 = vst.msk [vmem:[#allocation2 + $0x10] sm:$0x3] %vm221, 0.0
        %223 = vst.msk [vmem:[#allocation2 + $0x18] sm:$0xff] %vm218, 0.0
        %224 = vst.msk [vmem:[#allocation2 + $0x20] sm:$0xff] %vm218, 0.0
        %225 = vst.msk [vmem:[#allocation2 + $0x28] sm:$0x3] %vm221, 0.0
        %226 = vst.msk [vmem:[#allocation2 + $0x30] sm:$0xff] %vm218, 0.0
        %227 = vst.msk [vmem:[#allocation2 + $0x38] sm:$0xff] %vm218, 0.0
        %228 = vst.msk [vmem:[#allocation2 + $0x40] sm:$0x3] %vm221, 0.0
        %229 = vst.msk [vmem:[#allocation2 + $0x48] sm:$0xff] %vm218, 0.0
        %230 = vst.msk [vmem:[#allocation2 + $0x50] sm:$0xff] %vm218, 0.0
        %231 = vst.msk [vmem:[#allocation2 + $0x58] sm:$0x3] %vm221, 0.0
        %232 = vst.msk [vmem:[#allocation2 + $0x60] sm:$0xff] %vm218, 0.0
        %233 = vst.msk [vmem:[#allocation2 + $0x68] sm:$0xff] %vm218, 0.0
        %234 = vst.msk [vmem:[#allocation2 + $0x70] sm:$0x3] %vm221, 0.0
        %235 = vst.msk [vmem:[#allocation2 + $0x78] sm:$0xff] %vm218, 0.0
        %236 = vst.msk [vmem:[#allocation2 + $0x80] sm:$0xff] %vm218, 0.0
        %237 = vst.msk [vmem:[#allocation2 + $0x88] sm:$0x3] %vm221, 0.0
        %238 = vst.msk [vmem:[#allocation2 + $0x90] sm:$0xff] %vm218, 0.0
        %239 = vst.msk [vmem:[#allocation2 + $0x98] sm:$0xff] %vm218, 0.0
        %240 = vst.msk [vmem:[#allocation2 + $0xa0] sm:$0x3] %vm221, 0.0
        %241 = vst.msk [vmem:[#allocation2 + $0xa8] sm:$0xff] %vm218, 0.0
        %242 = vst.msk [vmem:[#allocation2 + $0xb0] sm:$0xff] %vm218, 0.0
        %243 = vst.msk [vmem:[#allocation2 + $0xb8] sm:$0x3] %vm221, 0.0
        %244 = vst.msk [vmem:[#allocation2 + $0xc0] sm:$0xff] %vm218, 0.0
        %245 = vst.msk [vmem:[#allocation2 + $0xc8] sm:$0xff] %vm218, 0.0
        %246 = vst.msk [vmem:[#allocation2 + $0xd0] sm:$0x3] %vm221, 0.0
        %247 = vst.msk [vmem:[#allocation2 + $0xd8] sm:$0xff] %vm218, 0.0
        %248 = vst.msk [vmem:[#allocation2 + $0xe0] sm:$0xff] %vm218, 0.0
        %249 = vst.msk [vmem:[#allocation2 + $0xe8] sm:$0x3] %vm221, 0.0
        %250 = vst.msk [vmem:[#allocation2 + $0xf0] sm:$0xff] %vm218, 0.0
        %251 = vst.msk [vmem:[#allocation2 + $0xf8] sm:$0xff] %vm218, 0.0
        %252 = vst.msk [vmem:[#allocation2 + $0x100] sm:$0x3] %vm221, 0.0
        %253 = vst.msk [vmem:[#allocation2 + $0x108] sm:$0xff] %vm218, 0.0
        %254 = vst.msk [vmem:[#allocation2 + $0x110] sm:$0xff] %vm218, 0.0
        %255 = vst.msk [vmem:[#allocation2 + $0x118] sm:$0x3] %vm221, 0.0
        %256 = vst.msk [vmem:[#allocation2 + $0x120] sm:$0xff] %vm218, 0.0
        %257 = vst.msk [vmem:[#allocation2 + $0x128] sm:$0xff] %vm218, 0.0
        %258 = vst.msk [vmem:[#allocation2 + $0x130] sm:$0x3] %vm221, 0.0
        %259 = vst.msk [vmem:[#allocation2 + $0x138] sm:$0xff] %vm218, 0.0
        %260 = vst.msk [vmem:[#allocation2 + $0x140] sm:$0xff] %vm218, 0.0
        %261 = vst.msk [vmem:[#allocation2 + $0x148] sm:$0x3] %vm221, 0.0
        %262 = vst.msk [vmem:[#allocation2 + $0x150] sm:$0xff] %vm218, 0.0
        %263 = vst.msk [vmem:[#allocation2 + $0x158] sm:$0xff] %vm218, 0.0
        %264 = vst.msk [vmem:[#allocation2 + $0x160] sm:$0x3] %vm221, 0.0
        %265 = vst.msk [vmem:[#allocation2 + $0x168] sm:$0xff] %vm218, 0.0
        %266 = vst.msk [vmem:[#allocation2 + $0x170] sm:$0xff] %vm218, 0.0
        %267 = vst.msk [vmem:[#allocation2 + $0x178] sm:$0x3] %vm221, 0.0
        %268 = vst.msk [vmem:[#allocation2 + $0x180] sm:$0xff] %vm218, 0.0
        %269 = vst.msk [vmem:[#allocation2 + $0x188] sm:$0xff] %vm218, 0.0
        %270 = vst.msk [vmem:[#allocation2 + $0x190] sm:$0x3] %vm221, 0.0
        %271 = vst.msk [vmem:[#allocation2 + $0x198] sm:$0xff] %vm218, 0.0
        %272 = vst.msk [vmem:[#allocation2 + $0x1a0] sm:$0xff] %vm218, 0.0
        %273 = vst.msk [vmem:[#allocation2 + $0x1a8] sm:$0x3] %vm221, 0.0
        %v274 = vld [vmem:[%s211] sm:$0xff]
        %v275 = vld [vmem:[%s211 + $0x8] sm:$0xff]
        %v276 = vld [vmem:[%s211 + $0x10] sm:$0xff]
        %v277 = vld [vmem:[%s211 + $0x18] sm:$0xff]
        %v278 = vld [vmem:[%s211 + $0x20] sm:$0xff]
        %v279 = vld [vmem:[%s211 + $0x28] sm:$0xff]
        %v280 = vld [vmem:[%s211 + $0x30] sm:$0xff]
        %v281 = vld [vmem:[%s211 + $0x38] sm:$0xff]
        %v282 = vld [vmem:[%s211 + $0x40] sm:$0xff]
        %v283 = vld [vmem:[%s211 + $0x48] sm:$0xff]
        %v284 = vld [vmem:[%s211 + $0x50] sm:$0xff]
        %v285 = vld [vmem:[%s211 + $0x58] sm:$0xff]
        %v286 = vld [vmem:[%s211 + $0x60] sm:$0xff]
        %v287 = vld [vmem:[%s211 + $0x68] sm:$0xff]
        %v288 = vld [vmem:[%s211 + $0x70] sm:$0xff]
        %v289 = vld [vmem:[%s211 + $0x78] sm:$0xff]
        %v290 = vld [vmem:[%s211 + $0x80] sm:$0xff]
        %v291 = vld [vmem:[%s211 + $0x88] sm:$0xff]
        %v292 = vld [vmem:[%s211 + $0x90] sm:$0xff]
        %v293 = vld [vmem:[%s211 + $0x98] sm:$0xff]
        %v294 = vld [vmem:[%s211 + $0xa0] sm:$0xff]
        %v295 = vld [vmem:[%s211 + $0xa8] sm:$0xff]
        %v296 = vld [vmem:[%s211 + $0xb0] sm:$0xff]
        %v297 = vld [vmem:[%s211 + $0xb8] sm:$0xff]
        %v298 = vld [vmem:[%s211 + $0xc0] sm:$0xff]
        %v299 = vld [vmem:[%s211 + $0xc8] sm:$0xff]
        %v300 = vld [vmem:[%s211 + $0xd0] sm:$0xff]
        %v301 = vld [vmem:[%s211 + $0xd8] sm:$0xff]
        %v302 = vld [vmem:[%s211 + $0xe0] sm:$0xff]
        %v303 = vld [vmem:[%s211 + $0xe8] sm:$0xff]
        %v304 = vld [vmem:[%s211 + $0xf0] sm:$0xff]
        %v305 = vld [vmem:[%s211 + $0xf8] sm:$0xff]
        %s306 = scalar_lea.vmem [#allocation2], 24
        %307 = vst.msk [vmem:[%s306 + $0x1] sm:$0xff] %vm218, %v274
        %308 = vst.msk [vmem:[%s306 + $0x9] sm:$0xff] %vm218, %v275
        %309 = vst.msk [vmem:[%s306 + $0x19] sm:$0xff] %vm218, %v276
        %310 = vst.msk [vmem:[%s306 + $0x21] sm:$0xff] %vm218, %v277
        %311 = vst.msk [vmem:[%s306 + $0x31] sm:$0xff] %vm218, %v278
        %312 = vst.msk [vmem:[%s306 + $0x39] sm:$0xff] %vm218, %v279
        %313 = vst.msk [vmem:[%s306 + $0x49] sm:$0xff] %vm218, %v280
        %314 = vst.msk [vmem:[%s306 + $0x51] sm:$0xff] %vm218, %v281
        %315 = vst.msk [vmem:[%s306 + $0x61] sm:$0xff] %vm218, %v282
        %316 = vst.msk [vmem:[%s306 + $0x69] sm:$0xff] %vm218, %v283
        %317 = vst.msk [vmem:[%s306 + $0x79] sm:$0xff] %vm218, %v284
        %318 = vst.msk [vmem:[%s306 + $0x81] sm:$0xff] %vm218, %v285
        %319 = vst.msk [vmem:[%s306 + $0x91] sm:$0xff] %vm218, %v286
        %320 = vst.msk [vmem:[%s306 + $0x99] sm:$0xff] %vm218, %v287
        %321 = vst.msk [vmem:[%s306 + $0xa9] sm:$0xff] %vm218, %v288
        %322 = vst.msk [vmem:[%s306 + $0xb1] sm:$0xff] %vm218, %v289
        %323 = vst.msk [vmem:[%s306 + $0xc1] sm:$0xff] %vm218, %v290
        %324 = vst.msk [vmem:[%s306 + $0xc9] sm:$0xff] %vm218, %v291
        %325 = vst.msk [vmem:[%s306 + $0xd9] sm:$0xff] %vm218, %v292
        %326 = vst.msk [vmem:[%s306 + $0xe1] sm:$0xff] %vm218, %v293
        %327 = vst.msk [vmem:[%s306 + $0xf1] sm:$0xff] %vm218, %v294
        %328 = vst.msk [vmem:[%s306 + $0xf9] sm:$0xff] %vm218, %v295
        %329 = vst.msk [vmem:[%s306 + $0x109] sm:$0xff] %vm218, %v296
        %330 = vst.msk [vmem:[%s306 + $0x111] sm:$0xff] %vm218, %v297
        %331 = vst.msk [vmem:[%s306 + $0x121] sm:$0xff] %vm218, %v298
        %332 = vst.msk [vmem:[%s306 + $0x129] sm:$0xff] %vm218, %v299
        %333 = vst.msk [vmem:[%s306 + $0x139] sm:$0xff] %vm218, %v300
        %334 = vst.msk [vmem:[%s306 + $0x141] sm:$0xff] %vm218, %v301
        %335 = vst.msk [vmem:[%s306 + $0x151] sm:$0xff] %vm218, %v302
        %336 = vst.msk [vmem:[%s306 + $0x159] sm:$0xff] %vm218, %v303
        %337 = vst.msk [vmem:[%s306 + $0x169] sm:$0xff] %vm218, %v304
        %338 = vst.msk [vmem:[%s306 + $0x171] sm:$0xff] %vm218, %v305
        %v339 = vld [vmem:[#allocation2] sm:$0xff]
        %v340 = vld [vmem:[#allocation2 + $0x8] sm:$0xff]
        %v341 = vld [vmem:[#allocation2 + $0x18] sm:$0xff]
        %v342 = vld [vmem:[#allocation2 + $0x20] sm:$0xff]
        %v343 = vld [vmem:[#allocation2 + $0x30] sm:$0xff]
        %v344 = vld [vmem:[#allocation2 + $0x38] sm:$0xff]
        %v345 = vld [vmem:[#allocation2 + $0x48] sm:$0xff]
        %v346 = vld [vmem:[#allocation2 + $0x50] sm:$0xff]
        %v347 = vld [vmem:[#allocation2 + $0x60] sm:$0xff]
        %v348 = vld [vmem:[#allocation2 + $0x68] sm:$0xff]
        %v349 = vld [vmem:[#allocation2 + $0x78] sm:$0xff]
        %v350 = vld [vmem:[#allocation2 + $0x80] sm:$0xff]
        %v351 = vld [vmem:[#allocation2 + $0x90] sm:$0xff]
        %v352 = vld [vmem:[#allocation2 + $0x98] sm:$0xff]
        %v353 = vld [vmem:[#allocation2 + $0xa8] sm:$0xff]
        %v354 = vld [vmem:[#allocation2 + $0xb0] sm:$0xff]
        %v355 = vld [vmem:[#allocation2 + $0xc0] sm:$0xff]
        %v356 = vld [vmem:[#allocation2 + $0xc8] sm:$0xff]
        %v357 = vld [vmem:[#allocation2 + $0xd8] sm:$0xff]
        %v358 = vld [vmem:[#allocation2 + $0xe0] sm:$0xff]
        %v359 = vld [vmem:[#allocation2 + $0xf0] sm:$0xff]
        %v360 = vld [vmem:[#allocation2 + $0xf8] sm:$0xff]
        %v361 = vld [vmem:[#allocation2 + $0x108] sm:$0xff]
        %v362 = vld [vmem:[#allocation2 + $0x110] sm:$0xff]
        %v363 = vld [vmem:[#allocation2 + $0x120] sm:$0xff]
        %v364 = vld [vmem:[#allocation2 + $0x128] sm:$0xff]
        %v365 = vld [vmem:[#allocation2 + $0x138] sm:$0xff]
        %v366 = vld [vmem:[#allocation2 + $0x140] sm:$0xff]
        %v367 = vld [vmem:[#allocation2 + $0x150] sm:$0xff]
        %v368 = vld [vmem:[#allocation2 + $0x158] sm:$0xff]
        %v369 = vld [vmem:[#allocation2 + $0x168] sm:$0xff]
        %v370 = vld [vmem:[#allocation2 + $0x170] sm:$0xff]
        %v371 = vpack.c.bf16 %v340, %v339
        %v372 = vpack.c.bf16 %v342, %v341
        %v373 = vpack.c.bf16 %v344, %v343
        %v374 = vpack.c.bf16 %v346, %v345
        %v375 = vpack.c.bf16 %v348, %v347
        %v376 = vpack.c.bf16 %v350, %v349
        %v377 = vpack.c.bf16 %v352, %v351
        %v378 = vpack.c.bf16 %v354, %v353
        %v379 = vpack.c.bf16 %v356, %v355
        %v380 = vpack.c.bf16 %v358, %v357
        %v381 = vpack.c.bf16 %v360, %v359
        %v382 = vpack.c.bf16 %v362, %v361
        %v383 = vpack.c.bf16 %v364, %v363
        %v384 = vpack.c.bf16 %v366, %v365
        %v385 = vpack.c.bf16 %v368, %v367
        %v386 = vpack.c.bf16 %v370, %v369
        %v387 = vld [vmem:[%s1] sm:$0x3]
        %v388 = vld [vmem:[#allocation2 + $0x1] sm:$0xff]
        %v389 = vld [vmem:[#allocation2 + $0x9] sm:$0xff]
        %v390 = vld [vmem:[#allocation2 + $0x19] sm:$0xff]
        %v391 = vld [vmem:[#allocation2 + $0x21] sm:$0xff]
        %v392 = vld [vmem:[#allocation2 + $0x31] sm:$0xff]
        %v393 = vld [vmem:[#allocation2 + $0x39] sm:$0xff]
        %v394 = vld [vmem:[#allocation2 + $0x49] sm:$0xff]
        %v395 = vld [vmem:[#allocation2 + $0x51] sm:$0xff]
        %v396 = vld [vmem:[#allocation2 + $0x61] sm:$0xff]
        %v397 = vld [vmem:[#allocation2 + $0x69] sm:$0xff]
        %v398 = vld [vmem:[#allocation2 + $0x79] sm:$0xff]
        %v399 = vld [vmem:[#allocation2 + $0x81] sm:$0xff]
        %v400 = vld [vmem:[#allocation2 + $0x91] sm:$0xff]
        %v401 = vld [vmem:[#allocation2 + $0x99] sm:$0xff]
        %v402 = vld [vmem:[#allocation2 + $0xa9] sm:$0xff]
        %v403 = vld [vmem:[#allocation2 + $0xb1] sm:$0xff]
        %v404 = vld [vmem:[#allocation2 + $0xc1] sm:$0xff]
        %v405 = vld [vmem:[#allocation2 + $0xc9] sm:$0xff]
        %v406 = vld [vmem:[#allocation2 + $0xd9] sm:$0xff]
        %v407 = vld [vmem:[#allocation2 + $0xe1] sm:$0xff]
        %v408 = vld [vmem:[#allocation2 + $0xf1] sm:$0xff]
        %v409 = vld [vmem:[#allocation2 + $0xf9] sm:$0xff]
        %v410 = vld [vmem:[#allocation2 + $0x109] sm:$0xff]
        %v411 = vld [vmem:[#allocation2 + $0x111] sm:$0xff]
        %v412 = vld [vmem:[#allocation2 + $0x121] sm:$0xff]
        %v413 = vld [vmem:[#allocation2 + $0x129] sm:$0xff]
        %v414 = vld [vmem:[#allocation2 + $0x139] sm:$0xff]
        %v415 = vld [vmem:[#allocation2 + $0x141] sm:$0xff]
        %v416 = vld [vmem:[#allocation2 + $0x151] sm:$0xff]
        %v417 = vld [vmem:[#allocation2 + $0x159] sm:$0xff]
        %v418 = vld [vmem:[#allocation2 + $0x169] sm:$0xff]
        %v419 = vld [vmem:[#allocation2 + $0x171] sm:$0xff]
        %v420 = vpack.c.bf16 %v389, %v388
        %v421 = vpack.c.bf16 %v391, %v390
        %v422 = vpack.c.bf16 %v393, %v392
        %v423 = vpack.c.bf16 %v395, %v394
        %v424 = vpack.c.bf16 %v397, %v396
        %v425 = vpack.c.bf16 %v399, %v398
        %v426 = vpack.c.bf16 %v401, %v400
        %v427 = vpack.c.bf16 %v403, %v402
        %v428 = vpack.c.bf16 %v405, %v404
        %v429 = vpack.c.bf16 %v407, %v406
        %v430 = vpack.c.bf16 %v409, %v408
        %v431 = vpack.c.bf16 %v411, %v410
        %v432 = vpack.c.bf16 %v413, %v412
        %v433 = vpack.c.bf16 %v415, %v414
        %v434 = vpack.c.bf16 %v417, %v416
        %v435 = vpack.c.bf16 %v419, %v418
        %s436 = scalar_lea.vmem %s1, 2
        %v437 = vld [vmem:[%s436] sm:$0x3]
        %v439 = vsel %vm218, %v420, 0
        %v442 = vsel %vm218, %v421, 0
        %v445 = vsel %vm218, %v422, 0
        %v448 = vsel %vm218, %v423, 0
        %v451 = vsel %vm218, %v424, 0
        %v454 = vsel %vm218, %v425, 0
        %v457 = vsel %vm218, %v426, 0
        %v460 = vsel %vm218, %v427, 0
        %v463 = vsel %vm218, %v428, 0
        %v466 = vsel %vm218, %v429, 0
        %v469 = vsel %vm218, %v430, 0
        %v472 = vsel %vm218, %v431, 0
        %v475 = vsel %vm218, %v432, 0
        %v478 = vsel %vm218, %v433, 0
        %v481 = vsel %vm218, %v434, 0
        %v484 = vsel %vm218, %v435, 0
        %vm486 = vcmask 1041408
        %v488 = vsel %vm486, %v437, 0
        %490 = vmatprep.subr.bf16.mxu0 0
        %491 = vmatpush1.bf16.msra.mxu0 %v488
        %492 = vmatprep.subr.bf16.mxu0 0
        %493 = vmatpush1.bf16.msra.mxu0 0
        %494 = vmatprep.subr.bf16.mxu0 0
        %495 = vmatpush1.bf16.msra.mxu0 0
        %496 = vmatprep.subr.bf16.mxu0 0
        %497 = vmatpush1.bf16.msra.mxu0 0
        %498 = vmatprep.subr.bf16.mxu0 0
        %499 = vmatpush1.bf16.msra.mxu0 0
        %500 = vmatprep.subr.bf16.mxu0 0
        %501 = vmatpush1.bf16.msra.mxu0 0
        %502 = vmatprep.subr.bf16.mxu0 0
        %503 = vmatpush1.bf16.msra.mxu0 0
        %504 = vmatprep.subr.bf16.mxu0 0
        %505 = vmatpush1.bf16.msra.mxu0 0
        %506 = vmatprep.subr.bf16.mxu0 0
        %507 = vmatpush1.bf16.msra.mxu0 0
        %508 = vmatprep.subr.bf16.mxu0 0
        %509 = vmatpush1.bf16.msra.mxu0 0
        %510 = vmatprep.subr.bf16.mxu0 0
        %511 = vmatpush1.bf16.msra.mxu0 0
        %512 = vmatprep.subr.bf16.mxu0 0
        %513 = vmatpush1.bf16.msra.mxu0 0
        %514 = vmatprep.subr.bf16.mxu0 0
        %515 = vmatpush1.bf16.msra.mxu0 0
        %516 = vmatprep.subr.bf16.mxu0 0
        %517 = vmatpush1.bf16.msra.mxu0 0
        %518 = vmatprep.subr.bf16.mxu0 0
        %519 = vmatpush1.bf16.msra.mxu0 0
        %520 = vmatprep.subr.bf16.mxu0 0
        %521 = vmatpush1.bf16.msra.mxu0 0
        %522 = vmatprep.mubr.bf16.mxu0 0
        %523 = vmatmul.mubr.bf16.gmra.mrb[0].mxu0 %v439
        %v524 = vpop.f32.mrb[0].mxu0
        %v525 = vadd.f32 0.0, %v524
        %v526 = vpop.f32.mrb[0].mxu0
        %v527 = vpop.f32.mrb[0].mxu0
        %v528 = vadd.f32 0.0, %v527
        %v529 = vpop.f32.mrb[0].mxu0
        %530 = vmatprep.mubr.bf16.mxu0 0
        %531 = vmatmul.mubr.bf16.gmra.mrb[0].mxu0 %v442
        %v532 = vpop.f32.mrb[0].mxu0
        %v533 = vadd.f32 0.0, %v532
        %v534 = vpop.f32.mrb[0].mxu0
        %v535 = vpop.f32.mrb[0].mxu0
        %v536 = vadd.f32 0.0, %v535
        %v537 = vpop.f32.mrb[0].mxu0
        %538 = vmatprep.mubr.bf16.mxu0 0
        %539 = vmatmul.mubr.bf16.gmra.mrb[0].mxu0 %v445
        %v540 = vpop.f32.mrb[0].mxu0
        %v541 = vadd.f32 0.0, %v540
        %v542 = vpop.f32.mrb[0].mxu0
        %v543 = vpop.f32.mrb[0].mxu0
        %v544 = vadd.f32 0.0, %v543
        %v545 = vpop.f32.mrb[0].mxu0
        %546 = vmatprep.mubr.bf16.mxu0 0
        %547 = vmatmul.mubr.bf16.gmra.mrb[0].mxu0 %v448
        %v548 = vpop.f32.mrb[0].mxu0
        %v549 = vadd.f32 0.0, %v548
        %v550 = vpop.f32.mrb[0].mxu0
        %v551 = vpop.f32.mrb[0].mxu0
        %v552 = vadd.f32 0.0, %v551
        %v553 = vpop.f32.mrb[0].mxu0
        %554 = vmatprep.mubr.bf16.mxu0 0
        %555 = vmatmul.mubr.bf16.gmra.mrb[0].mxu0 %v451
        %v556 = vpop.f32.mrb[0].mxu0
        %v557 = vadd.f32 0.0, %v556
        %v558 = vpop.f32.mrb[0].mxu0
        %v559 = vpop.f32.mrb[0].mxu0
        %v560 = vadd.f32 0.0, %v559
        %v561 = vpop.f32.mrb[0].mxu0
        %562 = vmatprep.mubr.bf16.mxu0 0
        %563 = vmatmul.mubr.bf16.gmra.mrb[0].mxu0 %v454
        %v564 = vpop.f32.mrb[0].mxu0
        %v565 = vadd.f32 0.0, %v564
        %v566 = vpop.f32.mrb[0].mxu0
        %v567 = vpop.f32.mrb[0].mxu0
        %v568 = vadd.f32 0.0, %v567
        %v569 = vpop.f32.mrb[0].mxu0
        %570 = vmatprep.mubr.bf16.mxu0 0
        %571 = vmatmul.mubr.bf16.gmra.mrb[0].mxu0 %v457
        %v572 = vpop.f32.mrb[0].mxu0
        %v573 = vadd.f32 0.0, %v572
        %v574 = vpop.f32.mrb[0].mxu0
        %v575 = vpop.f32.mrb[0].mxu0
        %v576 = vadd.f32 0.0, %v575
        %v577 = vpop.f32.mrb[0].mxu0
        %578 = vmatprep.mubr.bf16.mxu0 0
        %579 = vmatmul.mubr.bf16.gmra.mrb[0].mxu0 %v460
        %v580 = vpop.f32.mrb[0].mxu0
        %v581 = vadd.f32 0.0, %v580
        %v582 = vpop.f32.mrb[0].mxu0
        %v583 = vpop.f32.mrb[0].mxu0
        %v584 = vadd.f32 0.0, %v583
        %v585 = vpop.f32.mrb[0].mxu0
        %586 = vmatprep.mubr.bf16.mxu0 0
        %587 = vmatmul.mubr.bf16.gmra.mrb[0].mxu0 %v463
        %v588 = vpop.f32.mrb[0].mxu0
        %v589 = vadd.f32 0.0, %v588
        %v590 = vpop.f32.mrb[0].mxu0
        %v591 = vpop.f32.mrb[0].mxu0
        %v592 = vadd.f32 0.0, %v591
        %v593 = vpop.f32.mrb[0].mxu0
        %594 = vmatprep.mubr.bf16.mxu0 0
        %595 = vmatmul.mubr.bf16.gmra.mrb[0].mxu0 %v466
        %v596 = vpop.f32.mrb[0].mxu0
        %v597 = vadd.f32 0.0, %v596
        %v598 = vpop.f32.mrb[0].mxu0
        %v599 = vpop.f32.mrb[0].mxu0
        %v600 = vadd.f32 0.0, %v599
        %v601 = vpop.f32.mrb[0].mxu0
        %602 = vmatprep.mubr.bf16.mxu0 0
        %603 = vmatmul.mubr.bf16.gmra.mrb[0].mxu0 %v469
        %v604 = vpop.f32.mrb[0].mxu0
        %v605 = vadd.f32 0.0, %v604
        %v606 = vpop.f32.mrb[0].mxu0
        %v607 = vpop.f32.mrb[0].mxu0
        %v608 = vadd.f32 0.0, %v607
        %v609 = vpop.f32.mrb[0].mxu0
        %610 = vmatprep.mubr.bf16.mxu0 0
        %611 = vmatmul.mubr.bf16.gmra.mrb[0].mxu0 %v472
        %v612 = vpop.f32.mrb[0].mxu0
        %v613 = vadd.f32 0.0, %v612
        %v614 = vpop.f32.mrb[0].mxu0
        %v615 = vpop.f32.mrb[0].mxu0
        %v616 = vadd.f32 0.0, %v615
        %v617 = vpop.f32.mrb[0].mxu0
        %618 = vmatprep.mubr.bf16.mxu0 0
        %619 = vmatmul.mubr.bf16.gmra.mrb[0].mxu0 %v475
        %v620 = vpop.f32.mrb[0].mxu0
        %v621 = vadd.f32 0.0, %v620
        %v622 = vpop.f32.mrb[0].mxu0
        %v623 = vpop.f32.mrb[0].mxu0
        %v624 = vadd.f32 0.0, %v623
        %v625 = vpop.f32.mrb[0].mxu0
        %626 = vmatprep.mubr.bf16.mxu0 0
        %627 = vmatmul.mubr.bf16.gmra.mrb[0].mxu0 %v478
        %v628 = vpop.f32.mrb[0].mxu0
        %v629 = vadd.f32 0.0, %v628
        %v630 = vpop.f32.mrb[0].mxu0
        %v631 = vpop.f32.mrb[0].mxu0
        %v632 = vadd.f32 0.0, %v631
        %v633 = vpop.f32.mrb[0].mxu0
        %634 = vmatprep.mubr.bf16.mxu0 0
        %635 = vmatmul.mubr.bf16.gmra.mrb[0].mxu0 %v481
        %v636 = vpop.f32.mrb[0].mxu0
        %v637 = vadd.f32 0.0, %v636
        %v638 = vpop.f32.mrb[0].mxu0
        %v639 = vpop.f32.mrb[0].mxu0
        %v640 = vadd.f32 0.0, %v639
        %v641 = vpop.f32.mrb[0].mxu0
        %642 = vmatprep.mubr.bf16.mxu0 0
        %643 = vmatmul.mubr.bf16.gmra.mrb[0].mxu0 %v484
        %v644 = vpop.f32.mrb[0].mxu0
        %v645 = vadd.f32 0.0, %v644
        %v646 = vpop.f32.mrb[0].mxu0
        %v647 = vpop.f32.mrb[0].mxu0
        %v648 = vadd.f32 0.0, %v647
        %v649 = vpop.f32.mrb[0].mxu0
        %650 = vdwg.mxu0
        %v652 = vsel %vm218, %v371, 0
        %v655 = vsel %vm218, %v372, 0
        %v658 = vsel %vm218, %v373, 0
        %v661 = vsel %vm218, %v374, 0
        %v664 = vsel %vm218, %v375, 0
        %v667 = vsel %vm218, %v376, 0
        %v670 = vsel %vm218, %v377, 0
        %v673 = vsel %vm218, %v378, 0
        %v676 = vsel %vm218, %v379, 0
        %v679 = vsel %vm218, %v380, 0
        %v682 = vsel %vm218, %v381, 0
        %v685 = vsel %vm218, %v382, 0
        %v688 = vsel %vm218, %v383, 0
        %v691 = vsel %vm218, %v384, 0
        %v694 = vsel %vm218, %v385, 0
        %v697 = vsel %vm218, %v386, 0
        %v700 = vsel %vm486, %v387, 0
        %702 = vmatprep.subr.bf16.mxu0 0
        %703 = vmatpush1.bf16.msra.mxu0 %v700
        %704 = vmatprep.subr.bf16.mxu0 0
        %705 = vmatpush1.bf16.msra.mxu0 0
        %706 = vmatprep.subr.bf16.mxu0 0
        %707 = vmatpush1.bf16.msra.mxu0 0
        %708 = vmatprep.subr.bf16.mxu0 0
        %709 = vmatpush1.bf16.msra.mxu0 0
        %710 = vmatprep.subr.bf16.mxu0 0
        %711 = vmatpush1.bf16.msra.mxu0 0
        %712 = vmatprep.subr.bf16.mxu0 0
        %713 = vmatpush1.bf16.msra.mxu0 0
        %714 = vmatprep.subr.bf16.mxu0 0
        %715 = vmatpush1.bf16.msra.mxu0 0
        %716 = vmatprep.subr.bf16.mxu0 0
        %717 = vmatpush1.bf16.msra.mxu0 0
        %718 = vmatprep.subr.bf16.mxu0 0
        %719 = vmatpush1.bf16.msra.mxu0 0
        %720 = vmatprep.subr.bf16.mxu0 0
        %721 = vmatpush1.bf16.msra.mxu0 0
        %722 = vmatprep.subr.bf16.mxu0 0
        %723 = vmatpush1.bf16.msra.mxu0 0
        %724 = vmatprep.subr.bf16.mxu0 0
        %725 = vmatpush1.bf16.msra.mxu0 0
        %726 = vmatprep.subr.bf16.mxu0 0
        %727 = vmatpush1.bf16.msra.mxu0 0
        %728 = vmatprep.subr.bf16.mxu0 0
        %729 = vmatpush1.bf16.msra.mxu0 0
        %730 = vmatprep.subr.bf16.mxu0 0
        %731 = vmatpush1.bf16.msra.mxu0 0
        %732 = vmatprep.subr.bf16.mxu0 0
        %733 = vmatpush1.bf16.msra.mxu0 0
        %734 = vmatprep.mubr.bf16.mxu0 0
        %735 = vmatmul.mubr.bf16.gmra.mrb[0].mxu0 %v652
        %v736 = vpop.f32.mrb[0].mxu0
        %v737 = vadd.f32 %v525, %v736
        %v738 = vpop.f32.mrb[0].mxu0
        %v739 = vpop.f32.mrb[0].mxu0
        %v740 = vadd.f32 %v528, %v739
        %v741 = vpop.f32.mrb[0].mxu0
        %742 = vmatprep.mubr.bf16.mxu0 0
        %743 = vmatmul.mubr.bf16.gmra.mrb[0].mxu0 %v655
        %v744 = vpop.f32.mrb[0].mxu0
        %v745 = vadd.f32 %v533, %v744
        %v746 = vpop.f32.mrb[0].mxu0
        %v747 = vpop.f32.mrb[0].mxu0
        %v748 = vadd.f32 %v536, %v747
        %v749 = vpop.f32.mrb[0].mxu0
        %750 = vmatprep.mubr.bf16.mxu0 0
        %751 = vmatmul.mubr.bf16.gmra.mrb[0].mxu0 %v658
        %v752 = vpop.f32.mrb[0].mxu0
        %v753 = vadd.f32 %v541, %v752
        %v754 = vpop.f32.mrb[0].mxu0
        %v755 = vpop.f32.mrb[0].mxu0
        %v756 = vadd.f32 %v544, %v755
        %v757 = vpop.f32.mrb[0].mxu0
        %758 = vmatprep.mubr.bf16.mxu0 0
        %759 = vmatmul.mubr.bf16.gmra.mrb[0].mxu0 %v661
        %v760 = vpop.f32.mrb[0].mxu0
        %v761 = vadd.f32 %v549, %v760
        %v762 = vpop.f32.mrb[0].mxu0
        %v763 = vpop.f32.mrb[0].mxu0
        %v764 = vadd.f32 %v552, %v763
        %v765 = vpop.f32.mrb[0].mxu0
        %766 = vmatprep.mubr.bf16.mxu0 0
        %767 = vmatmul.mubr.bf16.gmra.mrb[0].mxu0 %v664
        %v768 = vpop.f32.mrb[0].mxu0
        %v769 = vadd.f32 %v557, %v768
        %v770 = vpop.f32.mrb[0].mxu0
        %v771 = vpop.f32.mrb[0].mxu0
        %v772 = vadd.f32 %v560, %v771
        %v773 = vpop.f32.mrb[0].mxu0
        %774 = vmatprep.mubr.bf16.mxu0 0
        %775 = vmatmul.mubr.bf16.gmra.mrb[0].mxu0 %v667
        %v776 = vpop.f32.mrb[0].mxu0
        %v777 = vadd.f32 %v565, %v776
        %v778 = vpop.f32.mrb[0].mxu0
        %v779 = vpop.f32.mrb[0].mxu0
        %v780 = vadd.f32 %v568, %v779
        %v781 = vpop.f32.mrb[0].mxu0
        %782 = vmatprep.mubr.bf16.mxu0 0
        %783 = vmatmul.mubr.bf16.gmra.mrb[0].mxu0 %v670
        %v784 = vpop.f32.mrb[0].mxu0
        %v785 = vadd.f32 %v573, %v784
        %v786 = vpop.f32.mrb[0].mxu0
        %v787 = vpop.f32.mrb[0].mxu0
        %v788 = vadd.f32 %v576, %v787
        %v789 = vpop.f32.mrb[0].mxu0
        %790 = vmatprep.mubr.bf16.mxu0 0
        %791 = vmatmul.mubr.bf16.gmra.mrb[0].mxu0 %v673
        %v792 = vpop.f32.mrb[0].mxu0
        %v793 = vadd.f32 %v581, %v792
        %v794 = vpop.f32.mrb[0].mxu0
        %v795 = vpop.f32.mrb[0].mxu0
        %v796 = vadd.f32 %v584, %v795
        %v797 = vpop.f32.mrb[0].mxu0
        %798 = vmatprep.mubr.bf16.mxu0 0
        %799 = vmatmul.mubr.bf16.gmra.mrb[0].mxu0 %v676
        %v800 = vpop.f32.mrb[0].mxu0
        %v801 = vadd.f32 %v589, %v800
        %v802 = vpop.f32.mrb[0].mxu0
        %v803 = vpop.f32.mrb[0].mxu0
        %v804 = vadd.f32 %v592, %v803
        %v805 = vpop.f32.mrb[0].mxu0
        %806 = vmatprep.mubr.bf16.mxu0 0
        %807 = vmatmul.mubr.bf16.gmra.mrb[0].mxu0 %v679
        %v808 = vpop.f32.mrb[0].mxu0
        %v809 = vadd.f32 %v597, %v808
        %v810 = vpop.f32.mrb[0].mxu0
        %v811 = vpop.f32.mrb[0].mxu0
        %v812 = vadd.f32 %v600, %v811
        %v813 = vpop.f32.mrb[0].mxu0
        %814 = vmatprep.mubr.bf16.mxu0 0
        %815 = vmatmul.mubr.bf16.gmra.mrb[0].mxu0 %v682
        %v816 = vpop.f32.mrb[0].mxu0
        %v817 = vadd.f32 %v605, %v816
        %v818 = vpop.f32.mrb[0].mxu0
        %v819 = vpop.f32.mrb[0].mxu0
        %v820 = vadd.f32 %v608, %v819
        %v821 = vpop.f32.mrb[0].mxu0
        %822 = vmatprep.mubr.bf16.mxu0 0
        %823 = vmatmul.mubr.bf16.gmra.mrb[0].mxu0 %v685
        %v824 = vpop.f32.mrb[0].mxu0
        %v825 = vadd.f32 %v613, %v824
        %v826 = vpop.f32.mrb[0].mxu0
        %v827 = vpop.f32.mrb[0].mxu0
        %v828 = vadd.f32 %v616, %v827
        %v829 = vpop.f32.mrb[0].mxu0
        %830 = vmatprep.mubr.bf16.mxu0 0
        %831 = vmatmul.mubr.bf16.gmra.mrb[0].mxu0 %v688
        %v832 = vpop.f32.mrb[0].mxu0
        %v833 = vadd.f32 %v621, %v832
        %v834 = vpop.f32.mrb[0].mxu0
        %v835 = vpop.f32.mrb[0].mxu0
        %v836 = vadd.f32 %v624, %v835
        %v837 = vpop.f32.mrb[0].mxu0
        %838 = vmatprep.mubr.bf16.mxu0 0
        %839 = vmatmul.mubr.bf16.gmra.mrb[0].mxu0 %v691
        %v840 = vpop.f32.mrb[0].mxu0
        %v841 = vadd.f32 %v629, %v840
        %v842 = vpop.f32.mrb[0].mxu0
        %v843 = vpop.f32.mrb[0].mxu0
        %v844 = vadd.f32 %v632, %v843
        %v845 = vpop.f32.mrb[0].mxu0
        %846 = vmatprep.mubr.bf16.mxu0 0
        %847 = vmatmul.mubr.bf16.gmra.mrb[0].mxu0 %v694
        %v848 = vpop.f32.mrb[0].mxu0
        %v849 = vadd.f32 %v637, %v848
        %v850 = vpop.f32.mrb[0].mxu0
        %v851 = vpop.f32.mrb[0].mxu0
        %v852 = vadd.f32 %v640, %v851
        %v853 = vpop.f32.mrb[0].mxu0
        %854 = vmatprep.mubr.bf16.mxu0 0
        %855 = vmatmul.mubr.bf16.gmra.mrb[0].mxu0 %v697
        %v856 = vpop.f32.mrb[0].mxu0
        %v857 = vadd.f32 %v645, %v856
        %v858 = vpop.f32.mrb[0].mxu0
        %v859 = vpop.f32.mrb[0].mxu0
        %v860 = vadd.f32 %v648, %v859
        %v861 = vpop.f32.mrb[0].mxu0
        %862 = vdwg.mxu0
        %v863 = vld [vmem:[#allocation2 + $0x2] sm:$0xff]
        %v864 = vld [vmem:[#allocation2 + $0xa] sm:$0xff]
        %v865 = vld [vmem:[#allocation2 + $0x1a] sm:$0xff]
        %v866 = vld [vmem:[#allocation2 + $0x22] sm:$0xff]
        %v867 = vld [vmem:[#allocation2 + $0x32] sm:$0xff]
        %v868 = vld [vmem:[#allocation2 + $0x3a] sm:$0xff]
        %v869 = vld [vmem:[#allocation2 + $0x4a] sm:$0xff]
        %v870 = vld [vmem:[#allocation2 + $0x52] sm:$0xff]
        %v871 = vld [vmem:[#allocation2 + $0x62] sm:$0xff]
        %v872 = vld [vmem:[#allocation2 + $0x6a] sm:$0xff]
        %v873 = vld [vmem:[#allocation2 + $0x7a] sm:$0xff]
        %v874 = vld [vmem:[#allocation2 + $0x82] sm:$0xff]
        %v875 = vld [vmem:[#allocation2 + $0x92] sm:$0xff]
        %v876 = vld [vmem:[#allocation2 + $0x9a] sm:$0xff]
        %v877 = vld [vmem:[#allocation2 + $0xaa] sm:$0xff]
        %v878 = vld [vmem:[#allocation2 + $0xb2] sm:$0xff]
        %v879 = vld [vmem:[#allocation2 + $0xc2] sm:$0xff]
        %v880 = vld [vmem:[#allocation2 + $0xca] sm:$0xff]
        %v881 = vld [vmem:[#allocation2 + $0xda] sm:$0xff]
        %v882 = vld [vmem:[#allocation2 + $0xe2] sm:$0xff]
        %v883 = vld [vmem:[#allocation2 + $0xf2] sm:$0xff]
        %v884 = vld [vmem:[#allocation2 + $0xfa] sm:$0xff]
        %v885 = vld [vmem:[#allocation2 + $0x10a] sm:$0xff]
        %v886 = vld [vmem:[#allocation2 + $0x112] sm:$0xff]
        %v887 = vld [vmem:[#allocation2 + $0x122] sm:$0xff]
        %v888 = vld [vmem:[#allocation2 + $0x12a] sm:$0xff]
        %v889 = vld [vmem:[#allocation2 + $0x13a] sm:$0xff]
        %v890 = vld [vmem:[#allocation2 + $0x142] sm:$0xff]
        %v891 = vld [vmem:[#allocation2 + $0x152] sm:$0xff]
        %v892 = vld [vmem:[#allocation2 + $0x15a] sm:$0xff]
        %v893 = vld [vmem:[#allocation2 + $0x16a] sm:$0xff]
        %v894 = vld [vmem:[#allocation2 + $0x172] sm:$0xff]
        %v895 = vpack.c.bf16 %v864, %v863
        %v896 = vpack.c.bf16 %v866, %v865
        %v897 = vpack.c.bf16 %v868, %v867
        %v898 = vpack.c.bf16 %v870, %v869
        %v899 = vpack.c.bf16 %v872, %v871
        %v900 = vpack.c.bf16 %v874, %v873
        %v901 = vpack.c.bf16 %v876, %v875
        %v902 = vpack.c.bf16 %v878, %v877
        %v903 = vpack.c.bf16 %v880, %v879
        %v904 = vpack.c.bf16 %v882, %v881
        %v905 = vpack.c.bf16 %v884, %v883
        %v906 = vpack.c.bf16 %v886, %v885
        %v907 = vpack.c.bf16 %v888, %v887
        %v908 = vpack.c.bf16 %v890, %v889
        %v909 = vpack.c.bf16 %v892, %v891
        %v910 = vpack.c.bf16 %v894, %v893
        %s911 = scalar_lea.vmem %s1, 4
        %v912 = vld [vmem:[%s911] sm:$0x3]
        %v914 = vsel %vm218, %v895, 0
        %v917 = vsel %vm218, %v896, 0
        %v920 = vsel %vm218, %v897, 0
        %v923 = vsel %vm218, %v898, 0
        %v926 = vsel %vm218, %v899, 0
        %v929 = vsel %vm218, %v900, 0
        %v932 = vsel %vm218, %v901, 0
        %v935 = vsel %vm218, %v902, 0
        %v938 = vsel %vm218, %v903, 0
        %v941 = vsel %vm218, %v904, 0
        %v944 = vsel %vm218, %v905, 0
        %v947 = vsel %vm218, %v906, 0
        %v950 = vsel %vm218, %v907, 0
        %v953 = vsel %vm218, %v908, 0
        %v956 = vsel %vm218, %v909, 0
        %v959 = vsel %vm218, %v910, 0
        %v962 = vsel %vm486, %v912, 0
        %964 = vmatprep.subr.bf16.mxu0 0
        %965 = vmatpush1.bf16.msra.mxu0 %v962
        %966 = vmatprep.subr.bf16.mxu0 0
        %967 = vmatpush1.bf16.msra.mxu0 0
        %968 = vmatprep.subr.bf16.mxu0 0
        %969 = vmatpush1.bf16.msra.mxu0 0
        %970 = vmatprep.subr.bf16.mxu0 0
        %971 = vmatpush1.bf16.msra.mxu0 0
        %972 = vmatprep.subr.bf16.mxu0 0
        %973 = vmatpush1.bf16.msra.mxu0 0
        %974 = vmatprep.subr.bf16.mxu0 0
        %975 = vmatpush1.bf16.msra.mxu0 0
        %976 = vmatprep.subr.bf16.mxu0 0
        %977 = vmatpush1.bf16.msra.mxu0 0
        %978 = vmatprep.subr.bf16.mxu0 0
        %979 = vmatpush1.bf16.msra.mxu0 0
        %980 = vmatprep.subr.bf16.mxu0 0
        %981 = vmatpush1.bf16.msra.mxu0 0
        %982 = vmatprep.subr.bf16.mxu0 0
        %983 = vmatpush1.bf16.msra.mxu0 0
        %984 = vmatprep.subr.bf16.mxu0 0
        %985 = vmatpush1.bf16.msra.mxu0 0
        %986 = vmatprep.subr.bf16.mxu0 0
        %987 = vmatpush1.bf16.msra.mxu0 0
        %988 = vmatprep.subr.bf16.mxu0 0
        %989 = vmatpush1.bf16.msra.mxu0 0
        %990 = vmatprep.subr.bf16.mxu0 0
        %991 = vmatpush1.bf16.msra.mxu0 0
        %992 = vmatprep.subr.bf16.mxu0 0
        %993 = vmatpush1.bf16.msra.mxu0 0
        %994 = vmatprep.subr.bf16.mxu0 0
        %995 = vmatpush1.bf16.msra.mxu0 0
        %996 = vmatprep.mubr.bf16.mxu0 0
        %997 = vmatmul.mubr.bf16.gmra.mrb[0].mxu0 %v914
        %v998 = vpop.f32.mrb[0].mxu0
        %v999 = vadd.f32 0.0, %v998
        %v1000 = vpop.f32.mrb[0].mxu0
        %v1001 = vpop.f32.mrb[0].mxu0
        %v1002 = vadd.f32 0.0, %v1001
        %v1003 = vpop.f32.mrb[0].mxu0
        %1004 = vmatprep.mubr.bf16.mxu0 0
        %1005 = vmatmul.mubr.bf16.gmra.mrb[0].mxu0 %v917
        %v1006 = vpop.f32.mrb[0].mxu0
        %v1007 = vadd.f32 0.0, %v1006
        %v1008 = vpop.f32.mrb[0].mxu0
        %v1009 = vpop.f32.mrb[0].mxu0
        %v1010 = vadd.f32 0.0, %v1009
        %v1011 = vpop.f32.mrb[0].mxu0
        %1012 = vmatprep.mubr.bf16.mxu0 0
        %1013 = vmatmul.mubr.bf16.gmra.mrb[0].mxu0 %v920
        %v1014 = vpop.f32.mrb[0].mxu0
        %v1015 = vadd.f32 0.0, %v1014
        %v1016 = vpop.f32.mrb[0].mxu0
        %v1017 = vpop.f32.mrb[0].mxu0
        %v1018 = vadd.f32 0.0, %v1017
        %v1019 = vpop.f32.mrb[0].mxu0
        %1020 = vmatprep.mubr.bf16.mxu0 0
        %1021 = vmatmul.mubr.bf16.gmra.mrb[0].mxu0 %v923
        %v1022 = vpop.f32.mrb[0].mxu0
        %v1023 = vadd.f32 0.0, %v1022
        %v1024 = vpop.f32.mrb[0].mxu0
        %v1025 = vpop.f32.mrb[0].mxu0
        %v1026 = vadd.f32 0.0, %v1025
        %v1027 = vpop.f32.mrb[0].mxu0
        %1028 = vmatprep.mubr.bf16.mxu0 0
        %1029 = vmatmul.mubr.bf16.gmra.mrb[0].mxu0 %v926
        %v1030 = vpop.f32.mrb[0].mxu0
        %v1031 = vadd.f32 0.0, %v1030
        %v1032 = vpop.f32.mrb[0].mxu0
        %v1033 = vpop.f32.mrb[0].mxu0
        %v1034 = vadd.f32 0.0, %v1033
        %v1035 = vpop.f32.mrb[0].mxu0
        %1036 = vmatprep.mubr.bf16.mxu0 0
        %1037 = vmatmul.mubr.bf16.gmra.mrb[0].mxu0 %v929
        %v1038 = vpop.f32.mrb[0].mxu0
        %v1039 = vadd.f32 0.0, %v1038
        %v1040 = vpop.f32.mrb[0].mxu0
        %v1041 = vpop.f32.mrb[0].mxu0
        %v1042 = vadd.f32 0.0, %v1041
        %v1043 = vpop.f32.mrb[0].mxu0
        %1044 = vmatprep.mubr.bf16.mxu0 0
        %1045 = vmatmul.mubr.bf16.gmra.mrb[0].mxu0 %v932
        %v1046 = vpop.f32.mrb[0].mxu0
        %v1047 = vadd.f32 0.0, %v1046
        %v1048 = vpop.f32.mrb[0].mxu0
        %v1049 = vpop.f32.mrb[0].mxu0
        %v1050 = vadd.f32 0.0, %v1049
        %v1051 = vpop.f32.mrb[0].mxu0
        %1052 = vmatprep.mubr.bf16.mxu0 0
        %1053 = vmatmul.mubr.bf16.gmra.mrb[0].mxu0 %v935
        %v1054 = vpop.f32.mrb[0].mxu0
        %v1055 = vadd.f32 0.0, %v1054
        %v1056 = vpop.f32.mrb[0].mxu0
        %v1057 = vpop.f32.mrb[0].mxu0
        %v1058 = vadd.f32 0.0, %v1057
        %v1059 = vpop.f32.mrb[0].mxu0
        %1060 = vmatprep.mubr.bf16.mxu0 0
        %1061 = vmatmul.mubr.bf16.gmra.mrb[0].mxu0 %v938
        %v1062 = vpop.f32.mrb[0].mxu0
        %v1063 = vadd.f32 0.0, %v1062
        %v1064 = vpop.f32.mrb[0].mxu0
        %v1065 = vpop.f32.mrb[0].mxu0
        %v1066 = vadd.f32 0.0, %v1065
        %v1067 = vpop.f32.mrb[0].mxu0
        %1068 = vmatprep.mubr.bf16.mxu0 0
        %1069 = vmatmul.mubr.bf16.gmra.mrb[0].mxu0 %v941
        %v1070 = vpop.f32.mrb[0].mxu0
        %v1071 = vadd.f32 0.0, %v1070
        %v1072 = vpop.f32.mrb[0].mxu0
        %v1073 = vpop.f32.mrb[0].mxu0
        %v1074 = vadd.f32 0.0, %v1073
        %v1075 = vpop.f32.mrb[0].mxu0
        %1076 = vmatprep.mubr.bf16.mxu0 0
        %1077 = vmatmul.mubr.bf16.gmra.mrb[0].mxu0 %v944
        %v1078 = vpop.f32.mrb[0].mxu0
        %v1079 = vadd.f32 0.0, %v1078
        %v1080 = vpop.f32.mrb[0].mxu0
        %v1081 = vpop.f32.mrb[0].mxu0
        %v1082 = vadd.f32 0.0, %v1081
        %v1083 = vpop.f32.mrb[0].mxu0
        %1084 = vmatprep.mubr.bf16.mxu0 0
        %1085 = vmatmul.mubr.bf16.gmra.mrb[0].mxu0 %v947
        %v1086 = vpop.f32.mrb[0].mxu0
        %v1087 = vadd.f32 0.0, %v1086
        %v1088 = vpop.f32.mrb[0].mxu0
        %v1089 = vpop.f32.mrb[0].mxu0
        %v1090 = vadd.f32 0.0, %v1089
        %v1091 = vpop.f32.mrb[0].mxu0
        %1092 = vmatprep.mubr.bf16.mxu0 0
        %1093 = vmatmul.mubr.bf16.gmra.mrb[0].mxu0 %v950
        %v1094 = vpop.f32.mrb[0].mxu0
        %v1095 = vadd.f32 0.0, %v1094
        %v1096 = vpop.f32.mrb[0].mxu0
        %v1097 = vpop.f32.mrb[0].mxu0
        %v1098 = vadd.f32 0.0, %v1097
        %v1099 = vpop.f32.mrb[0].mxu0
        %1100 = vmatprep.mubr.bf16.mxu0 0
        %1101 = vmatmul.mubr.bf16.gmra.mrb[0].mxu0 %v953
        %v1102 = vpop.f32.mrb[0].mxu0
        %v1103 = vadd.f32 0.0, %v1102
        %v1104 = vpop.f32.mrb[0].mxu0
        %v1105 = vpop.f32.mrb[0].mxu0
        %v1106 = vadd.f32 0.0, %v1105
        %v1107 = vpop.f32.mrb[0].mxu0
        %1108 = vmatprep.mubr.bf16.mxu0 0
        %1109 = vmatmul.mubr.bf16.gmra.mrb[0].mxu0 %v956
        %v1110 = vpop.f32.mrb[0].mxu0
        %v1111 = vadd.f32 0.0, %v1110
        %v1112 = vpop.f32.mrb[0].mxu0
        %v1113 = vpop.f32.mrb[0].mxu0
        %v1114 = vadd.f32 0.0, %v1113
        %v1115 = vpop.f32.mrb[0].mxu0
        %1116 = vmatprep.mubr.bf16.mxu0 0
        %1117 = vmatmul.mubr.bf16.gmra.mrb[0].mxu0 %v959
        %v1118 = vpop.f32.mrb[0].mxu0
        %v1119 = vadd.f32 0.0, %v1118
        %v1120 = vpop.f32.mrb[0].mxu0
        %v1121 = vpop.f32.mrb[0].mxu0
        %v1122 = vadd.f32 0.0, %v1121
        %v1123 = vpop.f32.mrb[0].mxu0
        %1124 = vdwg.mxu0
        %v1125 = vadd.f32 %v737, %v999
        %v1126 = vadd.f32 %v740, %v1002
        %v1127 = vadd.f32 %v745, %v1007
        %v1128 = vadd.f32 %v748, %v1010
        %v1129 = vadd.f32 %v753, %v1015
        %v1130 = vadd.f32 %v756, %v1018
        %v1131 = vadd.f32 %v761, %v1023
        %v1132 = vadd.f32 %v764, %v1026
        %v1133 = vadd.f32 %v769, %v1031
        %v1134 = vadd.f32 %v772, %v1034
        %v1135 = vadd.f32 %v777, %v1039
        %v1136 = vadd.f32 %v780, %v1042
        %v1137 = vadd.f32 %v785, %v1047
        %v1138 = vadd.f32 %v788, %v1050
        %v1139 = vadd.f32 %v793, %v1055
        %v1140 = vadd.f32 %v796, %v1058
        %v1141 = vadd.f32 %v801, %v1063
        %v1142 = vadd.f32 %v804, %v1066
        %v1143 = vadd.f32 %v809, %v1071
        %v1144 = vadd.f32 %v812, %v1074
        %v1145 = vadd.f32 %v817, %v1079
        %v1146 = vadd.f32 %v820, %v1082
        %v1147 = vadd.f32 %v825, %v1087
        %v1148 = vadd.f32 %v828, %v1090
        %v1149 = vadd.f32 %v833, %v1095
        %v1150 = vadd.f32 %v836, %v1098
        %v1151 = vadd.f32 %v841, %v1103
        %v1152 = vadd.f32 %v844, %v1106
        %v1153 = vadd.f32 %v849, %v1111
        %v1154 = vadd.f32 %v852, %v1114
        %v1155 = vadd.f32 %v857, %v1119
        %v1156 = vadd.f32 %v860, %v1122
        %v1157 = vld [vmem:[%s306] sm:$0xff]
        %v1158 = vld [vmem:[%s306 + $0x8] sm:$0xff]
        %v1159 = vld [vmem:[%s306 + $0x18] sm:$0xff]
        %v1160 = vld [vmem:[%s306 + $0x20] sm:$0xff]
        %v1161 = vld [vmem:[%s306 + $0x30] sm:$0xff]
        %v1162 = vld [vmem:[%s306 + $0x38] sm:$0xff]
        %v1163 = vld [vmem:[%s306 + $0x48] sm:$0xff]
        %v1164 = vld [vmem:[%s306 + $0x50] sm:$0xff]
        %v1165 = vld [vmem:[%s306 + $0x60] sm:$0xff]
        %v1166 = vld [vmem:[%s306 + $0x68] sm:$0xff]
        %v1167 = vld [vmem:[%s306 + $0x78] sm:$0xff]
        %v1168 = vld [vmem:[%s306 + $0x80] sm:$0xff]
        %v1169 = vld [vmem:[%s306 + $0x90] sm:$0xff]
        %v1170 = vld [vmem:[%s306 + $0x98] sm:$0xff]
        %v1171 = vld [vmem:[%s306 + $0xa8] sm:$0xff]
        %v1172 = vld [vmem:[%s306 + $0xb0] sm:$0xff]
        %v1173 = vld [vmem:[%s306 + $0xc0] sm:$0xff]
        %v1174 = vld [vmem:[%s306 + $0xc8] sm:$0xff]
        %v1175 = vld [vmem:[%s306 + $0xd8] sm:$0xff]
        %v1176 = vld [vmem:[%s306 + $0xe0] sm:$0xff]
        %v1177 = vld [vmem:[%s306 + $0xf0] sm:$0xff]
        %v1178 = vld [vmem:[%s306 + $0xf8] sm:$0xff]
        %v1179 = vld [vmem:[%s306 + $0x108] sm:$0xff]
        %v1180 = vld [vmem:[%s306 + $0x110] sm:$0xff]
        %v1181 = vld [vmem:[%s306 + $0x120] sm:$0xff]
        %v1182 = vld [vmem:[%s306 + $0x128] sm:$0xff]
        %v1183 = vld [vmem:[%s306 + $0x138] sm:$0xff]
        %v1184 = vld [vmem:[%s306 + $0x140] sm:$0xff]
        %v1185 = vld [vmem:[%s306 + $0x150] sm:$0xff]
        %v1186 = vld [vmem:[%s306 + $0x158] sm:$0xff]
        %v1187 = vld [vmem:[%s306 + $0x168] sm:$0xff]
        %v1188 = vld [vmem:[%s306 + $0x170] sm:$0xff]
        %v1189 = vpack.c.bf16 %v1158, %v1157
        %v1190 = vpack.c.bf16 %v1160, %v1159
        %v1191 = vpack.c.bf16 %v1162, %v1161
        %v1192 = vpack.c.bf16 %v1164, %v1163
        %v1193 = vpack.c.bf16 %v1166, %v1165
        %v1194 = vpack.c.bf16 %v1168, %v1167
        %v1195 = vpack.c.bf16 %v1170, %v1169
        %v1196 = vpack.c.bf16 %v1172, %v1171
        %v1197 = vpack.c.bf16 %v1174, %v1173
        %v1198 = vpack.c.bf16 %v1176, %v1175
        %v1199 = vpack.c.bf16 %v1178, %v1177
        %v1200 = vpack.c.bf16 %v1180, %v1179
        %v1201 = vpack.c.bf16 %v1182, %v1181
        %v1202 = vpack.c.bf16 %v1184, %v1183
        %v1203 = vpack.c.bf16 %v1186, %v1185
        %v1204 = vpack.c.bf16 %v1188, %v1187
        %s1205 = scalar_lea.vmem %s1, 6
        %v1206 = vld [vmem:[%s1205] sm:$0x3]
        %v1208 = vsel %vm218, %v1189, 0
        %v1211 = vsel %vm218, %v1190, 0
        %v1214 = vsel %vm218, %v1191, 0
        %v1217 = vsel %vm218, %v1192, 0
        %v1220 = vsel %vm218, %v1193, 0
        %v1223 = vsel %vm218, %v1194, 0
        %v1226 = vsel %vm218, %v1195, 0
        %v1229 = vsel %vm218, %v1196, 0
        %v1232 = vsel %vm218, %v1197, 0
        %v1235 = vsel %vm218, %v1198, 0
        %v1238 = vsel %vm218, %v1199, 0
        %v1241 = vsel %vm218, %v1200, 0
        %v1244 = vsel %vm218, %v1201, 0
        %v1247 = vsel %vm218, %v1202, 0
        %v1250 = vsel %vm218, %v1203, 0
        %v1253 = vsel %vm218, %v1204, 0
        %v1256 = vsel %vm486, %v1206, 0
        %1258 = vmatprep.subr.bf16.mxu0 0
        %1259 = vmatpush1.bf16.msra.mxu0 %v1256
        %1260 = vmatprep.subr.bf16.mxu0 0
        %1261 = vmatpush1.bf16.msra.mxu0 0
        %1262 = vmatprep.subr.bf16.mxu0 0
        %1263 = vmatpush1.bf16.msra.mxu0 0
        %1264 = vmatprep.subr.bf16.mxu0 0
        %1265 = vmatpush1.bf16.msra.mxu0 0
        %1266 = vmatprep.subr.bf16.mxu0 0
        %1267 = vmatpush1.bf16.msra.mxu0 0
        %1268 = vmatprep.subr.bf16.mxu0 0
        %1269 = vmatpush1.bf16.msra.mxu0 0
        %1270 = vmatprep.subr.bf16.mxu0 0
        %1271 = vmatpush1.bf16.msra.mxu0 0
        %1272 = vmatprep.subr.bf16.mxu0 0
        %1273 = vmatpush1.bf16.msra.mxu0 0
        %1274 = vmatprep.subr.bf16.mxu0 0
        %1275 = vmatpush1.bf16.msra.mxu0 0
        %1276 = vmatprep.subr.bf16.mxu0 0
        %1277 = vmatpush1.bf16.msra.mxu0 0
        %1278 = vmatprep.subr.bf16.mxu0 0
        %1279 = vmatpush1.bf16.msra.mxu0 0
        %1280 = vmatprep.subr.bf16.mxu0 0
        %1281 = vmatpush1.bf16.msra.mxu0 0
        %1282 = vmatprep.subr.bf16.mxu0 0
        %1283 = vmatpush1.bf16.msra.mxu0 0
        %1284 = vmatprep.subr.bf16.mxu0 0
        %1285 = vmatpush1.bf16.msra.mxu0 0
        %1286 = vmatprep.subr.bf16.mxu0 0
        %1287 = vmatpush1.bf16.msra.mxu0 0
        %1288 = vmatprep.subr.bf16.mxu0 0
        %1289 = vmatpush1.bf16.msra.mxu0 0
        %1290 = vmatprep.mubr.bf16.mxu0 0
        %1291 = vmatmul.mubr.bf16.gmra.mrb[0].mxu0 %v1208
        %v1292 = vpop.f32.mrb[0].mxu0
        %v1293 = vadd.f32 0.0, %v1292
        %v1294 = vpop.f32.mrb[0].mxu0
        %v1295 = vpop.f32.mrb[0].mxu0
        %v1296 = vadd.f32 0.0, %v1295
        %v1297 = vpop.f32.mrb[0].mxu0
        %1298 = vmatprep.mubr.bf16.mxu0 0
        %1299 = vmatmul.mubr.bf16.gmra.mrb[0].mxu0 %v1211
        %v1300 = vpop.f32.mrb[0].mxu0
        %v1301 = vadd.f32 0.0, %v1300
        %v1302 = vpop.f32.mrb[0].mxu0
        %v1303 = vpop.f32.mrb[0].mxu0
        %v1304 = vadd.f32 0.0, %v1303
        %v1305 = vpop.f32.mrb[0].mxu0
        %1306 = vmatprep.mubr.bf16.mxu0 0
        %1307 = vmatmul.mubr.bf16.gmra.mrb[0].mxu0 %v1214
        %v1308 = vpop.f32.mrb[0].mxu0
        %v1309 = vadd.f32 0.0, %v1308
        %v1310 = vpop.f32.mrb[0].mxu0
        %v1311 = vpop.f32.mrb[0].mxu0
        %v1312 = vadd.f32 0.0, %v1311
        %v1313 = vpop.f32.mrb[0].mxu0
        %1314 = vmatprep.mubr.bf16.mxu0 0
        %1315 = vmatmul.mubr.bf16.gmra.mrb[0].mxu0 %v1217
        %v1316 = vpop.f32.mrb[0].mxu0
        %v1317 = vadd.f32 0.0, %v1316
        %v1318 = vpop.f32.mrb[0].mxu0
        %v1319 = vpop.f32.mrb[0].mxu0
        %v1320 = vadd.f32 0.0, %v1319
        %v1321 = vpop.f32.mrb[0].mxu0
        %1322 = vmatprep.mubr.bf16.mxu0 0
        %1323 = vmatmul.mubr.bf16.gmra.mrb[0].mxu0 %v1220
        %v1324 = vpop.f32.mrb[0].mxu0
        %v1325 = vadd.f32 0.0, %v1324
        %v1326 = vpop.f32.mrb[0].mxu0
        %v1327 = vpop.f32.mrb[0].mxu0
        %v1328 = vadd.f32 0.0, %v1327
        %v1329 = vpop.f32.mrb[0].mxu0
        %1330 = vmatprep.mubr.bf16.mxu0 0
        %1331 = vmatmul.mubr.bf16.gmra.mrb[0].mxu0 %v1223
        %v1332 = vpop.f32.mrb[0].mxu0
        %v1333 = vadd.f32 0.0, %v1332
        %v1334 = vpop.f32.mrb[0].mxu0
        %v1335 = vpop.f32.mrb[0].mxu0
        %v1336 = vadd.f32 0.0, %v1335
        %v1337 = vpop.f32.mrb[0].mxu0
        %1338 = vmatprep.mubr.bf16.mxu0 0
        %1339 = vmatmul.mubr.bf16.gmra.mrb[0].mxu0 %v1226
        %v1340 = vpop.f32.mrb[0].mxu0
        %v1341 = vadd.f32 0.0, %v1340
        %v1342 = vpop.f32.mrb[0].mxu0
        %v1343 = vpop.f32.mrb[0].mxu0
        %v1344 = vadd.f32 0.0, %v1343
        %v1345 = vpop.f32.mrb[0].mxu0
        %1346 = vmatprep.mubr.bf16.mxu0 0
        %1347 = vmatmul.mubr.bf16.gmra.mrb[0].mxu0 %v1229
        %v1348 = vpop.f32.mrb[0].mxu0
        %v1349 = vadd.f32 0.0, %v1348
        %v1350 = vpop.f32.mrb[0].mxu0
        %v1351 = vpop.f32.mrb[0].mxu0
        %v1352 = vadd.f32 0.0, %v1351
        %v1353 = vpop.f32.mrb[0].mxu0
        %1354 = vmatprep.mubr.bf16.mxu0 0
        %1355 = vmatmul.mubr.bf16.gmra.mrb[0].mxu0 %v1232
        %v1356 = vpop.f32.mrb[0].mxu0
        %v1357 = vadd.f32 0.0, %v1356
        %v1358 = vpop.f32.mrb[0].mxu0
        %v1359 = vpop.f32.mrb[0].mxu0
        %v1360 = vadd.f32 0.0, %v1359
        %v1361 = vpop.f32.mrb[0].mxu0
        %1362 = vmatprep.mubr.bf16.mxu0 0
        %1363 = vmatmul.mubr.bf16.gmra.mrb[0].mxu0 %v1235
        %v1364 = vpop.f32.mrb[0].mxu0
        %v1365 = vadd.f32 0.0, %v1364
        %v1366 = vpop.f32.mrb[0].mxu0
        %v1367 = vpop.f32.mrb[0].mxu0
        %v1368 = vadd.f32 0.0, %v1367
        %v1369 = vpop.f32.mrb[0].mxu0
        %1370 = vmatprep.mubr.bf16.mxu0 0
        %1371 = vmatmul.mubr.bf16.gmra.mrb[0].mxu0 %v1238
        %v1372 = vpop.f32.mrb[0].mxu0
        %v1373 = vadd.f32 0.0, %v1372
        %v1374 = vpop.f32.mrb[0].mxu0
        %v1375 = vpop.f32.mrb[0].mxu0
        %v1376 = vadd.f32 0.0, %v1375
        %v1377 = vpop.f32.mrb[0].mxu0
        %1378 = vmatprep.mubr.bf16.mxu0 0
        %1379 = vmatmul.mubr.bf16.gmra.mrb[0].mxu0 %v1241
        %v1380 = vpop.f32.mrb[0].mxu0
        %v1381 = vadd.f32 0.0, %v1380
        %v1382 = vpop.f32.mrb[0].mxu0
        %v1383 = vpop.f32.mrb[0].mxu0
        %v1384 = vadd.f32 0.0, %v1383
        %v1385 = vpop.f32.mrb[0].mxu0
        %1386 = vmatprep.mubr.bf16.mxu0 0
        %1387 = vmatmul.mubr.bf16.gmra.mrb[0].mxu0 %v1244
        %v1388 = vpop.f32.mrb[0].mxu0
        %v1389 = vadd.f32 0.0, %v1388
        %v1390 = vpop.f32.mrb[0].mxu0
        %v1391 = vpop.f32.mrb[0].mxu0
        %v1392 = vadd.f32 0.0, %v1391
        %v1393 = vpop.f32.mrb[0].mxu0
        %1394 = vmatprep.mubr.bf16.mxu0 0
        %1395 = vmatmul.mubr.bf16.gmra.mrb[0].mxu0 %v1247
        %v1396 = vpop.f32.mrb[0].mxu0
        %v1397 = vadd.f32 0.0, %v1396
        %v1398 = vpop.f32.mrb[0].mxu0
        %v1399 = vpop.f32.mrb[0].mxu0
        %v1400 = vadd.f32 0.0, %v1399
        %v1401 = vpop.f32.mrb[0].mxu0
        %1402 = vmatprep.mubr.bf16.mxu0 0
        %1403 = vmatmul.mubr.bf16.gmra.mrb[0].mxu0 %v1250
        %v1404 = vpop.f32.mrb[0].mxu0
        %v1405 = vadd.f32 0.0, %v1404
        %v1406 = vpop.f32.mrb[0].mxu0
        %v1407 = vpop.f32.mrb[0].mxu0
        %v1408 = vadd.f32 0.0, %v1407
        %v1409 = vpop.f32.mrb[0].mxu0
        %1410 = vmatprep.mubr.bf16.mxu0 0
        %1411 = vmatmul.mubr.bf16.gmra.mrb[0].mxu0 %v1253
        %v1412 = vpop.f32.mrb[0].mxu0
        %v1413 = vadd.f32 0.0, %v1412
        %v1414 = vpop.f32.mrb[0].mxu0
        %v1415 = vpop.f32.mrb[0].mxu0
        %v1416 = vadd.f32 0.0, %v1415
        %v1417 = vpop.f32.mrb[0].mxu0
        %1418 = vdwg.mxu0
        %v1419 = vadd.f32 %v1125, %v1293
        %v1420 = vadd.f32 %v1126, %v1296
        %v1421 = vadd.f32 %v1127, %v1301
        %v1422 = vadd.f32 %v1128, %v1304
        %v1423 = vadd.f32 %v1129, %v1309
        %v1424 = vadd.f32 %v1130, %v1312
        %v1425 = vadd.f32 %v1131, %v1317
        %v1426 = vadd.f32 %v1132, %v1320
        %v1427 = vadd.f32 %v1133, %v1325
        %v1428 = vadd.f32 %v1134, %v1328
        %v1429 = vadd.f32 %v1135, %v1333
        %v1430 = vadd.f32 %v1136, %v1336
        %v1431 = vadd.f32 %v1137, %v1341
        %v1432 = vadd.f32 %v1138, %v1344
        %v1433 = vadd.f32 %v1139, %v1349
        %v1434 = vadd.f32 %v1140, %v1352
        %v1435 = vadd.f32 %v1141, %v1357
        %v1436 = vadd.f32 %v1142, %v1360
        %v1437 = vadd.f32 %v1143, %v1365
        %v1438 = vadd.f32 %v1144, %v1368
        %v1439 = vadd.f32 %v1145, %v1373
        %v1440 = vadd.f32 %v1146, %v1376
        %v1441 = vadd.f32 %v1147, %v1381
        %v1442 = vadd.f32 %v1148, %v1384
        %v1443 = vadd.f32 %v1149, %v1389
        %v1444 = vadd.f32 %v1150, %v1392
        %v1445 = vadd.f32 %v1151, %v1397
        %v1446 = vadd.f32 %v1152, %v1400
        %v1447 = vadd.f32 %v1153, %v1405
        %v1448 = vadd.f32 %v1154, %v1408
        %v1449 = vadd.f32 %v1155, %v1413
        %v1450 = vadd.f32 %v1156, %v1416
        %v1451 = vld [vmem:[%s306 + $0x1] sm:$0xff]
        %v1452 = vld [vmem:[%s306 + $0x9] sm:$0xff]
        %v1453 = vld [vmem:[%s306 + $0x19] sm:$0xff]
        %v1454 = vld [vmem:[%s306 + $0x21] sm:$0xff]
        %v1455 = vld [vmem:[%s306 + $0x31] sm:$0xff]
        %v1456 = vld [vmem:[%s306 + $0x39] sm:$0xff]
        %v1457 = vld [vmem:[%s306 + $0x49] sm:$0xff]
        %v1458 = vld [vmem:[%s306 + $0x51] sm:$0xff]
        %v1459 = vld [vmem:[%s306 + $0x61] sm:$0xff]
        %v1460 = vld [vmem:[%s306 + $0x69] sm:$0xff]
        %v1461 = vld [vmem:[%s306 + $0x79] sm:$0xff]
        %v1462 = vld [vmem:[%s306 + $0x81] sm:$0xff]
        %v1463 = vld [vmem:[%s306 + $0x91] sm:$0xff]
        %v1464 = vld [vmem:[%s306 + $0x99] sm:$0xff]
        %v1465 = vld [vmem:[%s306 + $0xa9] sm:$0xff]
        %v1466 = vld [vmem:[%s306 + $0xb1] sm:$0xff]
        %v1467 = vld [vmem:[%s306 + $0xc1] sm:$0xff]
        %v1468 = vld [vmem:[%s306 + $0xc9] sm:$0xff]
        %v1469 = vld [vmem:[%s306 + $0xd9] sm:$0xff]
        %v1470 = vld [vmem:[%s306 + $0xe1] sm:$0xff]
        %v1471 = vld [vmem:[%s306 + $0xf1] sm:$0xff]
        %v1472 = vld [vmem:[%s306 + $0xf9] sm:$0xff]
        %v1473 = vld [vmem:[%s306 + $0x109] sm:$0xff]
        %v1474 = vld [vmem:[%s306 + $0x111] sm:$0xff]
        %v1475 = vld [vmem:[%s306 + $0x121] sm:$0xff]
        %v1476 = vld [vmem:[%s306 + $0x129] sm:$0xff]
        %v1477 = vld [vmem:[%s306 + $0x139] sm:$0xff]
        %v1478 = vld [vmem:[%s306 + $0x141] sm:$0xff]
        %v1479 = vld [vmem:[%s306 + $0x151] sm:$0xff]
        %v1480 = vld [vmem:[%s306 + $0x159] sm:$0xff]
        %v1481 = vld [vmem:[%s306 + $0x169] sm:$0xff]
        %v1482 = vld [vmem:[%s306 + $0x171] sm:$0xff]
        %v1483 = vpack.c.bf16 %v1452, %v1451
        %v1484 = vpack.c.bf16 %v1454, %v1453
        %v1485 = vpack.c.bf16 %v1456, %v1455
        %v1486 = vpack.c.bf16 %v1458, %v1457
        %v1487 = vpack.c.bf16 %v1460, %v1459
        %v1488 = vpack.c.bf16 %v1462, %v1461
        %v1489 = vpack.c.bf16 %v1464, %v1463
        %v1490 = vpack.c.bf16 %v1466, %v1465
        %v1491 = vpack.c.bf16 %v1468, %v1467
        %v1492 = vpack.c.bf16 %v1470, %v1469
        %v1493 = vpack.c.bf16 %v1472, %v1471
        %v1494 = vpack.c.bf16 %v1474, %v1473
        %v1495 = vpack.c.bf16 %v1476, %v1475
        %v1496 = vpack.c.bf16 %v1478, %v1477
        %v1497 = vpack.c.bf16 %v1480, %v1479
        %v1498 = vpack.c.bf16 %v1482, %v1481
        %s1499 = scalar_lea.vmem %s1, 8
        %v1500 = vld [vmem:[%s1499] sm:$0x3]
        %v1502 = vsel %vm218, %v1483, 0
        %v1505 = vsel %vm218, %v1484, 0
        %v1508 = vsel %vm218, %v1485, 0
        %v1511 = vsel %vm218, %v1486, 0
        %v1514 = vsel %vm218, %v1487, 0
        %v1517 = vsel %vm218, %v1488, 0
        %v1520 = vsel %vm218, %v1489, 0
        %v1523 = vsel %vm218, %v1490, 0
        %v1526 = vsel %vm218, %v1491, 0
        %v1529 = vsel %vm218, %v1492, 0
        %v1532 = vsel %vm218, %v1493, 0
        %v1535 = vsel %vm218, %v1494, 0
        %v1538 = vsel %vm218, %v1495, 0
        %v1541 = vsel %vm218, %v1496, 0
        %v1544 = vsel %vm218, %v1497, 0
        %v1547 = vsel %vm218, %v1498, 0
        %v1550 = vsel %vm486, %v1500, 0
        %1552 = vmatprep.subr.bf16.mxu0 0
        %1553 = vmatpush1.bf16.msra.mxu0 %v1550
        %1554 = vmatprep.subr.bf16.mxu0 0
        %1555 = vmatpush1.bf16.msra.mxu0 0
        %1556 = vmatprep.subr.bf16.mxu0 0
        %1557 = vmatpush1.bf16.msra.mxu0 0
        %1558 = vmatprep.subr.bf16.mxu0 0
        %1559 = vmatpush1.bf16.msra.mxu0 0
        %1560 = vmatprep.subr.bf16.mxu0 0
        %1561 = vmatpush1.bf16.msra.mxu0 0
        %1562 = vmatprep.subr.bf16.mxu0 0
        %1563 = vmatpush1.bf16.msra.mxu0 0
        %1564 = vmatprep.subr.bf16.mxu0 0
        %1565 = vmatpush1.bf16.msra.mxu0 0
        %1566 = vmatprep.subr.bf16.mxu0 0
        %1567 = vmatpush1.bf16.msra.mxu0 0
        %1568 = vmatprep.subr.bf16.mxu0 0
        %1569 = vmatpush1.bf16.msra.mxu0 0
        %1570 = vmatprep.subr.bf16.mxu0 0
        %1571 = vmatpush1.bf16.msra.mxu0 0
        %1572 = vmatprep.subr.bf16.mxu0 0
        %1573 = vmatpush1.bf16.msra.mxu0 0
        %1574 = vmatprep.subr.bf16.mxu0 0
        %1575 = vmatpush1.bf16.msra.mxu0 0
        %1576 = vmatprep.subr.bf16.mxu0 0
        %1577 = vmatpush1.bf16.msra.mxu0 0
        %1578 = vmatprep.subr.bf16.mxu0 0
        %1579 = vmatpush1.bf16.msra.mxu0 0
        %1580 = vmatprep.subr.bf16.mxu0 0
        %1581 = vmatpush1.bf16.msra.mxu0 0
        %1582 = vmatprep.subr.bf16.mxu0 0
        %1583 = vmatpush1.bf16.msra.mxu0 0
        %1584 = vmatprep.mubr.bf16.mxu0 0
        %1585 = vmatmul.mubr.bf16.gmra.mrb[0].mxu0 %v1502
        %v1586 = vpop.f32.mrb[0].mxu0
        %v1587 = vadd.f32 0.0, %v1586
        %v1588 = vpop.f32.mrb[0].mxu0
        %v1589 = vpop.f32.mrb[0].mxu0
        %v1590 = vadd.f32 0.0, %v1589
        %v1591 = vpop.f32.mrb[0].mxu0
        %1592 = vmatprep.mubr.bf16.mxu0 0
        %1593 = vmatmul.mubr.bf16.gmra.mrb[0].mxu0 %v1505
        %v1594 = vpop.f32.mrb[0].mxu0
        %v1595 = vadd.f32 0.0, %v1594
        %v1596 = vpop.f32.mrb[0].mxu0
        %v1597 = vpop.f32.mrb[0].mxu0
        %v1598 = vadd.f32 0.0, %v1597
        %v1599 = vpop.f32.mrb[0].mxu0
        %1600 = vmatprep.mubr.bf16.mxu0 0
        %1601 = vmatmul.mubr.bf16.gmra.mrb[0].mxu0 %v1508
        %v1602 = vpop.f32.mrb[0].mxu0
        %v1603 = vadd.f32 0.0, %v1602
        %v1604 = vpop.f32.mrb[0].mxu0
        %v1605 = vpop.f32.mrb[0].mxu0
        %v1606 = vadd.f32 0.0, %v1605
        %v1607 = vpop.f32.mrb[0].mxu0
        %1608 = vmatprep.mubr.bf16.mxu0 0
        %1609 = vmatmul.mubr.bf16.gmra.mrb[0].mxu0 %v1511
        %v1610 = vpop.f32.mrb[0].mxu0
        %v1611 = vadd.f32 0.0, %v1610
        %v1612 = vpop.f32.mrb[0].mxu0
        %v1613 = vpop.f32.mrb[0].mxu0
        %v1614 = vadd.f32 0.0, %v1613
        %v1615 = vpop.f32.mrb[0].mxu0
        %1616 = vmatprep.mubr.bf16.mxu0 0
        %1617 = vmatmul.mubr.bf16.gmra.mrb[0].mxu0 %v1514
        %v1618 = vpop.f32.mrb[0].mxu0
        %v1619 = vadd.f32 0.0, %v1618
        %v1620 = vpop.f32.mrb[0].mxu0
        %v1621 = vpop.f32.mrb[0].mxu0
        %v1622 = vadd.f32 0.0, %v1621
        %v1623 = vpop.f32.mrb[0].mxu0
        %1624 = vmatprep.mubr.bf16.mxu0 0
        %1625 = vmatmul.mubr.bf16.gmra.mrb[0].mxu0 %v1517
        %v1626 = vpop.f32.mrb[0].mxu0
        %v1627 = vadd.f32 0.0, %v1626
        %v1628 = vpop.f32.mrb[0].mxu0
        %v1629 = vpop.f32.mrb[0].mxu0
        %v1630 = vadd.f32 0.0, %v1629
        %v1631 = vpop.f32.mrb[0].mxu0
        %1632 = vmatprep.mubr.bf16.mxu0 0
        %1633 = vmatmul.mubr.bf16.gmra.mrb[0].mxu0 %v1520
        %v1634 = vpop.f32.mrb[0].mxu0
        %v1635 = vadd.f32 0.0, %v1634
        %v1636 = vpop.f32.mrb[0].mxu0
        %v1637 = vpop.f32.mrb[0].mxu0
        %v1638 = vadd.f32 0.0, %v1637
        %v1639 = vpop.f32.mrb[0].mxu0
        %1640 = vmatprep.mubr.bf16.mxu0 0
        %1641 = vmatmul.mubr.bf16.gmra.mrb[0].mxu0 %v1523
        %v1642 = vpop.f32.mrb[0].mxu0
        %v1643 = vadd.f32 0.0, %v1642
        %v1644 = vpop.f32.mrb[0].mxu0
        %v1645 = vpop.f32.mrb[0].mxu0
        %v1646 = vadd.f32 0.0, %v1645
        %v1647 = vpop.f32.mrb[0].mxu0
        %1648 = vmatprep.mubr.bf16.mxu0 0
        %1649 = vmatmul.mubr.bf16.gmra.mrb[0].mxu0 %v1526
        %v1650 = vpop.f32.mrb[0].mxu0
        %v1651 = vadd.f32 0.0, %v1650
        %v1652 = vpop.f32.mrb[0].mxu0
        %v1653 = vpop.f32.mrb[0].mxu0
        %v1654 = vadd.f32 0.0, %v1653
        %v1655 = vpop.f32.mrb[0].mxu0
        %1656 = vmatprep.mubr.bf16.mxu0 0
        %1657 = vmatmul.mubr.bf16.gmra.mrb[0].mxu0 %v1529
        %v1658 = vpop.f32.mrb[0].mxu0
        %v1659 = vadd.f32 0.0, %v1658
        %v1660 = vpop.f32.mrb[0].mxu0
        %v1661 = vpop.f32.mrb[0].mxu0
        %v1662 = vadd.f32 0.0, %v1661
        %v1663 = vpop.f32.mrb[0].mxu0
        %1664 = vmatprep.mubr.bf16.mxu0 0
        %1665 = vmatmul.mubr.bf16.gmra.mrb[0].mxu0 %v1532
        %v1666 = vpop.f32.mrb[0].mxu0
        %v1667 = vadd.f32 0.0, %v1666
        %v1668 = vpop.f32.mrb[0].mxu0
        %v1669 = vpop.f32.mrb[0].mxu0
        %v1670 = vadd.f32 0.0, %v1669
        %v1671 = vpop.f32.mrb[0].mxu0
        %1672 = vmatprep.mubr.bf16.mxu0 0
        %1673 = vmatmul.mubr.bf16.gmra.mrb[0].mxu0 %v1535
        %v1674 = vpop.f32.mrb[0].mxu0
        %v1675 = vadd.f32 0.0, %v1674
        %v1676 = vpop.f32.mrb[0].mxu0
        %v1677 = vpop.f32.mrb[0].mxu0
        %v1678 = vadd.f32 0.0, %v1677
        %v1679 = vpop.f32.mrb[0].mxu0
        %1680 = vmatprep.mubr.bf16.mxu0 0
        %1681 = vmatmul.mubr.bf16.gmra.mrb[0].mxu0 %v1538
        %v1682 = vpop.f32.mrb[0].mxu0
        %v1683 = vadd.f32 0.0, %v1682
        %v1684 = vpop.f32.mrb[0].mxu0
        %v1685 = vpop.f32.mrb[0].mxu0
        %v1686 = vadd.f32 0.0, %v1685
        %v1687 = vpop.f32.mrb[0].mxu0
        %1688 = vmatprep.mubr.bf16.mxu0 0
        %1689 = vmatmul.mubr.bf16.gmra.mrb[0].mxu0 %v1541
        %v1690 = vpop.f32.mrb[0].mxu0
        %v1691 = vadd.f32 0.0, %v1690
        %v1692 = vpop.f32.mrb[0].mxu0
        %v1693 = vpop.f32.mrb[0].mxu0
        %v1694 = vadd.f32 0.0, %v1693
        %v1695 = vpop.f32.mrb[0].mxu0
        %1696 = vmatprep.mubr.bf16.mxu0 0
        %1697 = vmatmul.mubr.bf16.gmra.mrb[0].mxu0 %v1544
        %v1698 = vpop.f32.mrb[0].mxu0
        %v1699 = vadd.f32 0.0, %v1698
        %v1700 = vpop.f32.mrb[0].mxu0
        %v1701 = vpop.f32.mrb[0].mxu0
        %v1702 = vadd.f32 0.0, %v1701
        %v1703 = vpop.f32.mrb[0].mxu0
        %1704 = vmatprep.mubr.bf16.mxu0 0
        %1705 = vmatmul.mubr.bf16.gmra.mrb[0].mxu0 %v1547
        %v1706 = vpop.f32.mrb[0].mxu0
        %v1707 = vadd.f32 0.0, %v1706
        %v1708 = vpop.f32.mrb[0].mxu0
        %v1709 = vpop.f32.mrb[0].mxu0
        %v1710 = vadd.f32 0.0, %v1709
        %v1711 = vpop.f32.mrb[0].mxu0
        %1712 = vdwg.mxu0
        %v1713 = vadd.f32 %v1419, %v1587
        %v1714 = vadd.f32 %v1420, %v1590
        %v1715 = vadd.f32 %v1421, %v1595
        %v1716 = vadd.f32 %v1422, %v1598
        %v1717 = vadd.f32 %v1423, %v1603
        %v1718 = vadd.f32 %v1424, %v1606
        %v1719 = vadd.f32 %v1425, %v1611
        %v1720 = vadd.f32 %v1426, %v1614
        %v1721 = vadd.f32 %v1427, %v1619
        %v1722 = vadd.f32 %v1428, %v1622
        %v1723 = vadd.f32 %v1429, %v1627
        %v1724 = vadd.f32 %v1430, %v1630
        %v1725 = vadd.f32 %v1431, %v1635
        %v1726 = vadd.f32 %v1432, %v1638
        %v1727 = vadd.f32 %v1433, %v1643
        %v1728 = vadd.f32 %v1434, %v1646
        %v1729 = vadd.f32 %v1435, %v1651
        %v1730 = vadd.f32 %v1436, %v1654
        %v1731 = vadd.f32 %v1437, %v1659
        %v1732 = vadd.f32 %v1438, %v1662
        %v1733 = vadd.f32 %v1439, %v1667
        %v1734 = vadd.f32 %v1440, %v1670
        %v1735 = vadd.f32 %v1441, %v1675
        %v1736 = vadd.f32 %v1442, %v1678
        %v1737 = vadd.f32 %v1443, %v1683
        %v1738 = vadd.f32 %v1444, %v1686
        %v1739 = vadd.f32 %v1445, %v1691
        %v1740 = vadd.f32 %v1446, %v1694
        %v1741 = vadd.f32 %v1447, %v1699
        %v1742 = vadd.f32 %v1448, %v1702
        %v1743 = vadd.f32 %v1449, %v1707
        %v1744 = vadd.f32 %v1450, %v1710
        %v1745 = vld [vmem:[%s306 + $0x2] sm:$0xff]
        %v1746 = vld [vmem:[%s306 + $0xa] sm:$0xff]
        %v1747 = vld [vmem:[%s306 + $0x1a] sm:$0xff]
        %v1748 = vld [vmem:[%s306 + $0x22] sm:$0xff]
        %v1749 = vld [vmem:[%s306 + $0x32] sm:$0xff]
        %v1750 = vld [vmem:[%s306 + $0x3a] sm:$0xff]
        %v1751 = vld [vmem:[%s306 + $0x4a] sm:$0xff]
        %v1752 = vld [vmem:[%s306 + $0x52] sm:$0xff]
        %v1753 = vld [vmem:[%s306 + $0x62] sm:$0xff]
        %v1754 = vld [vmem:[%s306 + $0x6a] sm:$0xff]
        %v1755 = vld [vmem:[%s306 + $0x7a] sm:$0xff]
        %v1756 = vld [vmem:[%s306 + $0x82] sm:$0xff]
        %v1757 = vld [vmem:[%s306 + $0x92] sm:$0xff]
        %v1758 = vld [vmem:[%s306 + $0x9a] sm:$0xff]
        %v1759 = vld [vmem:[%s306 + $0xaa] sm:$0xff]
        %v1760 = vld [vmem:[%s306 + $0xb2] sm:$0xff]
        %v1761 = vld [vmem:[%s306 + $0xc2] sm:$0xff]
        %v1762 = vld [vmem:[%s306 + $0xca] sm:$0xff]
        %v1763 = vld [vmem:[%s306 + $0xda] sm:$0xff]
        %v1764 = vld [vmem:[%s306 + $0xe2] sm:$0xff]
        %v1765 = vld [vmem:[%s306 + $0xf2] sm:$0xff]
        %v1766 = vld [vmem:[%s306 + $0xfa] sm:$0xff]
        %v1767 = vld [vmem:[%s306 + $0x10a] sm:$0xff]
        %v1768 = vld [vmem:[%s306 + $0x112] sm:$0xff]
        %v1769 = vld [vmem:[%s306 + $0x122] sm:$0xff]
        %v1770 = vld [vmem:[%s306 + $0x12a] sm:$0xff]
        %v1771 = vld [vmem:[%s306 + $0x13a] sm:$0xff]
        %v1772 = vld [vmem:[%s306 + $0x142] sm:$0xff]
        %v1773 = vld [vmem:[%s306 + $0x152] sm:$0xff]
        %v1774 = vld [vmem:[%s306 + $0x15a] sm:$0xff]
        %v1775 = vld [vmem:[%s306 + $0x16a] sm:$0xff]
        %v1776 = vld [vmem:[%s306 + $0x172] sm:$0xff]
        %v1777 = vpack.c.bf16 %v1746, %v1745
        %v1778 = vpack.c.bf16 %v1748, %v1747
        %v1779 = vpack.c.bf16 %v1750, %v1749
        %v1780 = vpack.c.bf16 %v1752, %v1751
        %v1781 = vpack.c.bf16 %v1754, %v1753
        %v1782 = vpack.c.bf16 %v1756, %v1755
        %v1783 = vpack.c.bf16 %v1758, %v1757
        %v1784 = vpack.c.bf16 %v1760, %v1759
        %v1785 = vpack.c.bf16 %v1762, %v1761
        %v1786 = vpack.c.bf16 %v1764, %v1763
        %v1787 = vpack.c.bf16 %v1766, %v1765
        %v1788 = vpack.c.bf16 %v1768, %v1767
        %v1789 = vpack.c.bf16 %v1770, %v1769
        %v1790 = vpack.c.bf16 %v1772, %v1771
        %v1791 = vpack.c.bf16 %v1774, %v1773
        %v1792 = vpack.c.bf16 %v1776, %v1775
        %s1793 = scalar_lea.vmem %s1, 10
        %v1794 = vld [vmem:[%s1793] sm:$0x3]
        %v1796 = vsel %vm218, %v1777, 0
        %v1799 = vsel %vm218, %v1778, 0
        %v1802 = vsel %vm218, %v1779, 0
        %v1805 = vsel %vm218, %v1780, 0
        %v1808 = vsel %vm218, %v1781, 0
        %v1811 = vsel %vm218, %v1782, 0
        %v1814 = vsel %vm218, %v1783, 0
        %v1817 = vsel %vm218, %v1784, 0
        %v1820 = vsel %vm218, %v1785, 0
        %v1823 = vsel %vm218, %v1786, 0
        %v1826 = vsel %vm218, %v1787, 0
        %v1829 = vsel %vm218, %v1788, 0
        %v1832 = vsel %vm218, %v1789, 0
        %v1835 = vsel %vm218, %v1790, 0
        %v1838 = vsel %vm218, %v1791, 0
        %v1841 = vsel %vm218, %v1792, 0
        %v1844 = vsel %vm486, %v1794, 0
        %1846 = vmatprep.subr.bf16.mxu0 0
        %1847 = vmatpush1.bf16.msra.mxu0 %v1844
        %1848 = vmatprep.subr.bf16.mxu0 0
        %1849 = vmatpush1.bf16.msra.mxu0 0
        %1850 = vmatprep.subr.bf16.mxu0 0
        %1851 = vmatpush1.bf16.msra.mxu0 0
        %1852 = vmatprep.subr.bf16.mxu0 0
        %1853 = vmatpush1.bf16.msra.mxu0 0
        %1854 = vmatprep.subr.bf16.mxu0 0
        %1855 = vmatpush1.bf16.msra.mxu0 0
        %1856 = vmatprep.subr.bf16.mxu0 0
        %1857 = vmatpush1.bf16.msra.mxu0 0
        %1858 = vmatprep.subr.bf16.mxu0 0
        %1859 = vmatpush1.bf16.msra.mxu0 0
        %1860 = vmatprep.subr.bf16.mxu0 0
        %1861 = vmatpush1.bf16.msra.mxu0 0
        %1862 = vmatprep.subr.bf16.mxu0 0
        %1863 = vmatpush1.bf16.msra.mxu0 0
        %1864 = vmatprep.subr.bf16.mxu0 0
        %1865 = vmatpush1.bf16.msra.mxu0 0
        %1866 = vmatprep.subr.bf16.mxu0 0
        %1867 = vmatpush1.bf16.msra.mxu0 0
        %1868 = vmatprep.subr.bf16.mxu0 0
        %1869 = vmatpush1.bf16.msra.mxu0 0
        %1870 = vmatprep.subr.bf16.mxu0 0
        %1871 = vmatpush1.bf16.msra.mxu0 0
        %1872 = vmatprep.subr.bf16.mxu0 0
        %1873 = vmatpush1.bf16.msra.mxu0 0
        %1874 = vmatprep.subr.bf16.mxu0 0
        %1875 = vmatpush1.bf16.msra.mxu0 0
        %1876 = vmatprep.subr.bf16.mxu0 0
        %1877 = vmatpush1.bf16.msra.mxu0 0
        %1878 = vmatprep.mubr.bf16.mxu0 0
        %1879 = vmatmul.mubr.bf16.gmra.mrb[0].mxu0 %v1796
        %v1880 = vpop.f32.mrb[0].mxu0
        %v1881 = vadd.f32 0.0, %v1880
        %v1882 = vpop.f32.mrb[0].mxu0
        %v1883 = vpop.f32.mrb[0].mxu0
        %v1884 = vadd.f32 0.0, %v1883
        %v1885 = vpop.f32.mrb[0].mxu0
        %1886 = vmatprep.mubr.bf16.mxu0 0
        %1887 = vmatmul.mubr.bf16.gmra.mrb[0].mxu0 %v1799
        %v1888 = vpop.f32.mrb[0].mxu0
        %v1889 = vadd.f32 0.0, %v1888
        %v1890 = vpop.f32.mrb[0].mxu0
        %v1891 = vpop.f32.mrb[0].mxu0
        %v1892 = vadd.f32 0.0, %v1891
        %v1893 = vpop.f32.mrb[0].mxu0
        %1894 = vmatprep.mubr.bf16.mxu0 0
        %1895 = vmatmul.mubr.bf16.gmra.mrb[0].mxu0 %v1802
        %v1896 = vpop.f32.mrb[0].mxu0
        %v1897 = vadd.f32 0.0, %v1896
        %v1898 = vpop.f32.mrb[0].mxu0
        %v1899 = vpop.f32.mrb[0].mxu0
        %v1900 = vadd.f32 0.0, %v1899
        %v1901 = vpop.f32.mrb[0].mxu0
        %1902 = vmatprep.mubr.bf16.mxu0 0
        %1903 = vmatmul.mubr.bf16.gmra.mrb[0].mxu0 %v1805
        %v1904 = vpop.f32.mrb[0].mxu0
        %v1905 = vadd.f32 0.0, %v1904
        %v1906 = vpop.f32.mrb[0].mxu0
        %v1907 = vpop.f32.mrb[0].mxu0
        %v1908 = vadd.f32 0.0, %v1907
        %v1909 = vpop.f32.mrb[0].mxu0
        %1910 = vmatprep.mubr.bf16.mxu0 0
        %1911 = vmatmul.mubr.bf16.gmra.mrb[0].mxu0 %v1808
        %v1912 = vpop.f32.mrb[0].mxu0
        %v1913 = vadd.f32 0.0, %v1912
        %v1914 = vpop.f32.mrb[0].mxu0
        %v1915 = vpop.f32.mrb[0].mxu0
        %v1916 = vadd.f32 0.0, %v1915
        %v1917 = vpop.f32.mrb[0].mxu0
        %1918 = vmatprep.mubr.bf16.mxu0 0
        %1919 = vmatmul.mubr.bf16.gmra.mrb[0].mxu0 %v1811
        %v1920 = vpop.f32.mrb[0].mxu0
        %v1921 = vadd.f32 0.0, %v1920
        %v1922 = vpop.f32.mrb[0].mxu0
        %v1923 = vpop.f32.mrb[0].mxu0
        %v1924 = vadd.f32 0.0, %v1923
        %v1925 = vpop.f32.mrb[0].mxu0
        %1926 = vmatprep.mubr.bf16.mxu0 0
        %1927 = vmatmul.mubr.bf16.gmra.mrb[0].mxu0 %v1814
        %v1928 = vpop.f32.mrb[0].mxu0
        %v1929 = vadd.f32 0.0, %v1928
        %v1930 = vpop.f32.mrb[0].mxu0
        %v1931 = vpop.f32.mrb[0].mxu0
        %v1932 = vadd.f32 0.0, %v1931
        %v1933 = vpop.f32.mrb[0].mxu0
        %1934 = vmatprep.mubr.bf16.mxu0 0
        %1935 = vmatmul.mubr.bf16.gmra.mrb[0].mxu0 %v1817
        %v1936 = vpop.f32.mrb[0].mxu0
        %v1937 = vadd.f32 0.0, %v1936
        %v1938 = vpop.f32.mrb[0].mxu0
        %v1939 = vpop.f32.mrb[0].mxu0
        %v1940 = vadd.f32 0.0, %v1939
        %v1941 = vpop.f32.mrb[0].mxu0
        %1942 = vmatprep.mubr.bf16.mxu0 0
        %1943 = vmatmul.mubr.bf16.gmra.mrb[0].mxu0 %v1820
        %v1944 = vpop.f32.mrb[0].mxu0
        %v1945 = vadd.f32 0.0, %v1944
        %v1946 = vpop.f32.mrb[0].mxu0
        %v1947 = vpop.f32.mrb[0].mxu0
        %v1948 = vadd.f32 0.0, %v1947
        %v1949 = vpop.f32.mrb[0].mxu0
        %1950 = vmatprep.mubr.bf16.mxu0 0
        %1951 = vmatmul.mubr.bf16.gmra.mrb[0].mxu0 %v1823
        %v1952 = vpop.f32.mrb[0].mxu0
        %v1953 = vadd.f32 0.0, %v1952
        %v1954 = vpop.f32.mrb[0].mxu0
        %v1955 = vpop.f32.mrb[0].mxu0
        %v1956 = vadd.f32 0.0, %v1955
        %v1957 = vpop.f32.mrb[0].mxu0
        %1958 = vmatprep.mubr.bf16.mxu0 0
        %1959 = vmatmul.mubr.bf16.gmra.mrb[0].mxu0 %v1826
        %v1960 = vpop.f32.mrb[0].mxu0
        %v1961 = vadd.f32 0.0, %v1960
        %v1962 = vpop.f32.mrb[0].mxu0
        %v1963 = vpop.f32.mrb[0].mxu0
        %v1964 = vadd.f32 0.0, %v1963
        %v1965 = vpop.f32.mrb[0].mxu0
        %1966 = vmatprep.mubr.bf16.mxu0 0
        %1967 = vmatmul.mubr.bf16.gmra.mrb[0].mxu0 %v1829
        %v1968 = vpop.f32.mrb[0].mxu0
        %v1969 = vadd.f32 0.0, %v1968
        %v1970 = vpop.f32.mrb[0].mxu0
        %v1971 = vpop.f32.mrb[0].mxu0
        %v1972 = vadd.f32 0.0, %v1971
        %v1973 = vpop.f32.mrb[0].mxu0
        %1974 = vmatprep.mubr.bf16.mxu0 0
        %1975 = vmatmul.mubr.bf16.gmra.mrb[0].mxu0 %v1832
        %v1976 = vpop.f32.mrb[0].mxu0
        %v1977 = vadd.f32 0.0, %v1976
        %v1978 = vpop.f32.mrb[0].mxu0
        %v1979 = vpop.f32.mrb[0].mxu0
        %v1980 = vadd.f32 0.0, %v1979
        %v1981 = vpop.f32.mrb[0].mxu0
        %1982 = vmatprep.mubr.bf16.mxu0 0
        %1983 = vmatmul.mubr.bf16.gmra.mrb[0].mxu0 %v1835
        %v1984 = vpop.f32.mrb[0].mxu0
        %v1985 = vadd.f32 0.0, %v1984
        %v1986 = vpop.f32.mrb[0].mxu0
        %v1987 = vpop.f32.mrb[0].mxu0
        %v1988 = vadd.f32 0.0, %v1987
        %v1989 = vpop.f32.mrb[0].mxu0
        %1990 = vmatprep.mubr.bf16.mxu0 0
        %1991 = vmatmul.mubr.bf16.gmra.mrb[0].mxu0 %v1838
        %v1992 = vpop.f32.mrb[0].mxu0
        %v1993 = vadd.f32 0.0, %v1992
        %v1994 = vpop.f32.mrb[0].mxu0
        %v1995 = vpop.f32.mrb[0].mxu0
        %v1996 = vadd.f32 0.0, %v1995
        %v1997 = vpop.f32.mrb[0].mxu0
        %1998 = vmatprep.mubr.bf16.mxu0 0
        %1999 = vmatmul.mubr.bf16.gmra.mrb[0].mxu0 %v1841
        %v2000 = vpop.f32.mrb[0].mxu0
        %v2001 = vadd.f32 0.0, %v2000
        %v2002 = vpop.f32.mrb[0].mxu0
        %v2003 = vpop.f32.mrb[0].mxu0
        %v2004 = vadd.f32 0.0, %v2003
        %v2005 = vpop.f32.mrb[0].mxu0
        %2006 = vdwg.mxu0
        %v2007 = vadd.f32 %v1713, %v1881
        %v2008 = vadd.f32 %v1714, %v1884
        %v2009 = vadd.f32 %v1715, %v1889
        %v2010 = vadd.f32 %v1716, %v1892
        %v2011 = vadd.f32 %v1717, %v1897
        %v2012 = vadd.f32 %v1718, %v1900
        %v2013 = vadd.f32 %v1719, %v1905
        %v2014 = vadd.f32 %v1720, %v1908
        %v2015 = vadd.f32 %v1721, %v1913
        %v2016 = vadd.f32 %v1722, %v1916
        %v2017 = vadd.f32 %v1723, %v1921
        %v2018 = vadd.f32 %v1724, %v1924
        %v2019 = vadd.f32 %v1725, %v1929
        %v2020 = vadd.f32 %v1726, %v1932
        %v2021 = vadd.f32 %v1727, %v1937
        %v2022 = vadd.f32 %v1728, %v1940
        %v2023 = vadd.f32 %v1729, %v1945
        %v2024 = vadd.f32 %v1730, %v1948
        %v2025 = vadd.f32 %v1731, %v1953
        %v2026 = vadd.f32 %v1732, %v1956
        %v2027 = vadd.f32 %v1733, %v1961
        %v2028 = vadd.f32 %v1734, %v1964
        %v2029 = vadd.f32 %v1735, %v1969
        %v2030 = vadd.f32 %v1736, %v1972
        %v2031 = vadd.f32 %v1737, %v1977
        %v2032 = vadd.f32 %v1738, %v1980
        %v2033 = vadd.f32 %v1739, %v1985
        %v2034 = vadd.f32 %v1740, %v1988
        %v2035 = vadd.f32 %v1741, %v1993
        %v2036 = vadd.f32 %v1742, %v1996
        %v2037 = vadd.f32 %v1743, %v2001
        %v2038 = vadd.f32 %v1744, %v2004
        %s2039 = scalar_lea.vmem [#allocation2], 48
        %v2040 = vld [vmem:[%s2039] sm:$0xff]
        %v2041 = vld [vmem:[%s2039 + $0x8] sm:$0xff]
        %v2042 = vld [vmem:[%s2039 + $0x18] sm:$0xff]
        %v2043 = vld [vmem:[%s2039 + $0x20] sm:$0xff]
        %v2044 = vld [vmem:[%s2039 + $0x30] sm:$0xff]
        %v2045 = vld [vmem:[%s2039 + $0x38] sm:$0xff]
        %v2046 = vld [vmem:[%s2039 + $0x48] sm:$0xff]
        %v2047 = vld [vmem:[%s2039 + $0x50] sm:$0xff]
        %v2048 = vld [vmem:[%s2039 + $0x60] sm:$0xff]
        %v2049 = vld [vmem:[%s2039 + $0x68] sm:$0xff]
        %v2050 = vld [vmem:[%s2039 + $0x78] sm:$0xff]
        %v2051 = vld [vmem:[%s2039 + $0x80] sm:$0xff]
        %v2052 = vld [vmem:[%s2039 + $0x90] sm:$0xff]
        %v2053 = vld [vmem:[%s2039 + $0x98] sm:$0xff]
        %v2054 = vld [vmem:[%s2039 + $0xa8] sm:$0xff]
        %v2055 = vld [vmem:[%s2039 + $0xb0] sm:$0xff]
        %v2056 = vld [vmem:[%s2039 + $0xc0] sm:$0xff]
        %v2057 = vld [vmem:[%s2039 + $0xc8] sm:$0xff]
        %v2058 = vld [vmem:[%s2039 + $0xd8] sm:$0xff]
        %v2059 = vld [vmem:[%s2039 + $0xe0] sm:$0xff]
        %v2060 = vld [vmem:[%s2039 + $0xf0] sm:$0xff]
        %v2061 = vld [vmem:[%s2039 + $0xf8] sm:$0xff]
        %v2062 = vld [vmem:[%s2039 + $0x108] sm:$0xff]
        %v2063 = vld [vmem:[%s2039 + $0x110] sm:$0xff]
        %v2064 = vld [vmem:[%s2039 + $0x120] sm:$0xff]
        %v2065 = vld [vmem:[%s2039 + $0x128] sm:$0xff]
        %v2066 = vld [vmem:[%s2039 + $0x138] sm:$0xff]
        %v2067 = vld [vmem:[%s2039 + $0x140] sm:$0xff]
        %v2068 = vld [vmem:[%s2039 + $0x150] sm:$0xff]
        %v2069 = vld [vmem:[%s2039 + $0x158] sm:$0xff]
        %v2070 = vld [vmem:[%s2039 + $0x168] sm:$0xff]
        %v2071 = vld [vmem:[%s2039 + $0x170] sm:$0xff]
        %v2072 = vpack.c.bf16 %v2041, %v2040
        %v2073 = vpack.c.bf16 %v2043, %v2042
        %v2074 = vpack.c.bf16 %v2045, %v2044
        %v2075 = vpack.c.bf16 %v2047, %v2046
        %v2076 = vpack.c.bf16 %v2049, %v2048
        %v2077 = vpack.c.bf16 %v2051, %v2050
        %v2078 = vpack.c.bf16 %v2053, %v2052
        %v2079 = vpack.c.bf16 %v2055, %v2054
        %v2080 = vpack.c.bf16 %v2057, %v2056
        %v2081 = vpack.c.bf16 %v2059, %v2058
        %v2082 = vpack.c.bf16 %v2061, %v2060
        %v2083 = vpack.c.bf16 %v2063, %v2062
        %v2084 = vpack.c.bf16 %v2065, %v2064
        %v2085 = vpack.c.bf16 %v2067, %v2066
        %v2086 = vpack.c.bf16 %v2069, %v2068
        %v2087 = vpack.c.bf16 %v2071, %v2070
        %s2088 = scalar_lea.vmem %s1, 12
        %v2089 = vld [vmem:[%s2088] sm:$0x3]
        %v2091 = vsel %vm218, %v2072, 0
        %v2094 = vsel %vm218, %v2073, 0
        %v2097 = vsel %vm218, %v2074, 0
        %v2100 = vsel %vm218, %v2075, 0
        %v2103 = vsel %vm218, %v2076, 0
        %v2106 = vsel %vm218, %v2077, 0
        %v2109 = vsel %vm218, %v2078, 0
        %v2112 = vsel %vm218, %v2079, 0
        %v2115 = vsel %vm218, %v2080, 0
        %v2118 = vsel %vm218, %v2081, 0
        %v2121 = vsel %vm218, %v2082, 0
        %v2124 = vsel %vm218, %v2083, 0
        %v2127 = vsel %vm218, %v2084, 0
        %v2130 = vsel %vm218, %v2085, 0
        %v2133 = vsel %vm218, %v2086, 0
        %v2136 = vsel %vm218, %v2087, 0
        %v2139 = vsel %vm486, %v2089, 0
        %2141 = vmatprep.subr.bf16.mxu0 0
        %2142 = vmatpush1.bf16.msra.mxu0 %v2139
        %2143 = vmatprep.subr.bf16.mxu0 0
        %2144 = vmatpush1.bf16.msra.mxu0 0
        %2145 = vmatprep.subr.bf16.mxu0 0
        %2146 = vmatpush1.bf16.msra.mxu0 0
        %2147 = vmatprep.subr.bf16.mxu0 0
        %2148 = vmatpush1.bf16.msra.mxu0 0
        %2149 = vmatprep.subr.bf16.mxu0 0
        %2150 = vmatpush1.bf16.msra.mxu0 0
        %2151 = vmatprep.subr.bf16.mxu0 0
        %2152 = vmatpush1.bf16.msra.mxu0 0
        %2153 = vmatprep.subr.bf16.mxu0 0
        %2154 = vmatpush1.bf16.msra.mxu0 0
        %2155 = vmatprep.subr.bf16.mxu0 0
        %2156 = vmatpush1.bf16.msra.mxu0 0
        %2157 = vmatprep.subr.bf16.mxu0 0
        %2158 = vmatpush1.bf16.msra.mxu0 0
        %2159 = vmatprep.subr.bf16.mxu0 0
        %2160 = vmatpush1.bf16.msra.mxu0 0
        %2161 = vmatprep.subr.bf16.mxu0 0
        %2162 = vmatpush1.bf16.msra.mxu0 0
        %2163 = vmatprep.subr.bf16.mxu0 0
        %2164 = vmatpush1.bf16.msra.mxu0 0
        %2165 = vmatprep.subr.bf16.mxu0 0
        %2166 = vmatpush1.bf16.msra.mxu0 0
        %2167 = vmatprep.subr.bf16.mxu0 0
        %2168 = vmatpush1.bf16.msra.mxu0 0
        %2169 = vmatprep.subr.bf16.mxu0 0
        %2170 = vmatpush1.bf16.msra.mxu0 0
        %2171 = vmatprep.subr.bf16.mxu0 0
        %2172 = vmatpush1.bf16.msra.mxu0 0
        %2173 = vmatprep.mubr.bf16.mxu0 0
        %2174 = vmatmul.mubr.bf16.gmra.mrb[0].mxu0 %v2091
        %v2175 = vpop.f32.mrb[0].mxu0
        %v2176 = vadd.f32 0.0, %v2175
        %v2177 = vpop.f32.mrb[0].mxu0
        %v2178 = vpop.f32.mrb[0].mxu0
        %v2179 = vadd.f32 0.0, %v2178
        %v2180 = vpop.f32.mrb[0].mxu0
        %2181 = vmatprep.mubr.bf16.mxu0 0
        %2182 = vmatmul.mubr.bf16.gmra.mrb[0].mxu0 %v2094
        %v2183 = vpop.f32.mrb[0].mxu0
        %v2184 = vadd.f32 0.0, %v2183
        %v2185 = vpop.f32.mrb[0].mxu0
        %v2186 = vpop.f32.mrb[0].mxu0
        %v2187 = vadd.f32 0.0, %v2186
        %v2188 = vpop.f32.mrb[0].mxu0
        %2189 = vmatprep.mubr.bf16.mxu0 0
        %2190 = vmatmul.mubr.bf16.gmra.mrb[0].mxu0 %v2097
        %v2191 = vpop.f32.mrb[0].mxu0
        %v2192 = vadd.f32 0.0, %v2191
        %v2193 = vpop.f32.mrb[0].mxu0
        %v2194 = vpop.f32.mrb[0].mxu0
        %v2195 = vadd.f32 0.0, %v2194
        %v2196 = vpop.f32.mrb[0].mxu0
        %2197 = vmatprep.mubr.bf16.mxu0 0
        %2198 = vmatmul.mubr.bf16.gmra.mrb[0].mxu0 %v2100
        %v2199 = vpop.f32.mrb[0].mxu0
        %v2200 = vadd.f32 0.0, %v2199
        %v2201 = vpop.f32.mrb[0].mxu0
        %v2202 = vpop.f32.mrb[0].mxu0
        %v2203 = vadd.f32 0.0, %v2202
        %v2204 = vpop.f32.mrb[0].mxu0
        %2205 = vmatprep.mubr.bf16.mxu0 0
        %2206 = vmatmul.mubr.bf16.gmra.mrb[0].mxu0 %v2103
        %v2207 = vpop.f32.mrb[0].mxu0
        %v2208 = vadd.f32 0.0, %v2207
        %v2209 = vpop.f32.mrb[0].mxu0
        %v2210 = vpop.f32.mrb[0].mxu0
        %v2211 = vadd.f32 0.0, %v2210
        %v2212 = vpop.f32.mrb[0].mxu0
        %2213 = vmatprep.mubr.bf16.mxu0 0
        %2214 = vmatmul.mubr.bf16.gmra.mrb[0].mxu0 %v2106
        %v2215 = vpop.f32.mrb[0].mxu0
        %v2216 = vadd.f32 0.0, %v2215
        %v2217 = vpop.f32.mrb[0].mxu0
        %v2218 = vpop.f32.mrb[0].mxu0
        %v2219 = vadd.f32 0.0, %v2218
        %v2220 = vpop.f32.mrb[0].mxu0
        %2221 = vmatprep.mubr.bf16.mxu0 0
        %2222 = vmatmul.mubr.bf16.gmra.mrb[0].mxu0 %v2109
        %v2223 = vpop.f32.mrb[0].mxu0
        %v2224 = vadd.f32 0.0, %v2223
        %v2225 = vpop.f32.mrb[0].mxu0
        %v2226 = vpop.f32.mrb[0].mxu0
        %v2227 = vadd.f32 0.0, %v2226
        %v2228 = vpop.f32.mrb[0].mxu0
        %2229 = vmatprep.mubr.bf16.mxu0 0
        %2230 = vmatmul.mubr.bf16.gmra.mrb[0].mxu0 %v2112
        %v2231 = vpop.f32.mrb[0].mxu0
        %v2232 = vadd.f32 0.0, %v2231
        %v2233 = vpop.f32.mrb[0].mxu0
        %v2234 = vpop.f32.mrb[0].mxu0
        %v2235 = vadd.f32 0.0, %v2234
        %v2236 = vpop.f32.mrb[0].mxu0
        %2237 = vmatprep.mubr.bf16.mxu0 0
        %2238 = vmatmul.mubr.bf16.gmra.mrb[0].mxu0 %v2115
        %v2239 = vpop.f32.mrb[0].mxu0
        %v2240 = vadd.f32 0.0, %v2239
        %v2241 = vpop.f32.mrb[0].mxu0
        %v2242 = vpop.f32.mrb[0].mxu0
        %v2243 = vadd.f32 0.0, %v2242
        %v2244 = vpop.f32.mrb[0].mxu0
        %2245 = vmatprep.mubr.bf16.mxu0 0
        %2246 = vmatmul.mubr.bf16.gmra.mrb[0].mxu0 %v2118
        %v2247 = vpop.f32.mrb[0].mxu0
        %v2248 = vadd.f32 0.0, %v2247
        %v2249 = vpop.f32.mrb[0].mxu0
        %v2250 = vpop.f32.mrb[0].mxu0
        %v2251 = vadd.f32 0.0, %v2250
        %v2252 = vpop.f32.mrb[0].mxu0
        %2253 = vmatprep.mubr.bf16.mxu0 0
        %2254 = vmatmul.mubr.bf16.gmra.mrb[0].mxu0 %v2121
        %v2255 = vpop.f32.mrb[0].mxu0
        %v2256 = vadd.f32 0.0, %v2255
        %v2257 = vpop.f32.mrb[0].mxu0
        %v2258 = vpop.f32.mrb[0].mxu0
        %v2259 = vadd.f32 0.0, %v2258
        %v2260 = vpop.f32.mrb[0].mxu0
        %2261 = vmatprep.mubr.bf16.mxu0 0
        %2262 = vmatmul.mubr.bf16.gmra.mrb[0].mxu0 %v2124
        %v2263 = vpop.f32.mrb[0].mxu0
        %v2264 = vadd.f32 0.0, %v2263
        %v2265 = vpop.f32.mrb[0].mxu0
        %v2266 = vpop.f32.mrb[0].mxu0
        %v2267 = vadd.f32 0.0, %v2266
        %v2268 = vpop.f32.mrb[0].mxu0
        %2269 = vmatprep.mubr.bf16.mxu0 0
        %2270 = vmatmul.mubr.bf16.gmra.mrb[0].mxu0 %v2127
        %v2271 = vpop.f32.mrb[0].mxu0
        %v2272 = vadd.f32 0.0, %v2271
        %v2273 = vpop.f32.mrb[0].mxu0
        %v2274 = vpop.f32.mrb[0].mxu0
        %v2275 = vadd.f32 0.0, %v2274
        %v2276 = vpop.f32.mrb[0].mxu0
        %2277 = vmatprep.mubr.bf16.mxu0 0
        %2278 = vmatmul.mubr.bf16.gmra.mrb[0].mxu0 %v2130
        %v2279 = vpop.f32.mrb[0].mxu0
        %v2280 = vadd.f32 0.0, %v2279
        %v2281 = vpop.f32.mrb[0].mxu0
        %v2282 = vpop.f32.mrb[0].mxu0
        %v2283 = vadd.f32 0.0, %v2282
        %v2284 = vpop.f32.mrb[0].mxu0
        %2285 = vmatprep.mubr.bf16.mxu0 0
        %2286 = vmatmul.mubr.bf16.gmra.mrb[0].mxu0 %v2133
        %v2287 = vpop.f32.mrb[0].mxu0
        %v2288 = vadd.f32 0.0, %v2287
        %v2289 = vpop.f32.mrb[0].mxu0
        %v2290 = vpop.f32.mrb[0].mxu0
        %v2291 = vadd.f32 0.0, %v2290
        %v2292 = vpop.f32.mrb[0].mxu0
        %2293 = vmatprep.mubr.bf16.mxu0 0
        %2294 = vmatmul.mubr.bf16.gmra.mrb[0].mxu0 %v2136
        %v2295 = vpop.f32.mrb[0].mxu0
        %v2296 = vadd.f32 0.0, %v2295
        %v2297 = vpop.f32.mrb[0].mxu0
        %v2298 = vpop.f32.mrb[0].mxu0
        %v2299 = vadd.f32 0.0, %v2298
        %v2300 = vpop.f32.mrb[0].mxu0
        %2301 = vdwg.mxu0
        %v2302 = vadd.f32 %v2007, %v2176
        %v2303 = vadd.f32 %v2008, %v2179
        %v2304 = vadd.f32 %v2009, %v2184
        %v2305 = vadd.f32 %v2010, %v2187
        %v2306 = vadd.f32 %v2011, %v2192
        %v2307 = vadd.f32 %v2012, %v2195
        %v2308 = vadd.f32 %v2013, %v2200
        %v2309 = vadd.f32 %v2014, %v2203
        %v2310 = vadd.f32 %v2015, %v2208
        %v2311 = vadd.f32 %v2016, %v2211
        %v2312 = vadd.f32 %v2017, %v2216
        %v2313 = vadd.f32 %v2018, %v2219
        %v2314 = vadd.f32 %v2019, %v2224
        %v2315 = vadd.f32 %v2020, %v2227
        %v2316 = vadd.f32 %v2021, %v2232
        %v2317 = vadd.f32 %v2022, %v2235
        %v2318 = vadd.f32 %v2023, %v2240
        %v2319 = vadd.f32 %v2024, %v2243
        %v2320 = vadd.f32 %v2025, %v2248
        %v2321 = vadd.f32 %v2026, %v2251
        %v2322 = vadd.f32 %v2027, %v2256
        %v2323 = vadd.f32 %v2028, %v2259
        %v2324 = vadd.f32 %v2029, %v2264
        %v2325 = vadd.f32 %v2030, %v2267
        %v2326 = vadd.f32 %v2031, %v2272
        %v2327 = vadd.f32 %v2032, %v2275
        %v2328 = vadd.f32 %v2033, %v2280
        %v2329 = vadd.f32 %v2034, %v2283
        %v2330 = vadd.f32 %v2035, %v2288
        %v2331 = vadd.f32 %v2036, %v2291
        %v2332 = vadd.f32 %v2037, %v2296
        %v2333 = vadd.f32 %v2038, %v2299
        %v2334 = vld [vmem:[%s2039 + $0x1] sm:$0xff]
        %v2335 = vld [vmem:[%s2039 + $0x9] sm:$0xff]
        %v2336 = vld [vmem:[%s2039 + $0x19] sm:$0xff]
        %v2337 = vld [vmem:[%s2039 + $0x21] sm:$0xff]
        %v2338 = vld [vmem:[%s2039 + $0x31] sm:$0xff]
        %v2339 = vld [vmem:[%s2039 + $0x39] sm:$0xff]
        %v2340 = vld [vmem:[%s2039 + $0x49] sm:$0xff]
        %v2341 = vld [vmem:[%s2039 + $0x51] sm:$0xff]
        %v2342 = vld [vmem:[%s2039 + $0x61] sm:$0xff]
        %v2343 = vld [vmem:[%s2039 + $0x69] sm:$0xff]
        %v2344 = vld [vmem:[%s2039 + $0x79] sm:$0xff]
        %v2345 = vld [vmem:[%s2039 + $0x81] sm:$0xff]
        %v2346 = vld [vmem:[%s2039 + $0x91] sm:$0xff]
        %v2347 = vld [vmem:[%s2039 + $0x99] sm:$0xff]
        %v2348 = vld [vmem:[%s2039 + $0xa9] sm:$0xff]
        %v2349 = vld [vmem:[%s2039 + $0xb1] sm:$0xff]
        %v2350 = vld [vmem:[%s2039 + $0xc1] sm:$0xff]
        %v2351 = vld [vmem:[%s2039 + $0xc9] sm:$0xff]
        %v2352 = vld [vmem:[%s2039 + $0xd9] sm:$0xff]
        %v2353 = vld [vmem:[%s2039 + $0xe1] sm:$0xff]
        %v2354 = vld [vmem:[%s2039 + $0xf1] sm:$0xff]
        %v2355 = vld [vmem:[%s2039 + $0xf9] sm:$0xff]
        %v2356 = vld [vmem:[%s2039 + $0x109] sm:$0xff]
        %v2357 = vld [vmem:[%s2039 + $0x111] sm:$0xff]
        %v2358 = vld [vmem:[%s2039 + $0x121] sm:$0xff]
        %v2359 = vld [vmem:[%s2039 + $0x129] sm:$0xff]
        %v2360 = vld [vmem:[%s2039 + $0x139] sm:$0xff]
        %v2361 = vld [vmem:[%s2039 + $0x141] sm:$0xff]
        %v2362 = vld [vmem:[%s2039 + $0x151] sm:$0xff]
        %v2363 = vld [vmem:[%s2039 + $0x159] sm:$0xff]
        %v2364 = vld [vmem:[%s2039 + $0x169] sm:$0xff]
        %v2365 = vld [vmem:[%s2039 + $0x171] sm:$0xff]
        %v2366 = vpack.c.bf16 %v2335, %v2334
        %v2367 = vpack.c.bf16 %v2337, %v2336
        %v2368 = vpack.c.bf16 %v2339, %v2338
        %v2369 = vpack.c.bf16 %v2341, %v2340
        %v2370 = vpack.c.bf16 %v2343, %v2342
        %v2371 = vpack.c.bf16 %v2345, %v2344
        %v2372 = vpack.c.bf16 %v2347, %v2346
        %v2373 = vpack.c.bf16 %v2349, %v2348
        %v2374 = vpack.c.bf16 %v2351, %v2350
        %v2375 = vpack.c.bf16 %v2353, %v2352
        %v2376 = vpack.c.bf16 %v2355, %v2354
        %v2377 = vpack.c.bf16 %v2357, %v2356
        %v2378 = vpack.c.bf16 %v2359, %v2358
        %v2379 = vpack.c.bf16 %v2361, %v2360
        %v2380 = vpack.c.bf16 %v2363, %v2362
        %v2381 = vpack.c.bf16 %v2365, %v2364
        %s2382 = scalar_lea.vmem %s1, 14
        %v2383 = vld [vmem:[%s2382] sm:$0x3]
        %v2385 = vsel %vm218, %v2366, 0
        %v2388 = vsel %vm218, %v2367, 0
        %v2391 = vsel %vm218, %v2368, 0
        %v2394 = vsel %vm218, %v2369, 0
        %v2397 = vsel %vm218, %v2370, 0
        %v2400 = vsel %vm218, %v2371, 0
        %v2403 = vsel %vm218, %v2372, 0
        %v2406 = vsel %vm218, %v2373, 0
        %v2409 = vsel %vm218, %v2374, 0
        %v2412 = vsel %vm218, %v2375, 0
        %v2415 = vsel %vm218, %v2376, 0
        %v2418 = vsel %vm218, %v2377, 0
        %v2421 = vsel %vm218, %v2378, 0
        %v2424 = vsel %vm218, %v2379, 0
        %v2427 = vsel %vm218, %v2380, 0
        %v2430 = vsel %vm218, %v2381, 0
        %v2433 = vsel %vm486, %v2383, 0
        %2435 = vmatprep.subr.bf16.mxu0 0
        %2436 = vmatpush1.bf16.msra.mxu0 %v2433
        %2437 = vmatprep.subr.bf16.mxu0 0
        %2438 = vmatpush1.bf16.msra.mxu0 0
        %2439 = vmatprep.subr.bf16.mxu0 0
        %2440 = vmatpush1.bf16.msra.mxu0 0
        %2441 = vmatprep.subr.bf16.mxu0 0
        %2442 = vmatpush1.bf16.msra.mxu0 0
        %2443 = vmatprep.subr.bf16.mxu0 0
        %2444 = vmatpush1.bf16.msra.mxu0 0
        %2445 = vmatprep.subr.bf16.mxu0 0
        %2446 = vmatpush1.bf16.msra.mxu0 0
        %2447 = vmatprep.subr.bf16.mxu0 0
        %2448 = vmatpush1.bf16.msra.mxu0 0
        %2449 = vmatprep.subr.bf16.mxu0 0
        %2450 = vmatpush1.bf16.msra.mxu0 0
        %2451 = vmatprep.subr.bf16.mxu0 0
        %2452 = vmatpush1.bf16.msra.mxu0 0
        %2453 = vmatprep.subr.bf16.mxu0 0
        %2454 = vmatpush1.bf16.msra.mxu0 0
        %2455 = vmatprep.subr.bf16.mxu0 0
        %2456 = vmatpush1.bf16.msra.mxu0 0
        %2457 = vmatprep.subr.bf16.mxu0 0
        %2458 = vmatpush1.bf16.msra.mxu0 0
        %2459 = vmatprep.subr.bf16.mxu0 0
        %2460 = vmatpush1.bf16.msra.mxu0 0
        %2461 = vmatprep.subr.bf16.mxu0 0
        %2462 = vmatpush1.bf16.msra.mxu0 0
        %2463 = vmatprep.subr.bf16.mxu0 0
        %2464 = vmatpush1.bf16.msra.mxu0 0
        %2465 = vmatprep.subr.bf16.mxu0 0
        %2466 = vmatpush1.bf16.msra.mxu0 0
        %2467 = vmatprep.mubr.bf16.mxu0 0
        %2468 = vmatmul.mubr.bf16.gmra.mrb[0].mxu0 %v2385
        %v2469 = vpop.f32.mrb[0].mxu0
        %v2470 = vadd.f32 0.0, %v2469
        %v2471 = vpop.f32.mrb[0].mxu0
        %v2472 = vpop.f32.mrb[0].mxu0
        %v2473 = vadd.f32 0.0, %v2472
        %v2474 = vpop.f32.mrb[0].mxu0
        %2475 = vmatprep.mubr.bf16.mxu0 0
        %2476 = vmatmul.mubr.bf16.gmra.mrb[0].mxu0 %v2388
        %v2477 = vpop.f32.mrb[0].mxu0
        %v2478 = vadd.f32 0.0, %v2477
        %v2479 = vpop.f32.mrb[0].mxu0
        %v2480 = vpop.f32.mrb[0].mxu0
        %v2481 = vadd.f32 0.0, %v2480
        %v2482 = vpop.f32.mrb[0].mxu0
        %2483 = vmatprep.mubr.bf16.mxu0 0
        %2484 = vmatmul.mubr.bf16.gmra.mrb[0].mxu0 %v2391
        %v2485 = vpop.f32.mrb[0].mxu0
        %v2486 = vadd.f32 0.0, %v2485
        %v2487 = vpop.f32.mrb[0].mxu0
        %v2488 = vpop.f32.mrb[0].mxu0
        %v2489 = vadd.f32 0.0, %v2488
        %v2490 = vpop.f32.mrb[0].mxu0
        %2491 = vmatprep.mubr.bf16.mxu0 0
        %2492 = vmatmul.mubr.bf16.gmra.mrb[0].mxu0 %v2394
        %v2493 = vpop.f32.mrb[0].mxu0
        %v2494 = vadd.f32 0.0, %v2493
        %v2495 = vpop.f32.mrb[0].mxu0
        %v2496 = vpop.f32.mrb[0].mxu0
        %v2497 = vadd.f32 0.0, %v2496
        %v2498 = vpop.f32.mrb[0].mxu0
        %2499 = vmatprep.mubr.bf16.mxu0 0
        %2500 = vmatmul.mubr.bf16.gmra.mrb[0].mxu0 %v2397
        %v2501 = vpop.f32.mrb[0].mxu0
        %v2502 = vadd.f32 0.0, %v2501
        %v2503 = vpop.f32.mrb[0].mxu0
        %v2504 = vpop.f32.mrb[0].mxu0
        %v2505 = vadd.f32 0.0, %v2504
        %v2506 = vpop.f32.mrb[0].mxu0
        %2507 = vmatprep.mubr.bf16.mxu0 0
        %2508 = vmatmul.mubr.bf16.gmra.mrb[0].mxu0 %v2400
        %v2509 = vpop.f32.mrb[0].mxu0
        %v2510 = vadd.f32 0.0, %v2509
        %v2511 = vpop.f32.mrb[0].mxu0
        %v2512 = vpop.f32.mrb[0].mxu0
        %v2513 = vadd.f32 0.0, %v2512
        %v2514 = vpop.f32.mrb[0].mxu0
        %2515 = vmatprep.mubr.bf16.mxu0 0
        %2516 = vmatmul.mubr.bf16.gmra.mrb[0].mxu0 %v2403
        %v2517 = vpop.f32.mrb[0].mxu0
        %v2518 = vadd.f32 0.0, %v2517
        %v2519 = vpop.f32.mrb[0].mxu0
        %v2520 = vpop.f32.mrb[0].mxu0
        %v2521 = vadd.f32 0.0, %v2520
        %v2522 = vpop.f32.mrb[0].mxu0
        %2523 = vmatprep.mubr.bf16.mxu0 0
        %2524 = vmatmul.mubr.bf16.gmra.mrb[0].mxu0 %v2406
        %v2525 = vpop.f32.mrb[0].mxu0
        %v2526 = vadd.f32 0.0, %v2525
        %v2527 = vpop.f32.mrb[0].mxu0
        %v2528 = vpop.f32.mrb[0].mxu0
        %v2529 = vadd.f32 0.0, %v2528
        %v2530 = vpop.f32.mrb[0].mxu0
        %2531 = vmatprep.mubr.bf16.mxu0 0
        %2532 = vmatmul.mubr.bf16.gmra.mrb[0].mxu0 %v2409
        %v2533 = vpop.f32.mrb[0].mxu0
        %v2534 = vadd.f32 0.0, %v2533
        %v2535 = vpop.f32.mrb[0].mxu0
        %v2536 = vpop.f32.mrb[0].mxu0
        %v2537 = vadd.f32 0.0, %v2536
        %v2538 = vpop.f32.mrb[0].mxu0
        %2539 = vmatprep.mubr.bf16.mxu0 0
        %2540 = vmatmul.mubr.bf16.gmra.mrb[0].mxu0 %v2412
        %v2541 = vpop.f32.mrb[0].mxu0
        %v2542 = vadd.f32 0.0, %v2541
        %v2543 = vpop.f32.mrb[0].mxu0
        %v2544 = vpop.f32.mrb[0].mxu0
        %v2545 = vadd.f32 0.0, %v2544
        %v2546 = vpop.f32.mrb[0].mxu0
        %2547 = vmatprep.mubr.bf16.mxu0 0
        %2548 = vmatmul.mubr.bf16.gmra.mrb[0].mxu0 %v2415
        %v2549 = vpop.f32.mrb[0].mxu0
        %v2550 = vadd.f32 0.0, %v2549
        %v2551 = vpop.f32.mrb[0].mxu0
        %v2552 = vpop.f32.mrb[0].mxu0
        %v2553 = vadd.f32 0.0, %v2552
        %v2554 = vpop.f32.mrb[0].mxu0
        %2555 = vmatprep.mubr.bf16.mxu0 0
        %2556 = vmatmul.mubr.bf16.gmra.mrb[0].mxu0 %v2418
        %v2557 = vpop.f32.mrb[0].mxu0
        %v2558 = vadd.f32 0.0, %v2557
        %v2559 = vpop.f32.mrb[0].mxu0
        %v2560 = vpop.f32.mrb[0].mxu0
        %v2561 = vadd.f32 0.0, %v2560
        %v2562 = vpop.f32.mrb[0].mxu0
        %2563 = vmatprep.mubr.bf16.mxu0 0
        %2564 = vmatmul.mubr.bf16.gmra.mrb[0].mxu0 %v2421
        %v2565 = vpop.f32.mrb[0].mxu0
        %v2566 = vadd.f32 0.0, %v2565
        %v2567 = vpop.f32.mrb[0].mxu0
        %v2568 = vpop.f32.mrb[0].mxu0
        %v2569 = vadd.f32 0.0, %v2568
        %v2570 = vpop.f32.mrb[0].mxu0
        %2571 = vmatprep.mubr.bf16.mxu0 0
        %2572 = vmatmul.mubr.bf16.gmra.mrb[0].mxu0 %v2424
        %v2573 = vpop.f32.mrb[0].mxu0
        %v2574 = vadd.f32 0.0, %v2573
        %v2575 = vpop.f32.mrb[0].mxu0
        %v2576 = vpop.f32.mrb[0].mxu0
        %v2577 = vadd.f32 0.0, %v2576
        %v2578 = vpop.f32.mrb[0].mxu0
        %2579 = vmatprep.mubr.bf16.mxu0 0
        %2580 = vmatmul.mubr.bf16.gmra.mrb[0].mxu0 %v2427
        %v2581 = vpop.f32.mrb[0].mxu0
        %v2582 = vadd.f32 0.0, %v2581
        %v2583 = vpop.f32.mrb[0].mxu0
        %v2584 = vpop.f32.mrb[0].mxu0
        %v2585 = vadd.f32 0.0, %v2584
        %v2586 = vpop.f32.mrb[0].mxu0
        %2587 = vmatprep.mubr.bf16.mxu0 0
        %2588 = vmatmul.mubr.bf16.gmra.mrb[0].mxu0 %v2430
        %v2589 = vpop.f32.mrb[0].mxu0
        %v2590 = vadd.f32 0.0, %v2589
        %v2591 = vpop.f32.mrb[0].mxu0
        %v2592 = vpop.f32.mrb[0].mxu0
        %v2593 = vadd.f32 0.0, %v2592
        %v2594 = vpop.f32.mrb[0].mxu0
        %2595 = vdwg.mxu0
        %v2596 = vadd.f32 %v2302, %v2470
        %v2597 = vadd.f32 %v2303, %v2473
        %v2598 = vadd.f32 %v2304, %v2478
        %v2599 = vadd.f32 %v2305, %v2481
        %v2600 = vadd.f32 %v2306, %v2486
        %v2601 = vadd.f32 %v2307, %v2489
        %v2602 = vadd.f32 %v2308, %v2494
        %v2603 = vadd.f32 %v2309, %v2497
        %v2604 = vadd.f32 %v2310, %v2502
        %v2605 = vadd.f32 %v2311, %v2505
        %v2606 = vadd.f32 %v2312, %v2510
        %v2607 = vadd.f32 %v2313, %v2513
        %v2608 = vadd.f32 %v2314, %v2518
        %v2609 = vadd.f32 %v2315, %v2521
        %v2610 = vadd.f32 %v2316, %v2526
        %v2611 = vadd.f32 %v2317, %v2529
        %v2612 = vadd.f32 %v2318, %v2534
        %v2613 = vadd.f32 %v2319, %v2537
        %v2614 = vadd.f32 %v2320, %v2542
        %v2615 = vadd.f32 %v2321, %v2545
        %v2616 = vadd.f32 %v2322, %v2550
        %v2617 = vadd.f32 %v2323, %v2553
        %v2618 = vadd.f32 %v2324, %v2558
        %v2619 = vadd.f32 %v2325, %v2561
        %v2620 = vadd.f32 %v2326, %v2566
        %v2621 = vadd.f32 %v2327, %v2569
        %v2622 = vadd.f32 %v2328, %v2574
        %v2623 = vadd.f32 %v2329, %v2577
        %v2624 = vadd.f32 %v2330, %v2582
        %v2625 = vadd.f32 %v2331, %v2585
        %v2626 = vadd.f32 %v2332, %v2590
        %v2627 = vadd.f32 %v2333, %v2593
        %v2628 = vld [vmem:[%s2039 + $0x2] sm:$0xff]
        %v2629 = vld [vmem:[%s2039 + $0xa] sm:$0xff]
        %v2630 = vld [vmem:[%s2039 + $0x1a] sm:$0xff]
        %v2631 = vld [vmem:[%s2039 + $0x22] sm:$0xff]
        %v2632 = vld [vmem:[%s2039 + $0x32] sm:$0xff]
        %v2633 = vld [vmem:[%s2039 + $0x3a] sm:$0xff]
        %v2634 = vld [vmem:[%s2039 + $0x4a] sm:$0xff]
        %v2635 = vld [vmem:[%s2039 + $0x52] sm:$0xff]
        %v2636 = vld [vmem:[%s2039 + $0x62] sm:$0xff]
        %v2637 = vld [vmem:[%s2039 + $0x6a] sm:$0xff]
        %v2638 = vld [vmem:[%s2039 + $0x7a] sm:$0xff]
        %v2639 = vld [vmem:[%s2039 + $0x82] sm:$0xff]
        %v2640 = vld [vmem:[%s2039 + $0x92] sm:$0xff]
        %v2641 = vld [vmem:[%s2039 + $0x9a] sm:$0xff]
        %v2642 = vld [vmem:[%s2039 + $0xaa] sm:$0xff]
        %v2643 = vld [vmem:[%s2039 + $0xb2] sm:$0xff]
        %v2644 = vld [vmem:[%s2039 + $0xc2] sm:$0xff]
        %v2645 = vld [vmem:[%s2039 + $0xca] sm:$0xff]
        %v2646 = vld [vmem:[%s2039 + $0xda] sm:$0xff]
        %v2647 = vld [vmem:[%s2039 + $0xe2] sm:$0xff]
        %v2648 = vld [vmem:[%s2039 + $0xf2] sm:$0xff]
        %v2649 = vld [vmem:[%s2039 + $0xfa] sm:$0xff]
        %v2650 = vld [vmem:[%s2039 + $0x10a] sm:$0xff]
        %v2651 = vld [vmem:[%s2039 + $0x112] sm:$0xff]
        %v2652 = vld [vmem:[%s2039 + $0x122] sm:$0xff]
        %v2653 = vld [vmem:[%s2039 + $0x12a] sm:$0xff]
        %v2654 = vld [vmem:[%s2039 + $0x13a] sm:$0xff]
        %v2655 = vld [vmem:[%s2039 + $0x142] sm:$0xff]
        %v2656 = vld [vmem:[%s2039 + $0x152] sm:$0xff]
        %v2657 = vld [vmem:[%s2039 + $0x15a] sm:$0xff]
        %v2658 = vld [vmem:[%s2039 + $0x16a] sm:$0xff]
        %v2659 = vld [vmem:[%s2039 + $0x172] sm:$0xff]
        %v2660 = vpack.c.bf16 %v2629, %v2628
        %v2661 = vpack.c.bf16 %v2631, %v2630
        %v2662 = vpack.c.bf16 %v2633, %v2632
        %v2663 = vpack.c.bf16 %v2635, %v2634
        %v2664 = vpack.c.bf16 %v2637, %v2636
        %v2665 = vpack.c.bf16 %v2639, %v2638
        %v2666 = vpack.c.bf16 %v2641, %v2640
        %v2667 = vpack.c.bf16 %v2643, %v2642
        %v2668 = vpack.c.bf16 %v2645, %v2644
        %v2669 = vpack.c.bf16 %v2647, %v2646
        %v2670 = vpack.c.bf16 %v2649, %v2648
        %v2671 = vpack.c.bf16 %v2651, %v2650
        %v2672 = vpack.c.bf16 %v2653, %v2652
        %v2673 = vpack.c.bf16 %v2655, %v2654
        %v2674 = vpack.c.bf16 %v2657, %v2656
        %v2675 = vpack.c.bf16 %v2659, %v2658
        %s2676 = scalar_lea.vmem %s1, 16
        %v2677 = vld [vmem:[%s2676] sm:$0x3]
        %v2679 = vsel %vm218, %v2660, 0
        %v2682 = vsel %vm218, %v2661, 0
        %v2685 = vsel %vm218, %v2662, 0
        %v2688 = vsel %vm218, %v2663, 0
        %v2691 = vsel %vm218, %v2664, 0
        %v2694 = vsel %vm218, %v2665, 0
        %v2697 = vsel %vm218, %v2666, 0
        %v2700 = vsel %vm218, %v2667, 0
        %v2703 = vsel %vm218, %v2668, 0
        %v2706 = vsel %vm218, %v2669, 0
        %v2709 = vsel %vm218, %v2670, 0
        %v2712 = vsel %vm218, %v2671, 0
        %v2715 = vsel %vm218, %v2672, 0
        %v2718 = vsel %vm218, %v2673, 0
        %v2721 = vsel %vm218, %v2674, 0
        %v2724 = vsel %vm218, %v2675, 0
        %v2727 = vsel %vm486, %v2677, 0
        %2729 = vmatprep.subr.bf16.mxu0 0
        %2730 = vmatpush1.bf16.msra.mxu0 %v2727
        %2731 = vmatprep.subr.bf16.mxu0 0
        %2732 = vmatpush1.bf16.msra.mxu0 0
        %2733 = vmatprep.subr.bf16.mxu0 0
        %2734 = vmatpush1.bf16.msra.mxu0 0
        %2735 = vmatprep.subr.bf16.mxu0 0
        %2736 = vmatpush1.bf16.msra.mxu0 0
        %2737 = vmatprep.subr.bf16.mxu0 0
        %2738 = vmatpush1.bf16.msra.mxu0 0
        %2739 = vmatprep.subr.bf16.mxu0 0
        %2740 = vmatpush1.bf16.msra.mxu0 0
        %2741 = vmatprep.subr.bf16.mxu0 0
        %2742 = vmatpush1.bf16.msra.mxu0 0
        %2743 = vmatprep.subr.bf16.mxu0 0
        %2744 = vmatpush1.bf16.msra.mxu0 0
        %2745 = vmatprep.subr.bf16.mxu0 0
        %2746 = vmatpush1.bf16.msra.mxu0 0
        %2747 = vmatprep.subr.bf16.mxu0 0
        %2748 = vmatpush1.bf16.msra.mxu0 0
        %2749 = vmatprep.subr.bf16.mxu0 0
        %2750 = vmatpush1.bf16.msra.mxu0 0
        %2751 = vmatprep.subr.bf16.mxu0 0
        %2752 = vmatpush1.bf16.msra.mxu0 0
        %2753 = vmatprep.subr.bf16.mxu0 0
        %2754 = vmatpush1.bf16.msra.mxu0 0
        %2755 = vmatprep.subr.bf16.mxu0 0
        %2756 = vmatpush1.bf16.msra.mxu0 0
        %2757 = vmatprep.subr.bf16.mxu0 0
        %2758 = vmatpush1.bf16.msra.mxu0 0
        %2759 = vmatprep.subr.bf16.mxu0 0
        %2760 = vmatpush1.bf16.msra.mxu0 0
        %2761 = vmatprep.mubr.bf16.mxu0 0
        %2762 = vmatmul.mubr.bf16.gmra.mrb[0].mxu0 %v2679
        %v2763 = vpop.f32.mrb[0].mxu0
        %v2764 = vadd.f32 0.0, %v2763
        %v2765 = vpop.f32.mrb[0].mxu0
        %v2766 = vpop.f32.mrb[0].mxu0
        %v2767 = vadd.f32 0.0, %v2766
        %v2768 = vpop.f32.mrb[0].mxu0
        %2769 = vmatprep.mubr.bf16.mxu0 0
        %2770 = vmatmul.mubr.bf16.gmra.mrb[0].mxu0 %v2682
        %v2771 = vpop.f32.mrb[0].mxu0
        %v2772 = vadd.f32 0.0, %v2771
        %v2773 = vpop.f32.mrb[0].mxu0
        %v2774 = vpop.f32.mrb[0].mxu0
        %v2775 = vadd.f32 0.0, %v2774
        %v2776 = vpop.f32.mrb[0].mxu0
        %2777 = vmatprep.mubr.bf16.mxu0 0
        %2778 = vmatmul.mubr.bf16.gmra.mrb[0].mxu0 %v2685
        %v2779 = vpop.f32.mrb[0].mxu0
        %v2780 = vadd.f32 0.0, %v2779
        %v2781 = vpop.f32.mrb[0].mxu0
        %v2782 = vpop.f32.mrb[0].mxu0
        %v2783 = vadd.f32 0.0, %v2782
        %v2784 = vpop.f32.mrb[0].mxu0
        %2785 = vmatprep.mubr.bf16.mxu0 0
        %2786 = vmatmul.mubr.bf16.gmra.mrb[0].mxu0 %v2688
        %v2787 = vpop.f32.mrb[0].mxu0
        %v2788 = vadd.f32 0.0, %v2787
        %v2789 = vpop.f32.mrb[0].mxu0
        %v2790 = vpop.f32.mrb[0].mxu0
        %v2791 = vadd.f32 0.0, %v2790
        %v2792 = vpop.f32.mrb[0].mxu0
        %2793 = vmatprep.mubr.bf16.mxu0 0
        %2794 = vmatmul.mubr.bf16.gmra.mrb[0].mxu0 %v2691
        %v2795 = vpop.f32.mrb[0].mxu0
        %v2796 = vadd.f32 0.0, %v2795
        %v2797 = vpop.f32.mrb[0].mxu0
        %v2798 = vpop.f32.mrb[0].mxu0
        %v2799 = vadd.f32 0.0, %v2798
        %v2800 = vpop.f32.mrb[0].mxu0
        %2801 = vmatprep.mubr.bf16.mxu0 0
        %2802 = vmatmul.mubr.bf16.gmra.mrb[0].mxu0 %v2694
        %v2803 = vpop.f32.mrb[0].mxu0
        %v2804 = vadd.f32 0.0, %v2803
        %v2805 = vpop.f32.mrb[0].mxu0
        %v2806 = vpop.f32.mrb[0].mxu0
        %v2807 = vadd.f32 0.0, %v2806
        %v2808 = vpop.f32.mrb[0].mxu0
        %2809 = vmatprep.mubr.bf16.mxu0 0
        %2810 = vmatmul.mubr.bf16.gmra.mrb[0].mxu0 %v2697
        %v2811 = vpop.f32.mrb[0].mxu0
        %v2812 = vadd.f32 0.0, %v2811
        %v2813 = vpop.f32.mrb[0].mxu0
        %v2814 = vpop.f32.mrb[0].mxu0
        %v2815 = vadd.f32 0.0, %v2814
        %v2816 = vpop.f32.mrb[0].mxu0
        %2817 = vmatprep.mubr.bf16.mxu0 0
        %2818 = vmatmul.mubr.bf16.gmra.mrb[0].mxu0 %v2700
        %v2819 = vpop.f32.mrb[0].mxu0
        %v2820 = vadd.f32 0.0, %v2819
        %v2821 = vpop.f32.mrb[0].mxu0
        %v2822 = vpop.f32.mrb[0].mxu0
        %v2823 = vadd.f32 0.0, %v2822
        %v2824 = vpop.f32.mrb[0].mxu0
        %2825 = vmatprep.mubr.bf16.mxu0 0
        %2826 = vmatmul.mubr.bf16.gmra.mrb[0].mxu0 %v2703
        %v2827 = vpop.f32.mrb[0].mxu0
        %v2828 = vadd.f32 0.0, %v2827
        %v2829 = vpop.f32.mrb[0].mxu0
        %v2830 = vpop.f32.mrb[0].mxu0
        %v2831 = vadd.f32 0.0, %v2830
        %v2832 = vpop.f32.mrb[0].mxu0
        %2833 = vmatprep.mubr.bf16.mxu0 0
        %2834 = vmatmul.mubr.bf16.gmra.mrb[0].mxu0 %v2706
        %v2835 = vpop.f32.mrb[0].mxu0
        %v2836 = vadd.f32 0.0, %v2835
        %v2837 = vpop.f32.mrb[0].mxu0
        %v2838 = vpop.f32.mrb[0].mxu0
        %v2839 = vadd.f32 0.0, %v2838
        %v2840 = vpop.f32.mrb[0].mxu0
        %2841 = vmatprep.mubr.bf16.mxu0 0
        %2842 = vmatmul.mubr.bf16.gmra.mrb[0].mxu0 %v2709
        %v2843 = vpop.f32.mrb[0].mxu0
        %v2844 = vadd.f32 0.0, %v2843
        %v2845 = vpop.f32.mrb[0].mxu0
        %v2846 = vpop.f32.mrb[0].mxu0
        %v2847 = vadd.f32 0.0, %v2846
        %v2848 = vpop.f32.mrb[0].mxu0
        %2849 = vmatprep.mubr.bf16.mxu0 0
        %2850 = vmatmul.mubr.bf16.gmra.mrb[0].mxu0 %v2712
        %v2851 = vpop.f32.mrb[0].mxu0
        %v2852 = vadd.f32 0.0, %v2851
        %v2853 = vpop.f32.mrb[0].mxu0
        %v2854 = vpop.f32.mrb[0].mxu0
        %v2855 = vadd.f32 0.0, %v2854
        %v2856 = vpop.f32.mrb[0].mxu0
        %2857 = vmatprep.mubr.bf16.mxu0 0
        %2858 = vmatmul.mubr.bf16.gmra.mrb[0].mxu0 %v2715
        %v2859 = vpop.f32.mrb[0].mxu0
        %v2860 = vadd.f32 0.0, %v2859
        %v2861 = vpop.f32.mrb[0].mxu0
        %v2862 = vpop.f32.mrb[0].mxu0
        %v2863 = vadd.f32 0.0, %v2862
        %v2864 = vpop.f32.mrb[0].mxu0
        %2865 = vmatprep.mubr.bf16.mxu0 0
        %2866 = vmatmul.mubr.bf16.gmra.mrb[0].mxu0 %v2718
        %v2867 = vpop.f32.mrb[0].mxu0
        %v2868 = vadd.f32 0.0, %v2867
        %v2869 = vpop.f32.mrb[0].mxu0
        %v2870 = vpop.f32.mrb[0].mxu0
        %v2871 = vadd.f32 0.0, %v2870
        %v2872 = vpop.f32.mrb[0].mxu0
        %2873 = vmatprep.mubr.bf16.mxu0 0
        %2874 = vmatmul.mubr.bf16.gmra.mrb[0].mxu0 %v2721
        %v2875 = vpop.f32.mrb[0].mxu0
        %v2876 = vadd.f32 0.0, %v2875
        %v2877 = vpop.f32.mrb[0].mxu0
        %v2878 = vpop.f32.mrb[0].mxu0
        %v2879 = vadd.f32 0.0, %v2878
        %v2880 = vpop.f32.mrb[0].mxu0
        %2881 = vmatprep.mubr.bf16.mxu0 0
        %2882 = vmatmul.mubr.bf16.gmra.mrb[0].mxu0 %v2724
        %v2883 = vpop.f32.mrb[0].mxu0
        %v2884 = vadd.f32 0.0, %v2883
        %v2885 = vpop.f32.mrb[0].mxu0
        %v2886 = vpop.f32.mrb[0].mxu0
        %v2887 = vadd.f32 0.0, %v2886
        %v2888 = vpop.f32.mrb[0].mxu0
        %2889 = vdwg.mxu0
        %v2890 = vadd.f32 %v2596, %v2764
        %v2891 = vadd.f32 %v2597, %v2767
        %v2892 = vadd.f32 %v2598, %v2772
        %v2893 = vadd.f32 %v2599, %v2775
        %v2894 = vadd.f32 %v2600, %v2780
        %v2895 = vadd.f32 %v2601, %v2783
        %v2896 = vadd.f32 %v2602, %v2788
        %v2897 = vadd.f32 %v2603, %v2791
        %v2898 = vadd.f32 %v2604, %v2796
        %v2899 = vadd.f32 %v2605, %v2799
        %v2900 = vadd.f32 %v2606, %v2804
        %v2901 = vadd.f32 %v2607, %v2807
        %v2902 = vadd.f32 %v2608, %v2812
        %v2903 = vadd.f32 %v2609, %v2815
        %v2904 = vadd.f32 %v2610, %v2820
        %v2905 = vadd.f32 %v2611, %v2823
        %v2906 = vadd.f32 %v2612, %v2828
        %v2907 = vadd.f32 %v2613, %v2831
        %v2908 = vadd.f32 %v2614, %v2836
        %v2909 = vadd.f32 %v2615, %v2839
        %v2910 = vadd.f32 %v2616, %v2844
        %v2911 = vadd.f32 %v2617, %v2847
        %v2912 = vadd.f32 %v2618, %v2852
        %v2913 = vadd.f32 %v2619, %v2855
        %v2914 = vadd.f32 %v2620, %v2860
        %v2915 = vadd.f32 %v2621, %v2863
        %v2916 = vadd.f32 %v2622, %v2868
        %v2917 = vadd.f32 %v2623, %v2871
        %v2918 = vadd.f32 %v2624, %v2876
        %v2919 = vadd.f32 %v2625, %v2879
        %v2920 = vadd.f32 %v2626, %v2884
        %v2921 = vadd.f32 %v2627, %v2887
        %vm2922 = vcmask 64512
        %2923 = vst.msk [vmem:[%s216] sm:$0xff] %vm2922, %v2890
        %2924 = vst.msk [vmem:[%s216 + $0x8] sm:$0xff] %vm2922, %v2891
        %2925 = vst.msk [vmem:[%s216 + $0x10] sm:$0xff] %vm2922, %v2892
        %2926 = vst.msk [vmem:[%s216 + $0x18] sm:$0xff] %vm2922, %v2893
        %2927 = vst.msk [vmem:[%s216 + $0x20] sm:$0xff] %vm2922, %v2894
        %2928 = vst.msk [vmem:[%s216 + $0x28] sm:$0xff] %vm2922, %v2895
        %2929 = vst.msk [vmem:[%s216 + $0x30] sm:$0xff] %vm2922, %v2896
        %2930 = vst.msk [vmem:[%s216 + $0x38] sm:$0xff] %vm2922, %v2897
        %2931 = vst.msk [vmem:[%s216 + $0x40] sm:$0xff] %vm2922, %v2898
        %2932 = vst.msk [vmem:[%s216 + $0x48] sm:$0xff] %vm2922, %v2899
        %2933 = vst.msk [vmem:[%s216 + $0x50] sm:$0xff] %vm2922, %v2900
        %2934 = vst.msk [vmem:[%s216 + $0x58] sm:$0xff] %vm2922, %v2901
        %2935 = vst.msk [vmem:[%s216 + $0x60] sm:$0xff] %vm2922, %v2902
        %2936 = vst.msk [vmem:[%s216 + $0x68] sm:$0xff] %vm2922, %v2903
        %2937 = vst.msk [vmem:[%s216 + $0x70] sm:$0xff] %vm2922, %v2904
        %2938 = vst.msk [vmem:[%s216 + $0x78] sm:$0xff] %vm2922, %v2905
        %2939 = vst.msk [vmem:[%s216 + $0x80] sm:$0xff] %vm2922, %v2906
        %2940 = vst.msk [vmem:[%s216 + $0x88] sm:$0xff] %vm2922, %v2907
        %2941 = vst.msk [vmem:[%s216 + $0x90] sm:$0xff] %vm2922, %v2908
        %2942 = vst.msk [vmem:[%s216 + $0x98] sm:$0xff] %vm2922, %v2909
        %2943 = vst.msk [vmem:[%s216 + $0xa0] sm:$0xff] %vm2922, %v2910
        %2944 = vst.msk [vmem:[%s216 + $0xa8] sm:$0xff] %vm2922, %v2911
        %2945 = vst.msk [vmem:[%s216 + $0xb0] sm:$0xff] %vm2922, %v2912
        %2946 = vst.msk [vmem:[%s216 + $0xb8] sm:$0xff] %vm2922, %v2913
        %2947 = vst.msk [vmem:[%s216 + $0xc0] sm:$0xff] %vm2922, %v2914
        %2948 = vst.msk [vmem:[%s216 + $0xc8] sm:$0xff] %vm2922, %v2915
        %2949 = vst.msk [vmem:[%s216 + $0xd0] sm:$0xff] %vm2922, %v2916
        %2950 = vst.msk [vmem:[%s216 + $0xd8] sm:$0xff] %vm2922, %v2917
        %2951 = vst.msk [vmem:[%s216 + $0xe0] sm:$0xff] %vm2922, %v2918
        %2952 = vst.msk [vmem:[%s216 + $0xe8] sm:$0xff] %vm2922, %v2919
        %2953 = vst.msk [vmem:[%s216 + $0xf0] sm:$0xff] %vm2922, %v2920
        %2954 = vst.msk [vmem:[%s216 + $0xf8] sm:$0xff] %vm2922, %v2921
        %v2955 = vsel %vm2922, %v2890, 0.0
        %v2956 = vsel %vm2922, %v2891, 0.0
        %v2957 = vadd.f32 %v2955, %v2956
        %v2958 = vsel %vm2922, %v2892, 0.0
        %v2959 = vadd.f32 %v2957, %v2958
        %v2960 = vsel %vm2922, %v2893, 0.0
        %v2961 = vadd.f32 %v2959, %v2960
        %v2962 = vsel %vm2922, %v2894, 0.0
        %v2963 = vadd.f32 %v2961, %v2962
        %v2964 = vsel %vm2922, %v2895, 0.0
        %v2965 = vadd.f32 %v2963, %v2964
        %v2966 = vsel %vm2922, %v2896, 0.0
        %v2967 = vadd.f32 %v2965, %v2966
        %v2968 = vsel %vm2922, %v2897, 0.0
        %v2969 = vadd.f32 %v2967, %v2968
        %v2970 = vsel %vm2922, %v2898, 0.0
        %v2971 = vadd.f32 %v2969, %v2970
        %v2972 = vsel %vm2922, %v2899, 0.0
        %v2973 = vadd.f32 %v2971, %v2972
        %v2974 = vsel %vm2922, %v2900, 0.0
        %v2975 = vadd.f32 %v2973, %v2974
        %v2976 = vsel %vm2922, %v2901, 0.0
        %v2977 = vadd.f32 %v2975, %v2976
        %v2978 = vsel %vm2922, %v2902, 0.0
        %v2979 = vadd.f32 %v2977, %v2978
        %v2980 = vsel %vm2922, %v2903, 0.0
        %v2981 = vadd.f32 %v2979, %v2980
        %v2982 = vsel %vm2922, %v2904, 0.0
        %v2983 = vadd.f32 %v2981, %v2982
        %v2984 = vsel %vm2922, %v2905, 0.0
        %v2985 = vadd.f32 %v2983, %v2984
        %v2986 = vsel %vm2922, %v2906, 0.0
        %v2987 = vadd.f32 %v2985, %v2986
        %v2988 = vsel %vm2922, %v2907, 0.0
        %v2989 = vadd.f32 %v2987, %v2988
        %v2990 = vsel %vm2922, %v2908, 0.0
        %v2991 = vadd.f32 %v2989, %v2990
        %v2992 = vsel %vm2922, %v2909, 0.0
        %v2993 = vadd.f32 %v2991, %v2992
        %v2994 = vsel %vm2922, %v2910, 0.0
        %v2995 = vadd.f32 %v2993, %v2994
        %v2996 = vsel %vm2922, %v2911, 0.0
        %v2997 = vadd.f32 %v2995, %v2996
        %v2998 = vsel %vm2922, %v2912, 0.0
        %v2999 = vadd.f32 %v2997, %v2998
        %v3000 = vsel %vm2922, %v2913, 0.0
        %v3001 = vadd.f32 %v2999, %v3000
        %v3002 = vsel %vm2922, %v2914, 0.0
        %v3003 = vadd.f32 %v3001, %v3002
        %v3004 = vsel %vm2922, %v2915, 0.0
        %v3005 = vadd.f32 %v3003, %v3004
        %v3006 = vsel %vm2922, %v2916, 0.0
        %v3007 = vadd.f32 %v3005, %v3006
        %v3008 = vsel %vm2922, %v2917, 0.0
        %v3009 = vadd.f32 %v3007, %v3008
        %v3010 = vsel %vm2922, %v2918, 0.0
        %v3011 = vadd.f32 %v3009, %v3010
        %v3012 = vsel %vm2922, %v2919, 0.0
        %v3013 = vadd.f32 %v3011, %v3012
        %v3014 = vsel %vm2922, %v2920, 0.0
        %v3015 = vadd.f32 %v3013, %v3014
        %v3016 = vsel %vm2922, %v2921, 0.0
        %v3017 = vadd.f32 %v3015, %v3016
        %v3018 = vrot.slane %v3017, 4
        %v3019 = vadd.f32 %v3017, %v3018
        %v3020 = vrot.slane %v3019, 2
        %v3021 = vadd.f32 %v3019, %v3020
        %v3022 = vrot.slane %v3021, 1
        %v3023 = vadd.f32 %v3021, %v3022
        %vm3024 = vcmask 57344
        %3025 = vst.msk [vmem:[%s200] sm:$0x1] %vm3024, %v3023
        %v3026 = vmul.f32 %v2890, %v2890
        %v3027 = vmul.f32 %v2891, %v2891
        %v3028 = vmul.f32 %v2892, %v2892
        %v3029 = vmul.f32 %v2893, %v2893
        %v3030 = vmul.f32 %v2894, %v2894
        %v3031 = vmul.f32 %v2895, %v2895
        %v3032 = vmul.f32 %v2896, %v2896
        %v3033 = vmul.f32 %v2897, %v2897
        %v3034 = vmul.f32 %v2898, %v2898
        %v3035 = vmul.f32 %v2899, %v2899
        %v3036 = vmul.f32 %v2900, %v2900
        %v3037 = vmul.f32 %v2901, %v2901
        %v3038 = vmul.f32 %v2902, %v2902
        %v3039 = vmul.f32 %v2903, %v2903
        %v3040 = vmul.f32 %v2904, %v2904
        %v3041 = vmul.f32 %v2905, %v2905
        %v3042 = vmul.f32 %v2906, %v2906
        %v3043 = vmul.f32 %v2907, %v2907
        %v3044 = vmul.f32 %v2908, %v2908
        %v3045 = vmul.f32 %v2909, %v2909
        %v3046 = vmul.f32 %v2910, %v2910
        %v3047 = vmul.f32 %v2911, %v2911
        %v3048 = vmul.f32 %v2912, %v2912
        %v3049 = vmul.f32 %v2913, %v2913
        %v3050 = vmul.f32 %v2914, %v2914
        %v3051 = vmul.f32 %v2915, %v2915
        %v3052 = vmul.f32 %v2916, %v2916
        %v3053 = vmul.f32 %v2917, %v2917
        %v3054 = vmul.f32 %v2918, %v2918
        %v3055 = vmul.f32 %v2919, %v2919
        %v3056 = vmul.f32 %v2920, %v2920
        %v3057 = vmul.f32 %v2921, %v2921
        %v3058 = vsel %vm2922, %v3026, 0.0
        %v3059 = vsel %vm2922, %v3027, 0.0
        %v3060 = vadd.f32 %v3058, %v3059
        %v3061 = vsel %vm2922, %v3028, 0.0
        %v3062 = vadd.f32 %v3060, %v3061
        %v3063 = vsel %vm2922, %v3029, 0.0
        %v3064 = vadd.f32 %v3062, %v3063
        %v3065 = vsel %vm2922, %v3030, 0.0
        %v3066 = vadd.f32 %v3064, %v3065
        %v3067 = vsel %vm2922, %v3031, 0.0
        %v3068 = vadd.f32 %v3066, %v3067
        %v3069 = vsel %vm2922, %v3032, 0.0
        %v3070 = vadd.f32 %v3068, %v3069
        %v3071 = vsel %vm2922, %v3033, 0.0
        %v3072 = vadd.f32 %v3070, %v3071
        %v3073 = vsel %vm2922, %v3034, 0.0
        %v3074 = vadd.f32 %v3072, %v3073
        %v3075 = vsel %vm2922, %v3035, 0.0
        %v3076 = vadd.f32 %v3074, %v3075
        %v3077 = vsel %vm2922, %v3036, 0.0
        %v3078 = vadd.f32 %v3076, %v3077
        %v3079 = vsel %vm2922, %v3037, 0.0
        %v3080 = vadd.f32 %v3078, %v3079
        %v3081 = vsel %vm2922, %v3038, 0.0
        %v3082 = vadd.f32 %v3080, %v3081
        %v3083 = vsel %vm2922, %v3039, 0.0
        %v3084 = vadd.f32 %v3082, %v3083
        %v3085 = vsel %vm2922, %v3040, 0.0
        %v3086 = vadd.f32 %v3084, %v3085
        %v3087 = vsel %vm2922, %v3041, 0.0
        %v3088 = vadd.f32 %v3086, %v3087
        %v3089 = vsel %vm2922, %v3042, 0.0
        %v3090 = vadd.f32 %v3088, %v3089
        %v3091 = vsel %vm2922, %v3043, 0.0
        %v3092 = vadd.f32 %v3090, %v3091
        %v3093 = vsel %vm2922, %v3044, 0.0
        %v3094 = vadd.f32 %v3092, %v3093
        %v3095 = vsel %vm2922, %v3045, 0.0
        %v3096 = vadd.f32 %v3094, %v3095
        %v3097 = vsel %vm2922, %v3046, 0.0
        %v3098 = vadd.f32 %v3096, %v3097
        %v3099 = vsel %vm2922, %v3047, 0.0
        %v3100 = vadd.f32 %v3098, %v3099
        %v3101 = vsel %vm2922, %v3048, 0.0
        %v3102 = vadd.f32 %v3100, %v3101
        %v3103 = vsel %vm2922, %v3049, 0.0
        %v3104 = vadd.f32 %v3102, %v3103
        %v3105 = vsel %vm2922, %v3050, 0.0
        %v3106 = vadd.f32 %v3104, %v3105
        %v3107 = vsel %vm2922, %v3051, 0.0
        %v3108 = vadd.f32 %v3106, %v3107
        %v3109 = vsel %vm2922, %v3052, 0.0
        %v3110 = vadd.f32 %v3108, %v3109
        %v3111 = vsel %vm2922, %v3053, 0.0
        %v3112 = vadd.f32 %v3110, %v3111
        %v3113 = vsel %vm2922, %v3054, 0.0
        %v3114 = vadd.f32 %v3112, %v3113
        %v3115 = vsel %vm2922, %v3055, 0.0
        %v3116 = vadd.f32 %v3114, %v3115
        %v3117 = vsel %vm2922, %v3056, 0.0
        %v3118 = vadd.f32 %v3116, %v3117
        %v3119 = vsel %vm2922, %v3057, 0.0
        %v3120 = vadd.f32 %v3118, %v3119
        %v3121 = vrot.slane %v3120, 4
        %v3122 = vadd.f32 %v3120, %v3121
        %v3123 = vrot.slane %v3122, 2
        %v3124 = vadd.f32 %v3122, %v3123
        %v3125 = vrot.slane %v3124, 1
        %v3126 = vadd.f32 %v3124, %v3125
        %3127 = vst.msk [vmem:[%s206] sm:$0x1] %vm3024, %v3126
        %p3128 = scmp.lt.s32.totalorder %s22, 1
        %s3129 = scalar_select %p3128, %s22, 1
        %s3130 = smul.addr %s3129, 32
        %s3131 = smul.addr %s3130, 8
        %s3132 = scalar_lea.vmem %s2, %s3131
        %s3133 = sand.u32 %s103, 1
        %s3134 = scalar_lea.sflag [#allocation4], %s3133
        %s3135 = sand.u32 %s103, 1
        %s3136 = scalar_lea.vmem [#allocation3], %s3135
        %s3137 = sand.u32 %s129, 1
        %s3138 = scalar_lea.sflag [#allocation6], %s3137
        %s3139 = sand.u32 %s129, 1
        %s3140 = scalar_lea.vmem [#allocation5], %s3139
        // Predicated region
        $region29: #{tpu_custom_call.1} parent=27 // pred_check
          %p3141 = pneg %p87
        $region30: #{tpu_custom_call.1} parent=27 // pred_check_branch
          %3143 = sbr.rel (%p3141) target = $region32
        $region31: #{tpu_custom_call.1} parent=27 // pred_region
          _
        $region32: #{tpu_custom_call.1} parent=27 // pred_fallthru
          _
        // Predicated region
        $region33: #{tpu_custom_call.1} parent=27 // pred_check
          %p3144 = pneg %p113
        $region34: #{tpu_custom_call.1} parent=27 // pred_check_branch
          %3146 = sbr.rel (%p3144) target = $region36
        $region35: #{tpu_custom_call.1} parent=27 // pred_region
          %s3148 = ssub.s32 16, 16
          %3149 = vsyncadd %s3134, %s3148
          %s3150 = smul.addr %s22, 16
          %s3151 = scalar_lea.hbm %s3, %s3150
          %s3153 = sshll.u32 %s3136, 4
          %s3154 = int_to_ptr.vmem [resolvable:$true] %s3153
          %3156 = dma.vmem_to_hbm [thread:$0]  %s3154, 16, %s3151, %s3134
        $region36: #{tpu_custom_call.1} parent=27 // pred_fallthru
          _
        // Predicated region
        $region37: #{tpu_custom_call.1} parent=27 // pred_check
          %p3157 = pneg %p139
        $region38: #{tpu_custom_call.1} parent=27 // pred_check_branch
          %3159 = sbr.rel (%p3157) target = $region40
        $region39: #{tpu_custom_call.1} parent=27 // pred_region
          %s3161 = ssub.s32 16, 16
          %3162 = vsyncadd %s3138, %s3161
          %s3163 = smul.addr %s22, 16
          %s3164 = scalar_lea.hbm %s4, %s3163
          %s3166 = sshll.u32 %s3140, 4
          %s3167 = int_to_ptr.vmem [resolvable:$true] %s3166
          %3169 = dma.vmem_to_hbm [thread:$0]  %s3167, 16, %s3164, %s3138
        $region40: #{tpu_custom_call.1} parent=27 // pred_fallthru
          _
      $region28: #{tpu_custom_call.1} parent=5 // pred_fallthru
        _
      %p3170 = scmp.le.s32.totalorder 2, %s17
      // Predicated region
      $region41: #{tpu_custom_call.1} parent=5 // pred_check
        %p3171 = pneg %p3170
      $region42: #{tpu_custom_call.1} parent=5 // pred_check_branch
        %3173 = sbr.rel (%p3171) target = $region44
      $region43: #{tpu_custom_call.1} parent=5 // pred_region
        %s3174 = ssub.s32 %s17, 2
        // Predicated region
        $region45: #{tpu_custom_call.1} parent=43 // pred_check
          %p3175 = pneg %p93
        $region46: #{tpu_custom_call.1} parent=43 // pred_check_branch
          %3177 = sbr.rel (%p3175) target = $region48
        $region47: #{tpu_custom_call.1} parent=43 // pred_region
          %p3178 = scmp.lt.s32.totalorder %s23, 1
          %s3179 = scalar_select %p3178, %s23, 1
          %s3180 = smul.addr %s3179, 32
          %s3181 = smul.addr %s3180, 8
          %s3182 = scalar_lea.vmem %s2, %s3181
        $region48: #{tpu_custom_call.1} parent=43 // pred_fallthru
          _
        // Predicated region
        $region49: #{tpu_custom_call.1} parent=43 // pred_check
          %p3183 = pneg %p119
        $region50: #{tpu_custom_call.1} parent=43 // pred_check_branch
          %3185 = sbr.rel (%p3183) target = $region52
        $region51: #{tpu_custom_call.1} parent=43 // pred_region
          %s3186 = sand.u32 %s104, 1
          %s3187 = scalar_lea.sflag [#allocation4], %s3186
          %s3188 = sand.u32 %s104, 1
          %s3189 = scalar_lea.vmem [#allocation3], %s3188
          %3190 = dma.done %s3187, 16
        $region52: #{tpu_custom_call.1} parent=43 // pred_fallthru
          _
        // Predicated region
        $region53: #{tpu_custom_call.1} parent=43 // pred_check
          %p3191 = pneg %p145
        $region54: #{tpu_custom_call.1} parent=43 // pred_check_branch
          %3193 = sbr.rel (%p3191) target = $region56
        $region55: #{tpu_custom_call.1} parent=43 // pred_region
          %s3194 = sand.u32 %s130, 1
          %s3195 = scalar_lea.sflag [#allocation6], %s3194
          %s3196 = sand.u32 %s130, 1
          %s3197 = scalar_lea.vmem [#allocation5], %s3196
          %3198 = dma.done %s3195, 16
        $region56: #{tpu_custom_call.1} parent=43 // pred_fallthru
          _
      $region44: #{tpu_custom_call.1} parent=5 // pred_fallthru
        _
    $region6: #{tpu_custom_call.1} parent=1 // loop_footer
      %s21 = sadd.s32 1, %s17
    $region7: #{tpu_custom_call.1} parent=1 // loop_footer_branch
      %16 = sbr.rel target = $region3
    $region8: #{tpu_custom_call.1} parent=1 // loop_exit
      _
    %3199 = vsyncpa [#allocation4], 1
    %s3200 = scalar_lea.sflag [#allocation4], 1
    %3201 = vsyncpa %s3200, 1
    %3202 = vsyncpa [#allocation6], 1
    %s3203 = scalar_lea.sflag [#allocation6], 1
    %3204 = vsyncpa %s3203, 1

</llo_original>
